<compile_context>
chip_gen: v7x
topology: tpu7x:2x2x1
jax: 0.10.0
libtpu: 0.0.40
codegen_flags: <defaults>
</compile_context>

<pallas_src>
import functools

import numpy as np
import jax
import jax.numpy as jnp
from jax import lax
from jax.experimental import pallas as pl
from jax.experimental.pallas import tpu as pltpu

# ----------------------------- hyper-parameters ------------------------------
DX = 2                     # x feature dim
DY = 1                     # y feature dim
DZ = 32                    # token / hidden dim
NUM_HEADS = 4
HEAD_DIM = DZ // NUM_HEADS
DFF = 2 * DZ               # transformer feed-forward width
NUM_LAYERS = 2             # transformer layers
DIN = DX + DY + 1          # xy_encoder input dim (x ++ y ++ observed-flag)


# --------------------------------- kernel ------------------------------------
def _layernorm_rsqrt(x, g, b, eps=1e-5):
    mu = jnp.mean(x, axis=-1, keepdims=True)
    xm = x - mu
    var = jnp.mean(xm * xm, axis=-1, keepdims=True)
    return xm * lax.rsqrt(var + eps) * g + b          # rsqrt -> EUP slot


def tnp_encoder_kernel(nc, nt,
                       z_ref, bias_ref,
                       mlp_ref, qkv_ref, wo_ref, ln_ref, ff1_ref, ff2_ref,
                       out_ref):
    B, n, _ = z_ref.shape
    assert n == nc + nt

    # ---- fused xy_encoder MLP over all B*(nc+nt) tokens (batch folded into M) ----
    z_in = z_ref[...].reshape(B * n, DIN)             # leading-dim merge: cheap (n % 8 == 0)
    mlp = mlp_ref[...]
    w1 = mlp[0:DIN]
    b1 = mlp[DIN:DIN + 1]
    w2 = mlp[DIN + 1:DIN + 1 + DZ]
    b2 = mlp[DIN + 1 + DZ:DIN + 2 + DZ]
    h = jnp.maximum(jnp.dot(z_in, w1, preferred_element_type=jnp.float32) + b1, 0.0)
    z = jnp.dot(h, w2, preferred_element_type=jnp.float32) + b2      # [B*n, DZ]

    bias = bias_ref[...]                              # [n, n], precomputed mask bias
    scale = 1.0 / float(np.sqrt(HEAD_DIM))

    for l in range(NUM_LAYERS):                       # static unrolled layer loop
        ln = ln_ref[l]                                # [4, DZ]
        ln1g, ln1b, ln2g, ln2b = ln[0:1], ln[1:2], ln[2:3], ln[3:4]

        # --- masked multi-head self-attention (pre-norm), fused QKV matmul ---
        zn = _layernorm_rsqrt(z, ln1g, ln1b)
        qkv_l = qkv_ref[l]                            # [DZ+1, 3*DZ]
        qkv = jnp.dot(zn, qkv_l[0:DZ],
                      preferred_element_type=jnp.float32) + qkv_l[DZ:DZ + 1]
        qkv = qkv.reshape(B, n, 3 * DZ)               # leading-dim split: cheap

        wo_l = wo_ref[l]                              # [DZ+1, DZ]
        wo = wo_l[0:DZ]
        bo = wo_l[DZ:DZ + 1]

        attn = jnp.zeros((B * n, DZ), jnp.float32)
        for hh in range(NUM_HEADS):                   # static unrolled head loop
            qh = qkv[:, :, hh * HEAD_DIM:(hh + 1) * HEAD_DIM]
            kh = qkv[:, :, DZ + hh * HEAD_DIM:DZ + (hh + 1) * HEAD_DIM]
            vh = qkv[:, :, 2 * DZ + hh * HEAD_DIM:2 * DZ + (hh + 1) * HEAD_DIM]
            s = jnp.einsum('bqd,bkd->bqk', qh, kh,
                           preferred_element_type=jnp.float32)
            s = s * scale + bias                      # bias broadcasts over batch
            s = s - jnp.max(s, axis=-1, keepdims=True)
            p = jnp.exp(s)
            p = p * pl.reciprocal(jnp.sum(p, axis=-1, keepdims=True), approx=True)
            oh = jnp.einsum('bqk,bkd->bqd', p, vh,
                            preferred_element_type=jnp.float32)      # [B, n, d]
            # concat_h(o_h) @ Wo == sum_h o_h @ Wo[h*d:(h+1)*d]  -> avoids lane concat
            attn = attn + jnp.dot(oh.reshape(B * n, HEAD_DIM),
                                  wo[hh * HEAD_DIM:(hh + 1) * HEAD_DIM],
                                  preferred_element_type=jnp.float32)
        z = z + attn + bo

        # --- feed-forward (pre-norm) ---
        zn2 = _layernorm_rsqrt(z, ln2g, ln2b)
        ff1 = ff1_ref[l]                              # [DZ+1, DFF]
        ff2 = ff2_ref[l]                              # [DFF+1, DZ]
        hmid = jnp.maximum(
            jnp.dot(zn2, ff1[0:DZ], preferred_element_type=jnp.float32) + ff1[DZ:DZ + 1],
            0.0)
        z = z + jnp.dot(hmid, ff2[0:DFF],
                        preferred_element_type=jnp.float32) + ff2[DFF:DFF + 1]

    # target slice (nc is sublane aligned in the demo) -> [B, nt, DZ]
    out_ref[...] = z.reshape(B, n, DZ)[:, nc:, :]


# -------------------------------- wrapper -------------------------------------
def _pick_batch_block(m, max_block=8):
    """Largest divisor of m that is <= max_block, preferring >=2 grid steps (v7x megacore)."""
    divisors = [d for d in range(1, min(m, max_block) + 1) if m % d == 0]
    prefer = [d for d in divisors if m // d >= 2]
    return max(prefer) if prefer else max(divisors)


def _pack_params(p):
    """Consolidate the 20 small parameter tensors into 6 packed VMEM blocks."""
    mlp_pack = jnp.concatenate([p["w1"], p["b1"], p["w2"], p["b2"]], axis=0)   # [DIN+DZ+2, DZ]
    wqkv = jnp.concatenate([p["wq"], p["wk"], p["wv"]], axis=-1)               # [L, DZ, 3DZ]
    bqkv = jnp.concatenate([p["bq"], p["bk"], p["bv"]], axis=-1)               # [L, 1, 3DZ]
    qkv_pack = jnp.concatenate([wqkv, bqkv], axis=1)                           # [L, DZ+1, 3DZ]
    wo_pack = jnp.concatenate([p["wo"], p["bo"]], axis=1)                      # [L, DZ+1, DZ]
    ln_pack = jnp.concatenate([p["ln1g"], p["ln1b"], p["ln2g"], p["ln2b"]], axis=1)  # [L,4,DZ]
    ff1_pack = jnp.concatenate([p["fw1"], p["fb1"]], axis=1)                   # [L, DZ+1, DFF]
    ff2_pack = jnp.concatenate([p["fw2"], p["fb2"]], axis=1)                   # [L, DFF+1, DZ]
    return mlp_pack, qkv_pack, wo_pack, ln_pack, ff1_pack, ff2_pack


def tnp_encoder_masked(xc, yc, xt, params, *, batch_block=None):
    """xc: [m, nc, dx], yc: [m, nc, dy], xt: [m, nt, dx] -> [m, nt, DZ]."""
    m, nc, _ = xc.shape
    nt = xt.shape[1]
    n = nc + nt
    dy = yc.shape[-1]

    # glue: preprocess_observations + Identity x/y encoders + feature & sequence concat
    yc_p = jnp.concatenate([yc, jnp.zeros((m, nc, 1), yc.dtype)], axis=-1)
    yt_p = jnp.concatenate([jnp.zeros((m, nt, dy), yc.dtype),
                            jnp.ones((m, nt, 1), yc.dtype)], axis=-1)
    zc_raw = jnp.concatenate([xc, yc_p], axis=-1)                   # [m, nc, DIN]
    zt_raw = jnp.concatenate([xt, yt_p], axis=-1)                   # [m, nt, DIN]
    z_raw = jnp.concatenate([zc_raw, zt_raw], axis=1).astype(jnp.float32)   # [m, n, DIN]

    # batch-invariant TNP attention-mask bias, precomputed once outside the kernel.
    row = jnp.arange(n)[:, None]
    col = jnp.arange(n)[None, :]
    bias = jnp.where((col < nc) | (col == row), 0.0, -1e30).astype(jnp.float32)   # [n, n]

    packed = _pack_params(params)

    B = batch_block if batch_block is not None else _pick_batch_block(m)
    assert m % B == 0, "batch block must divide batch size"
    grid = (m // B,)

    def const_spec(x):                       # parameters / mask: resident across the grid
        if x.ndim == 2:
            return pl.BlockSpec(x.shape, lambda b: (0, 0))
        return pl.BlockSpec(x.shape, lambda b: (0, 0, 0))

    in_specs = [pl.BlockSpec((B, n, DIN), lambda b: (b, 0, 0)),
                const_spec(bias)] + [const_spec(x) for x in packed]

    kernel = functools.partial(tnp_encoder_kernel, nc, nt)

    out = pl.pallas_call(
        kernel,
        out_shape=jax.ShapeDtypeStruct((m, nt, DZ), jnp.float32),
        grid=grid,
        in_specs=in_specs,
        out_specs=pl.BlockSpec((B, nt, DZ), lambda b: (b, 0, 0)),
        compiler_params=pltpu.CompilerParams(dimension_semantics=("parallel",)),
    )(z_raw, bias, *packed)
    return out


# ------------------------------ param init ------------------------------------
def init_params(key):
    keys = iter(jax.random.split(key, 16))

    def dense(fan_in, shape):
        return jax.random.normal(next(keys), shape, jnp.float32) / np.sqrt(fan_in)

    p = {
        "w1": dense(DIN, (DIN, DZ)), "b1": jnp.zeros((1, DZ), jnp.float32),
        "w2": dense(DZ, (DZ, DZ)),   "b2": jnp.zeros((1, DZ), jnp.float32),
        "wq": dense(DZ, (NUM_LAYERS, DZ, DZ)),
        "bq": jnp.zeros((NUM_LAYERS, 1, DZ), jnp.float32),
        "wk": dense(DZ, (NUM_LAYERS, DZ, DZ)),
        "bk": jnp.zeros((NUM_LAYERS, 1, DZ), jnp.float32),
        "wv": dense(DZ, (NUM_LAYERS, DZ, DZ)),
        "bv": jnp.zeros((NUM_LAYERS, 1, DZ), jnp.float32),
        "wo": dense(DZ, (NUM_LAYERS, DZ, DZ)),
        "bo": jnp.zeros((NUM_LAYERS, 1, DZ), jnp.float32),
        "ln1g": jnp.ones((NUM_LAYERS, 1, DZ), jnp.float32),
        "ln1b": jnp.zeros((NUM_LAYERS, 1, DZ), jnp.float32),
        "ln2g": jnp.ones((NUM_LAYERS, 1, DZ), jnp.float32),
        "ln2b": jnp.zeros((NUM_LAYERS, 1, DZ), jnp.float32),
        "fw1": dense(DZ, (NUM_LAYERS, DZ, DFF)),
        "fb1": jnp.zeros((NUM_LAYERS, 1, DFF), jnp.float32),
        "fw2": dense(DFF, (NUM_LAYERS, DFF, DZ)),
        "fb2": jnp.zeros((NUM_LAYERS, 1, DZ), jnp.float32),
    }
    return p


# ---------------------------- pure-JAX reference -------------------------------
def _layernorm_ref(x, g, b, eps=1e-5):
    mu = jnp.mean(x, axis=-1, keepdims=True)
    var = jnp.mean((x - mu) ** 2, axis=-1, keepdims=True)
    return (x - mu) / jnp.sqrt(var + eps) * g + b


def reference_forward(xc, yc, xt, p):
    m, nc, _ = xc.shape
    nt = xt.shape[1]
    dy = yc.shape[-1]
    hp = lax.Precision.HIGHEST

    yc_p = jnp.concatenate([yc, jnp.zeros((m, nc, 1), yc.dtype)], -1)
    yt_p = jnp.concatenate([jnp.zeros((m, nt, dy), yc.dtype),
                            jnp.ones((m, nt, 1), yc.dtype)], -1)
    zc = jnp.concatenate([xc, yc_p], -1)
    zt = jnp.concatenate([xt, yt_p], -1)

    def mlp(z):
        h = jnp.maximum(jnp.einsum("mnd,de->mne", z, p["w1"], precision=hp) + p["b1"][0], 0.0)
        return jnp.einsum("mnd,de->mne", h, p["w2"], precision=hp) + p["b2"][0]

    z = jnp.concatenate([mlp(zc), mlp(zt)], axis=1)   # [m, n, DZ]
    n = nc + nt
    row = jnp.arange(n)[:, None]
    col = jnp.arange(n)[None, :]
    bias = jnp.where((col < nc) | (col == row), 0.0, -1e30).astype(jnp.float32)
    scale = 1.0 / np.sqrt(HEAD_DIM)

    for l in range(NUM_LAYERS):
        zn = _layernorm_ref(z, p["ln1g"][l, 0], p["ln1b"][l, 0])
        q = jnp.einsum("mnd,de->mne", zn, p["wq"][l], precision=hp) + p["bq"][l, 0]
        k = jnp.einsum("mnd,de->mne", zn, p["wk"][l], precision=hp) + p["bk"][l, 0]
        v = jnp.einsum("mnd,de->mne", zn, p["wv"][l], precision=hp) + p["bv"][l, 0]
        q = q.reshape(m, n, NUM_HEADS, HEAD_DIM)
        k = k.reshape(m, n, NUM_HEADS, HEAD_DIM)
        v = v.reshape(m, n, NUM_HEADS, HEAD_DIM)
        s = jnp.einsum("mqhd,mkhd->mhqk", q, k, precision=hp) * scale + bias
        a = jax.nn.softmax(s, axis=-1)
        o = jnp.einsum("mhqk,mkhd->mqhd", a, v, precision=hp).reshape(m, n, DZ)
        o = jnp.einsum("mnd,de->mne", o, p["wo"][l], precision=hp) + p["bo"][l, 0]
        z = z + o
        zn2 = _layernorm_ref(z, p["ln2g"][l, 0], p["ln2b"][l, 0])
        hmid = jnp.maximum(
            jnp.einsum("mnd,de->mne", zn2, p["fw1"][l], precision=hp) + p["fb1"][l, 0], 0.0)
        z = z + jnp.einsum("mnd,de->mne", hmid, p["fw2"][l], precision=hp) + p["fb2"][l, 0]
    return z[:, nc:]


# ----------------------------------- main --------------------------------------
if __name__ == "__main__":
    key = jax.random.PRNGKey(0)
    k1, k2, k3, k4 = jax.random.split(key, 4)

    m, nc, nt = 4, 8, 8          # m=4 -> batch block B=2, grid=(2,): exercises batch folding
    xc = jax.random.normal(k1, (m, nc, DX), jnp.float32)
    yc = jax.random.normal(k2, (m, nc, DY), jnp.float32)
    xt = jax.random.normal(k3, (m, nt, DX), jnp.float32)
    params = init_params(k4)

    out = tnp_encoder_masked(xc, yc, xt, params)
    out = jax.block_until_ready(out)

    ref = reference_forward(xc, yc, xt, params)
    np.testing.assert_allclose(np.asarray(out), np.asarray(ref), atol=2e-2, rtol=2e-2)
    assert out.shape == (m, nt, DZ)
    print("KERNEL_OK")
</pallas_src>

<mosaic_0001>
module attributes {stable_mosaic.version = 11 : i64} {
  func.func @tnp_encoder_kernel(%arg0: i32, %arg1: memref<2x16x4xf32, #tpu.memory_space<vmem>>, %arg2: memref<16x16xf32, #tpu.memory_space<vmem>>, %arg3: memref<38x32xf32, #tpu.memory_space<vmem>>, %arg4: memref<2x33x96xf32, #tpu.memory_space<vmem>>, %arg5: memref<2x33x32xf32, #tpu.memory_space<vmem>>, %arg6: memref<2x4x32xf32, #tpu.memory_space<vmem>>, %arg7: memref<2x33x64xf32, #tpu.memory_space<vmem>>, %arg8: memref<2x65x32xf32, #tpu.memory_space<vmem>>, %arg9: memref<2x8x32xf32, #tpu.memory_space<vmem>>) attributes {dimension_semantics = [#tpu.dimension_semantics<parallel>], iteration_bounds = array<i64: 2>, scalar_prefetch = 0 : i64, scratch_operands = 0 : i64, tpu.core_type = #tpu.core_type<tc>, window_params = [{transform_indices = @transform_0, window_bounds = array<i64: 2, 16, 4>}, {pipeline_mode = #tpu.pipeline_mode<synchronous>, transform_indices = @transform_1, window_bounds = array<i64: 16, 16>}, {pipeline_mode = #tpu.pipeline_mode<synchronous>, transform_indices = @transform_2, window_bounds = array<i64: 38, 32>}, {pipeline_mode = #tpu.pipeline_mode<synchronous>, transform_indices = @transform_3, window_bounds = array<i64: 2, 33, 96>}, {pipeline_mode = #tpu.pipeline_mode<synchronous>, transform_indices = @transform_4, window_bounds = array<i64: 2, 33, 32>}, {pipeline_mode = #tpu.pipeline_mode<synchronous>, transform_indices = @transform_5, window_bounds = array<i64: 2, 4, 32>}, {pipeline_mode = #tpu.pipeline_mode<synchronous>, transform_indices = @transform_6, window_bounds = array<i64: 2, 33, 64>}, {pipeline_mode = #tpu.pipeline_mode<synchronous>, transform_indices = @transform_7, window_bounds = array<i64: 2, 65, 32>}, {transform_indices = @transform_8, window_bounds = array<i64: 2, 8, 32>}]} {
    %c0 = arith.constant 0 : index
    %c0_0 = arith.constant 0 : index
    %c0_1 = arith.constant 0 : index
    %0 = vector.load %arg1[%c0, %c0_0, %c0_1] : memref<2x16x4xf32, #tpu.memory_space<vmem>>, vector<2x16x4xf32>
    %1 = vector.shape_cast %0 : vector<2x16x4xf32> to vector<32x4xf32>
    %c0_2 = arith.constant 0 : index
    %c0_3 = arith.constant 0 : index
    %2 = vector.load %arg3[%c0_2, %c0_3] : memref<38x32xf32, #tpu.memory_space<vmem>>, vector<38x32xf32>
    %3 = vector.extract_strided_slice %2 {offsets = [0, 0], sizes = [4, 32], strides = [1, 1]} : vector<38x32xf32> to vector<4x32xf32>
    %4 = vector.extract_strided_slice %2 {offsets = [4, 0], sizes = [1, 32], strides = [1, 1]} : vector<38x32xf32> to vector<1x32xf32>
    %5 = vector.extract_strided_slice %2 {offsets = [5, 0], sizes = [32, 32], strides = [1, 1]} : vector<38x32xf32> to vector<32x32xf32>
    %6 = vector.extract_strided_slice %2 {offsets = [37, 0], sizes = [1, 32], strides = [1, 1]} : vector<38x32xf32> to vector<1x32xf32>
    %cst = arith.constant dense<0.000000e+00> : vector<32x32xf32>
    %7 = tpu.matmul %1, %3, %cst {dimension_numbers = #tpu.dot_dimension_numbers<[1], [0], [0], [1], [0, 0, 1, 1], [], []>} : vector<32x4xf32>, vector<4x32xf32>, vector<32x32xf32> -> vector<32x32xf32>
    %8 = vector.broadcast %4 : vector<1x32xf32> to vector<32x32xf32>
    %9 = arith.addf %7, %8 : vector<32x32xf32>
    %cst_4 = arith.constant 0.000000e+00 : f32
    %10 = vector.broadcast %cst_4 : f32 to vector<32x32xf32>
    %11 = arith.maximumf %9, %10 : vector<32x32xf32>
    %cst_5 = arith.constant dense<0.000000e+00> : vector<32x32xf32>
    %12 = tpu.matmul %11, %5, %cst_5 {dimension_numbers = #tpu.dot_dimension_numbers<[1], [0], [0], [1], [0, 0, 1, 1], [], []>} : vector<32x32xf32>, vector<32x32xf32>, vector<32x32xf32> -> vector<32x32xf32>
    %13 = vector.broadcast %6 : vector<1x32xf32> to vector<32x32xf32>
    %14 = arith.addf %12, %13 : vector<32x32xf32>
    %c0_6 = arith.constant 0 : index
    %c0_7 = arith.constant 0 : index
    %15 = vector.load %arg2[%c0_6, %c0_7] : memref<16x16xf32, #tpu.memory_space<vmem>>, vector<16x16xf32>
    %c0_8 = arith.constant 0 : index
    %c0_9 = arith.constant 0 : index
    %c0_10 = arith.constant 0 : index
    %16 = vector.load %arg6[%c0_8, %c0_9, %c0_10] : memref<2x4x32xf32, #tpu.memory_space<vmem>>, vector<1x4x32xf32>
    %17 = vector.shape_cast %16 : vector<1x4x32xf32> to vector<4x32xf32>
    %18 = vector.extract_strided_slice %17 {offsets = [0, 0], sizes = [1, 32], strides = [1, 1]} : vector<4x32xf32> to vector<1x32xf32>
    %19 = vector.extract_strided_slice %17 {offsets = [1, 0], sizes = [1, 32], strides = [1, 1]} : vector<4x32xf32> to vector<1x32xf32>
    %20 = vector.extract_strided_slice %17 {offsets = [2, 0], sizes = [1, 32], strides = [1, 1]} : vector<4x32xf32> to vector<1x32xf32>
    %21 = vector.extract_strided_slice %17 {offsets = [3, 0], sizes = [1, 32], strides = [1, 1]} : vector<4x32xf32> to vector<1x32xf32>
    %cst_11 = arith.constant dense<0.000000e+00> : vector<32xf32>
    %22 = vector.multi_reduction <add>, %14, %cst_11 [1] : vector<32x32xf32> to vector<32xf32>
    %23 = vector.shape_cast %22 : vector<32xf32> to vector<32x1xf32>
    %cst_12 = arith.constant 3.200000e+01 : f32
    %24 = vector.broadcast %cst_12 : f32 to vector<32x1xf32>
    %25 = arith.divf %23, %24 : vector<32x1xf32>
    %26 = vector.broadcast %25 : vector<32x1xf32> to vector<32x32xf32>
    %27 = arith.subf %14, %26 : vector<32x32xf32>
    %28 = arith.mulf %27, %27 : vector<32x32xf32>
    %cst_13 = arith.constant dense<0.000000e+00> : vector<32xf32>
    %29 = vector.multi_reduction <add>, %28, %cst_13 [1] : vector<32x32xf32> to vector<32xf32>
    %30 = vector.shape_cast %29 : vector<32xf32> to vector<32x1xf32>
    %cst_14 = arith.constant 3.200000e+01 : f32
    %31 = vector.broadcast %cst_14 : f32 to vector<32x1xf32>
    %32 = arith.divf %30, %31 : vector<32x1xf32>
    %cst_15 = arith.constant 9.99999974E-6 : f32
    %33 = vector.broadcast %cst_15 : f32 to vector<32x1xf32>
    %34 = arith.addf %32, %33 : vector<32x1xf32>
    %35 = math.rsqrt %34 : vector<32x1xf32>
    %36 = vector.broadcast %35 : vector<32x1xf32> to vector<32x32xf32>
    %37 = arith.mulf %27, %36 : vector<32x32xf32>
    %38 = vector.broadcast %18 : vector<1x32xf32> to vector<32x32xf32>
    %39 = arith.mulf %37, %38 : vector<32x32xf32>
    %40 = vector.broadcast %19 : vector<1x32xf32> to vector<32x32xf32>
    %41 = arith.addf %39, %40 : vector<32x32xf32>
    %c0_16 = arith.constant 0 : index
    %c0_17 = arith.constant 0 : index
    %c0_18 = arith.constant 0 : index
    %42 = vector.load %arg4[%c0_16, %c0_17, %c0_18] : memref<2x33x96xf32, #tpu.memory_space<vmem>>, vector<1x33x96xf32>
    %43 = vector.shape_cast %42 : vector<1x33x96xf32> to vector<33x96xf32>
    %44 = vector.extract_strided_slice %43 {offsets = [0, 0], sizes = [32, 96], strides = [1, 1]} : vector<33x96xf32> to vector<32x96xf32>
    %cst_19 = arith.constant dense<0.000000e+00> : vector<32x96xf32>
    %45 = tpu.matmul %41, %44, %cst_19 {dimension_numbers = #tpu.dot_dimension_numbers<[1], [0], [0], [1], [0, 0, 1, 1], [], []>} : vector<32x32xf32>, vector<32x96xf32>, vector<32x96xf32> -> vector<32x96xf32>
    %46 = vector.extract_strided_slice %43 {offsets = [32, 0], sizes = [1, 96], strides = [1, 1]} : vector<33x96xf32> to vector<1x96xf32>
    %47 = vector.broadcast %46 : vector<1x96xf32> to vector<32x96xf32>
    %48 = arith.addf %45, %47 : vector<32x96xf32>
    %49 = vector.shape_cast %48 : vector<32x96xf32> to vector<2x16x96xf32>
    %c0_20 = arith.constant 0 : index
    %c0_21 = arith.constant 0 : index
    %c0_22 = arith.constant 0 : index
    %50 = vector.load %arg5[%c0_20, %c0_21, %c0_22] : memref<2x33x32xf32, #tpu.memory_space<vmem>>, vector<1x33x32xf32>
    %51 = vector.shape_cast %50 : vector<1x33x32xf32> to vector<33x32xf32>
    %52 = vector.extract_strided_slice %51 {offsets = [0, 0], sizes = [32, 32], strides = [1, 1]} : vector<33x32xf32> to vector<32x32xf32>
    %53 = vector.extract_strided_slice %51 {offsets = [32, 0], sizes = [1, 32], strides = [1, 1]} : vector<33x32xf32> to vector<1x32xf32>
    %cst_23 = arith.constant 0.000000e+00 : f32
    %54 = vector.broadcast %cst_23 : f32 to vector<32x32xf32>
    %55 = vector.extract_strided_slice %49 {offsets = [0, 0, 0], sizes = [2, 16, 8], strides = [1, 1, 1]} : vector<2x16x96xf32> to vector<2x16x8xf32>
    %56 = vector.extract_strided_slice %49 {offsets = [0, 0, 32], sizes = [2, 16, 8], strides = [1, 1, 1]} : vector<2x16x96xf32> to vector<2x16x8xf32>
    %57 = vector.extract_strided_slice %49 {offsets = [0, 0, 64], sizes = [2, 16, 8], strides = [1, 1, 1]} : vector<2x16x96xf32> to vector<2x16x8xf32>
    "tpu.trace_start"() <{level = 10 : i32, message = "bqd,bkd->bqk"}> : () -> ()
    %cst_24 = arith.constant dense<0.000000e+00> : vector<2x16x16xf32>
    %58 = tpu.matmul %55, %56, %cst_24 {dimension_numbers = #tpu.dot_dimension_numbers<[2], [2], [1], [1], [0, 0, 0, 1, 1, 1], [0], [0]>} : vector<2x16x8xf32>, vector<2x16x8xf32>, vector<2x16x16xf32> -> vector<2x16x16xf32>
    "tpu.trace_stop"() : () -> ()
    %cst_25 = arith.constant 0.353553385 : f32
    %59 = vector.broadcast %cst_25 : f32 to vector<2x16x16xf32>
    %60 = arith.mulf %58, %59 : vector<2x16x16xf32>
    %61 = vector.shape_cast %15 : vector<16x16xf32> to vector<1x16x16xf32>
    %62 = vector.broadcast %61 : vector<1x16x16xf32> to vector<2x16x16xf32>
    %63 = arith.addf %60, %62 : vector<2x16x16xf32>
    %cst_26 = arith.constant dense<0xFF800000> : vector<2x16xf32>
    %64 = vector.multi_reduction <maximumf>, %63, %cst_26 [2] : vector<2x16x16xf32> to vector<2x16xf32>
    %65 = vector.shape_cast %64 : vector<2x16xf32> to vector<2x16x1xf32>
    %66 = vector.broadcast %65 : vector<2x16x1xf32> to vector<2x16x16xf32>
    %67 = arith.subf %63, %66 : vector<2x16x16xf32>
    %68 = math.exp %67 : vector<2x16x16xf32>
    %cst_27 = arith.constant dense<0.000000e+00> : vector<2x16xf32>
    %69 = vector.multi_reduction <add>, %68, %cst_27 [2] : vector<2x16x16xf32> to vector<2x16xf32>
    %70 = vector.shape_cast %69 : vector<2x16xf32> to vector<2x16x1xf32>
    %71 = tpu.reciprocal %70 {approx = true} : vector<2x16x1xf32> -> vector<2x16x1xf32>
    %72 = vector.broadcast %71 : vector<2x16x1xf32> to vector<2x16x16xf32>
    %73 = arith.mulf %68, %72 : vector<2x16x16xf32>
    "tpu.trace_start"() <{level = 10 : i32, message = "bqk,bkd->bqd"}> : () -> ()
    %cst_28 = arith.constant dense<0.000000e+00> : vector<2x16x8xf32>
    %74 = tpu.matmul %73, %57, %cst_28 {dimension_numbers = #tpu.dot_dimension_numbers<[2], [1], [1], [2], [0, 0, 0, 1, 1, 2], [0], [0]>} : vector<2x16x16xf32>, vector<2x16x8xf32>, vector<2x16x8xf32> -> vector<2x16x8xf32>
    "tpu.trace_stop"() : () -> ()
    %75 = vector.shape_cast %74 : vector<2x16x8xf32> to vector<32x8xf32>
    %76 = vector.extract_strided_slice %52 {offsets = [0, 0], sizes = [8, 32], strides = [1, 1]} : vector<32x32xf32> to vector<8x32xf32>
    %cst_29 = arith.constant dense<0.000000e+00> : vector<32x32xf32>
    %77 = tpu.matmul %75, %76, %cst_29 {dimension_numbers = #tpu.dot_dimension_numbers<[1], [0], [0], [1], [0, 0, 1, 1], [], []>} : vector<32x8xf32>, vector<8x32xf32>, vector<32x32xf32> -> vector<32x32xf32>
    %78 = arith.addf %54, %77 : vector<32x32xf32>
    %79 = vector.extract_strided_slice %49 {offsets = [0, 0, 8], sizes = [2, 16, 8], strides = [1, 1, 1]} : vector<2x16x96xf32> to vector<2x16x8xf32>
    %80 = vector.extract_strided_slice %49 {offsets = [0, 0, 40], sizes = [2, 16, 8], strides = [1, 1, 1]} : vector<2x16x96xf32> to vector<2x16x8xf32>
    %81 = vector.extract_strided_slice %49 {offsets = [0, 0, 72], sizes = [2, 16, 8], strides = [1, 1, 1]} : vector<2x16x96xf32> to vector<2x16x8xf32>
    "tpu.trace_start"() <{level = 10 : i32, message = "bqd,bkd->bqk"}> : () -> ()
    %cst_30 = arith.constant dense<0.000000e+00> : vector<2x16x16xf32>
    %82 = tpu.matmul %79, %80, %cst_30 {dimension_numbers = #tpu.dot_dimension_numbers<[2], [2], [1], [1], [0, 0, 0, 1, 1, 1], [0], [0]>} : vector<2x16x8xf32>, vector<2x16x8xf32>, vector<2x16x16xf32> -> vector<2x16x16xf32>
    "tpu.trace_stop"() : () -> ()
    %cst_31 = arith.constant 0.353553385 : f32
    %83 = vector.broadcast %cst_31 : f32 to vector<2x16x16xf32>
    %84 = arith.mulf %82, %83 : vector<2x16x16xf32>
    %85 = vector.shape_cast %15 : vector<16x16xf32> to vector<1x16x16xf32>
    %86 = vector.broadcast %85 : vector<1x16x16xf32> to vector<2x16x16xf32>
    %87 = arith.addf %84, %86 : vector<2x16x16xf32>
    %cst_32 = arith.constant dense<0xFF800000> : vector<2x16xf32>
    %88 = vector.multi_reduction <maximumf>, %87, %cst_32 [2] : vector<2x16x16xf32> to vector<2x16xf32>
    %89 = vector.shape_cast %88 : vector<2x16xf32> to vector<2x16x1xf32>
    %90 = vector.broadcast %89 : vector<2x16x1xf32> to vector<2x16x16xf32>
    %91 = arith.subf %87, %90 : vector<2x16x16xf32>
    %92 = math.exp %91 : vector<2x16x16xf32>
    %cst_33 = arith.constant dense<0.000000e+00> : vector<2x16xf32>
    %93 = vector.multi_reduction <add>, %92, %cst_33 [2] : vector<2x16x16xf32> to vector<2x16xf32>
    %94 = vector.shape_cast %93 : vector<2x16xf32> to vector<2x16x1xf32>
    %95 = tpu.reciprocal %94 {approx = true} : vector<2x16x1xf32> -> vector<2x16x1xf32>
    %96 = vector.broadcast %95 : vector<2x16x1xf32> to vector<2x16x16xf32>
    %97 = arith.mulf %92, %96 : vector<2x16x16xf32>
    "tpu.trace_start"() <{level = 10 : i32, message = "bqk,bkd->bqd"}> : () -> ()
    %cst_34 = arith.constant dense<0.000000e+00> : vector<2x16x8xf32>
    %98 = tpu.matmul %97, %81, %cst_34 {dimension_numbers = #tpu.dot_dimension_numbers<[2], [1], [1], [2], [0, 0, 0, 1, 1, 2], [0], [0]>} : vector<2x16x16xf32>, vector<2x16x8xf32>, vector<2x16x8xf32> -> vector<2x16x8xf32>
    "tpu.trace_stop"() : () -> ()
    %99 = vector.shape_cast %98 : vector<2x16x8xf32> to vector<32x8xf32>
    %100 = vector.extract_strided_slice %52 {offsets = [8, 0], sizes = [8, 32], strides = [1, 1]} : vector<32x32xf32> to vector<8x32xf32>
    %cst_35 = arith.constant dense<0.000000e+00> : vector<32x32xf32>
    %101 = tpu.matmul %99, %100, %cst_35 {dimension_numbers = #tpu.dot_dimension_numbers<[1], [0], [0], [1], [0, 0, 1, 1], [], []>} : vector<32x8xf32>, vector<8x32xf32>, vector<32x32xf32> -> vector<32x32xf32>
    %102 = arith.addf %78, %101 : vector<32x32xf32>
    %103 = vector.extract_strided_slice %49 {offsets = [0, 0, 16], sizes = [2, 16, 8], strides = [1, 1, 1]} : vector<2x16x96xf32> to vector<2x16x8xf32>
    %104 = vector.extract_strided_slice %49 {offsets = [0, 0, 48], sizes = [2, 16, 8], strides = [1, 1, 1]} : vector<2x16x96xf32> to vector<2x16x8xf32>
    %105 = vector.extract_strided_slice %49 {offsets = [0, 0, 80], sizes = [2, 16, 8], strides = [1, 1, 1]} : vector<2x16x96xf32> to vector<2x16x8xf32>
    "tpu.trace_start"() <{level = 10 : i32, message = "bqd,bkd->bqk"}> : () -> ()
    %cst_36 = arith.constant dense<0.000000e+00> : vector<2x16x16xf32>
    %106 = tpu.matmul %103, %104, %cst_36 {dimension_numbers = #tpu.dot_dimension_numbers<[2], [2], [1], [1], [0, 0, 0, 1, 1, 1], [0], [0]>} : vector<2x16x8xf32>, vector<2x16x8xf32>, vector<2x16x16xf32> -> vector<2x16x16xf32>
    "tpu.trace_stop"() : () -> ()
    %cst_37 = arith.constant 0.353553385 : f32
    %107 = vector.broadcast %cst_37 : f32 to vector<2x16x16xf32>
    %108 = arith.mulf %106, %107 : vector<2x16x16xf32>
    %109 = vector.shape_cast %15 : vector<16x16xf32> to vector<1x16x16xf32>
    %110 = vector.broadcast %109 : vector<1x16x16xf32> to vector<2x16x16xf32>
    %111 = arith.addf %108, %110 : vector<2x16x16xf32>
    %cst_38 = arith.constant dense<0xFF800000> : vector<2x16xf32>
    %112 = vector.multi_reduction <maximumf>, %111, %cst_38 [2] : vector<2x16x16xf32> to vector<2x16xf32>
    %113 = vector.shape_cast %112 : vector<2x16xf32> to vector<2x16x1xf32>
    %114 = vector.broadcast %113 : vector<2x16x1xf32> to vector<2x16x16xf32>
    %115 = arith.subf %111, %114 : vector<2x16x16xf32>
    %116 = math.exp %115 : vector<2x16x16xf32>
    %cst_39 = arith.constant dense<0.000000e+00> : vector<2x16xf32>
    %117 = vector.multi_reduction <add>, %116, %cst_39 [2] : vector<2x16x16xf32> to vector<2x16xf32>
    %118 = vector.shape_cast %117 : vector<2x16xf32> to vector<2x16x1xf32>
    %119 = tpu.reciprocal %118 {approx = true} : vector<2x16x1xf32> -> vector<2x16x1xf32>
    %120 = vector.broadcast %119 : vector<2x16x1xf32> to vector<2x16x16xf32>
    %121 = arith.mulf %116, %120 : vector<2x16x16xf32>
    "tpu.trace_start"() <{level = 10 : i32, message = "bqk,bkd->bqd"}> : () -> ()
    %cst_40 = arith.constant dense<0.000000e+00> : vector<2x16x8xf32>
    %122 = tpu.matmul %121, %105, %cst_40 {dimension_numbers = #tpu.dot_dimension_numbers<[2], [1], [1], [2], [0, 0, 0, 1, 1, 2], [0], [0]>} : vector<2x16x16xf32>, vector<2x16x8xf32>, vector<2x16x8xf32> -> vector<2x16x8xf32>
    "tpu.trace_stop"() : () -> ()
    %123 = vector.shape_cast %122 : vector<2x16x8xf32> to vector<32x8xf32>
    %124 = vector.extract_strided_slice %52 {offsets = [16, 0], sizes = [8, 32], strides = [1, 1]} : vector<32x32xf32> to vector<8x32xf32>
    %cst_41 = arith.constant dense<0.000000e+00> : vector<32x32xf32>
    %125 = tpu.matmul %123, %124, %cst_41 {dimension_numbers = #tpu.dot_dimension_numbers<[1], [0], [0], [1], [0, 0, 1, 1], [], []>} : vector<32x8xf32>, vector<8x32xf32>, vector<32x32xf32> -> vector<32x32xf32>
    %126 = arith.addf %102, %125 : vector<32x32xf32>
    %127 = vector.extract_strided_slice %49 {offsets = [0, 0, 24], sizes = [2, 16, 8], strides = [1, 1, 1]} : vector<2x16x96xf32> to vector<2x16x8xf32>
    %128 = vector.extract_strided_slice %49 {offsets = [0, 0, 56], sizes = [2, 16, 8], strides = [1, 1, 1]} : vector<2x16x96xf32> to vector<2x16x8xf32>
    %129 = vector.extract_strided_slice %49 {offsets = [0, 0, 88], sizes = [2, 16, 8], strides = [1, 1, 1]} : vector<2x16x96xf32> to vector<2x16x8xf32>
    "tpu.trace_start"() <{level = 10 : i32, message = "bqd,bkd->bqk"}> : () -> ()
    %cst_42 = arith.constant dense<0.000000e+00> : vector<2x16x16xf32>
    %130 = tpu.matmul %127, %128, %cst_42 {dimension_numbers = #tpu.dot_dimension_numbers<[2], [2], [1], [1], [0, 0, 0, 1, 1, 1], [0], [0]>} : vector<2x16x8xf32>, vector<2x16x8xf32>, vector<2x16x16xf32> -> vector<2x16x16xf32>
    "tpu.trace_stop"() : () -> ()
    %cst_43 = arith.constant 0.353553385 : f32
    %131 = vector.broadcast %cst_43 : f32 to vector<2x16x16xf32>
    %132 = arith.mulf %130, %131 : vector<2x16x16xf32>
    %133 = vector.shape_cast %15 : vector<16x16xf32> to vector<1x16x16xf32>
    %134 = vector.broadcast %133 : vector<1x16x16xf32> to vector<2x16x16xf32>
    %135 = arith.addf %132, %134 : vector<2x16x16xf32>
    %cst_44 = arith.constant dense<0xFF800000> : vector<2x16xf32>
    %136 = vector.multi_reduction <maximumf>, %135, %cst_44 [2] : vector<2x16x16xf32> to vector<2x16xf32>
    %137 = vector.shape_cast %136 : vector<2x16xf32> to vector<2x16x1xf32>
    %138 = vector.broadcast %137 : vector<2x16x1xf32> to vector<2x16x16xf32>
    %139 = arith.subf %135, %138 : vector<2x16x16xf32>
    %140 = math.exp %139 : vector<2x16x16xf32>
    %cst_45 = arith.constant dense<0.000000e+00> : vector<2x16xf32>
    %141 = vector.multi_reduction <add>, %140, %cst_45 [2] : vector<2x16x16xf32> to vector<2x16xf32>
    %142 = vector.shape_cast %141 : vector<2x16xf32> to vector<2x16x1xf32>
    %143 = tpu.reciprocal %142 {approx = true} : vector<2x16x1xf32> -> vector<2x16x1xf32>
    %144 = vector.broadcast %143 : vector<2x16x1xf32> to vector<2x16x16xf32>
    %145 = arith.mulf %140, %144 : vector<2x16x16xf32>
    "tpu.trace_start"() <{level = 10 : i32, message = "bqk,bkd->bqd"}> : () -> ()
    %cst_46 = arith.constant dense<0.000000e+00> : vector<2x16x8xf32>
    %146 = tpu.matmul %145, %129, %cst_46 {dimension_numbers = #tpu.dot_dimension_numbers<[2], [1], [1], [2], [0, 0, 0, 1, 1, 2], [0], [0]>} : vector<2x16x16xf32>, vector<2x16x8xf32>, vector<2x16x8xf32> -> vector<2x16x8xf32>
    "tpu.trace_stop"() : () -> ()
    %147 = vector.shape_cast %146 : vector<2x16x8xf32> to vector<32x8xf32>
    %148 = vector.extract_strided_slice %52 {offsets = [24, 0], sizes = [8, 32], strides = [1, 1]} : vector<32x32xf32> to vector<8x32xf32>
    %cst_47 = arith.constant dense<0.000000e+00> : vector<32x32xf32>
    %149 = tpu.matmul %147, %148, %cst_47 {dimension_numbers = #tpu.dot_dimension_numbers<[1], [0], [0], [1], [0, 0, 1, 1], [], []>} : vector<32x8xf32>, vector<8x32xf32>, vector<32x32xf32> -> vector<32x32xf32>
    %150 = arith.addf %126, %149 : vector<32x32xf32>
    %151 = arith.addf %14, %150 : vector<32x32xf32>
    %152 = vector.broadcast %53 : vector<1x32xf32> to vector<32x32xf32>
    %153 = arith.addf %151, %152 : vector<32x32xf32>
    %cst_48 = arith.constant dense<0.000000e+00> : vector<32xf32>
    %154 = vector.multi_reduction <add>, %153, %cst_48 [1] : vector<32x32xf32> to vector<32xf32>
    %155 = vector.shape_cast %154 : vector<32xf32> to vector<32x1xf32>
    %cst_49 = arith.constant 3.200000e+01 : f32
    %156 = vector.broadcast %cst_49 : f32 to vector<32x1xf32>
    %157 = arith.divf %155, %156 : vector<32x1xf32>
    %158 = vector.broadcast %157 : vector<32x1xf32> to vector<32x32xf32>
    %159 = arith.subf %153, %158 : vector<32x32xf32>
    %160 = arith.mulf %159, %159 : vector<32x32xf32>
    %cst_50 = arith.constant dense<0.000000e+00> : vector<32xf32>
    %161 = vector.multi_reduction <add>, %160, %cst_50 [1] : vector<32x32xf32> to vector<32xf32>
    %162 = vector.shape_cast %161 : vector<32xf32> to vector<32x1xf32>
    %cst_51 = arith.constant 3.200000e+01 : f32
    %163 = vector.broadcast %cst_51 : f32 to vector<32x1xf32>
    %164 = arith.divf %162, %163 : vector<32x1xf32>
    %cst_52 = arith.constant 9.99999974E-6 : f32
    %165 = vector.broadcast %cst_52 : f32 to vector<32x1xf32>
    %166 = arith.addf %164, %165 : vector<32x1xf32>
    %167 = math.rsqrt %166 : vector<32x1xf32>
    %168 = vector.broadcast %167 : vector<32x1xf32> to vector<32x32xf32>
    %169 = arith.mulf %159, %168 : vector<32x32xf32>
    %170 = vector.broadcast %20 : vector<1x32xf32> to vector<32x32xf32>
    %171 = arith.mulf %169, %170 : vector<32x32xf32>
    %172 = vector.broadcast %21 : vector<1x32xf32> to vector<32x32xf32>
    %173 = arith.addf %171, %172 : vector<32x32xf32>
    %c0_53 = arith.constant 0 : index
    %c0_54 = arith.constant 0 : index
    %c0_55 = arith.constant 0 : index
    %174 = vector.load %arg7[%c0_53, %c0_54, %c0_55] : memref<2x33x64xf32, #tpu.memory_space<vmem>>, vector<1x33x64xf32>
    %175 = vector.shape_cast %174 : vector<1x33x64xf32> to vector<33x64xf32>
    %c0_56 = arith.constant 0 : index
    %c0_57 = arith.constant 0 : index
    %c0_58 = arith.constant 0 : index
    %176 = vector.load %arg8[%c0_56, %c0_57, %c0_58] : memref<2x65x32xf32, #tpu.memory_space<vmem>>, vector<1x65x32xf32>
    %177 = vector.shape_cast %176 : vector<1x65x32xf32> to vector<65x32xf32>
    %178 = vector.extract_strided_slice %175 {offsets = [0, 0], sizes = [32, 64], strides = [1, 1]} : vector<33x64xf32> to vector<32x64xf32>
    %cst_59 = arith.constant dense<0.000000e+00> : vector<32x64xf32>
    %179 = tpu.matmul %173, %178, %cst_59 {dimension_numbers = #tpu.dot_dimension_numbers<[1], [0], [0], [1], [0, 0, 1, 1], [], []>} : vector<32x32xf32>, vector<32x64xf32>, vector<32x64xf32> -> vector<32x64xf32>
    %180 = vector.extract_strided_slice %175 {offsets = [32, 0], sizes = [1, 64], strides = [1, 1]} : vector<33x64xf32> to vector<1x64xf32>
    %181 = vector.broadcast %180 : vector<1x64xf32> to vector<32x64xf32>
    %182 = arith.addf %179, %181 : vector<32x64xf32>
    %cst_60 = arith.constant 0.000000e+00 : f32
    %183 = vector.broadcast %cst_60 : f32 to vector<32x64xf32>
    %184 = arith.maximumf %182, %183 : vector<32x64xf32>
    %185 = vector.extract_strided_slice %177 {offsets = [0, 0], sizes = [64, 32], strides = [1, 1]} : vector<65x32xf32> to vector<64x32xf32>
    %cst_61 = arith.constant dense<0.000000e+00> : vector<32x32xf32>
    %186 = tpu.matmul %184, %185, %cst_61 {dimension_numbers = #tpu.dot_dimension_numbers<[1], [0], [0], [1], [0, 0, 1, 1], [], []>} : vector<32x64xf32>, vector<64x32xf32>, vector<32x32xf32> -> vector<32x32xf32>
    %187 = arith.addf %153, %186 : vector<32x32xf32>
    %188 = vector.extract_strided_slice %177 {offsets = [64, 0], sizes = [1, 32], strides = [1, 1]} : vector<65x32xf32> to vector<1x32xf32>
    %189 = vector.broadcast %188 : vector<1x32xf32> to vector<32x32xf32>
    %190 = arith.addf %187, %189 : vector<32x32xf32>
    %c1 = arith.constant 1 : index
    %c0_62 = arith.constant 0 : index
    %c0_63 = arith.constant 0 : index
    %191 = vector.load %arg6[%c1, %c0_62, %c0_63] : memref<2x4x32xf32, #tpu.memory_space<vmem>>, vector<1x4x32xf32>
    %192 = vector.shape_cast %191 : vector<1x4x32xf32> to vector<4x32xf32>
    %193 = vector.extract_strided_slice %192 {offsets = [0, 0], sizes = [1, 32], strides = [1, 1]} : vector<4x32xf32> to vector<1x32xf32>
    %194 = vector.extract_strided_slice %192 {offsets = [1, 0], sizes = [1, 32], strides = [1, 1]} : vector<4x32xf32> to vector<1x32xf32>
    %195 = vector.extract_strided_slice %192 {offsets = [2, 0], sizes = [1, 32], strides = [1, 1]} : vector<4x32xf32> to vector<1x32xf32>
    %196 = vector.extract_strided_slice %192 {offsets = [3, 0], sizes = [1, 32], strides = [1, 1]} : vector<4x32xf32> to vector<1x32xf32>
    %cst_64 = arith.constant dense<0.000000e+00> : vector<32xf32>
    %197 = vector.multi_reduction <add>, %190, %cst_64 [1] : vector<32x32xf32> to vector<32xf32>
    %198 = vector.shape_cast %197 : vector<32xf32> to vector<32x1xf32>
    %cst_65 = arith.constant 3.200000e+01 : f32
    %199 = vector.broadcast %cst_65 : f32 to vector<32x1xf32>
    %200 = arith.divf %198, %199 : vector<32x1xf32>
    %201 = vector.broadcast %200 : vector<32x1xf32> to vector<32x32xf32>
    %202 = arith.subf %190, %201 : vector<32x32xf32>
    %203 = arith.mulf %202, %202 : vector<32x32xf32>
    %cst_66 = arith.constant dense<0.000000e+00> : vector<32xf32>
    %204 = vector.multi_reduction <add>, %203, %cst_66 [1] : vector<32x32xf32> to vector<32xf32>
    %205 = vector.shape_cast %204 : vector<32xf32> to vector<32x1xf32>
    %cst_67 = arith.constant 3.200000e+01 : f32
    %206 = vector.broadcast %cst_67 : f32 to vector<32x1xf32>
    %207 = arith.divf %205, %206 : vector<32x1xf32>
    %cst_68 = arith.constant 9.99999974E-6 : f32
    %208 = vector.broadcast %cst_68 : f32 to vector<32x1xf32>
    %209 = arith.addf %207, %208 : vector<32x1xf32>
    %210 = math.rsqrt %209 : vector<32x1xf32>
    %211 = vector.broadcast %210 : vector<32x1xf32> to vector<32x32xf32>
    %212 = arith.mulf %202, %211 : vector<32x32xf32>
    %213 = vector.broadcast %193 : vector<1x32xf32> to vector<32x32xf32>
    %214 = arith.mulf %212, %213 : vector<32x32xf32>
    %215 = vector.broadcast %194 : vector<1x32xf32> to vector<32x32xf32>
    %216 = arith.addf %214, %215 : vector<32x32xf32>
    %c1_69 = arith.constant 1 : index
    %c0_70 = arith.constant 0 : index
    %c0_71 = arith.constant 0 : index
    %217 = vector.load %arg4[%c1_69, %c0_70, %c0_71] : memref<2x33x96xf32, #tpu.memory_space<vmem>>, vector<1x33x96xf32>
    %218 = vector.shape_cast %217 : vector<1x33x96xf32> to vector<33x96xf32>
    %219 = vector.extract_strided_slice %218 {offsets = [0, 0], sizes = [32, 96], strides = [1, 1]} : vector<33x96xf32> to vector<32x96xf32>
    %cst_72 = arith.constant dense<0.000000e+00> : vector<32x96xf32>
    %220 = tpu.matmul %216, %219, %cst_72 {dimension_numbers = #tpu.dot_dimension_numbers<[1], [0], [0], [1], [0, 0, 1, 1], [], []>} : vector<32x32xf32>, vector<32x96xf32>, vector<32x96xf32> -> vector<32x96xf32>
    %221 = vector.extract_strided_slice %218 {offsets = [32, 0], sizes = [1, 96], strides = [1, 1]} : vector<33x96xf32> to vector<1x96xf32>
    %222 = vector.broadcast %221 : vector<1x96xf32> to vector<32x96xf32>
    %223 = arith.addf %220, %222 : vector<32x96xf32>
    %224 = vector.shape_cast %223 : vector<32x96xf32> to vector<2x16x96xf32>
    %c1_73 = arith.constant 1 : index
    %c0_74 = arith.constant 0 : index
    %c0_75 = arith.constant 0 : index
    %225 = vector.load %arg5[%c1_73, %c0_74, %c0_75] : memref<2x33x32xf32, #tpu.memory_space<vmem>>, vector<1x33x32xf32>
    %226 = vector.shape_cast %225 : vector<1x33x32xf32> to vector<33x32xf32>
    %227 = vector.extract_strided_slice %226 {offsets = [0, 0], sizes = [32, 32], strides = [1, 1]} : vector<33x32xf32> to vector<32x32xf32>
    %228 = vector.extract_strided_slice %226 {offsets = [32, 0], sizes = [1, 32], strides = [1, 1]} : vector<33x32xf32> to vector<1x32xf32>
    %cst_76 = arith.constant 0.000000e+00 : f32
    %229 = vector.broadcast %cst_76 : f32 to vector<32x32xf32>
    %230 = vector.extract_strided_slice %224 {offsets = [0, 0, 0], sizes = [2, 16, 8], strides = [1, 1, 1]} : vector<2x16x96xf32> to vector<2x16x8xf32>
    %231 = vector.extract_strided_slice %224 {offsets = [0, 0, 32], sizes = [2, 16, 8], strides = [1, 1, 1]} : vector<2x16x96xf32> to vector<2x16x8xf32>
    %232 = vector.extract_strided_slice %224 {offsets = [0, 0, 64], sizes = [2, 16, 8], strides = [1, 1, 1]} : vector<2x16x96xf32> to vector<2x16x8xf32>
    "tpu.trace_start"() <{level = 10 : i32, message = "bqd,bkd->bqk"}> : () -> ()
    %cst_77 = arith.constant dense<0.000000e+00> : vector<2x16x16xf32>
    %233 = tpu.matmul %230, %231, %cst_77 {dimension_numbers = #tpu.dot_dimension_numbers<[2], [2], [1], [1], [0, 0, 0, 1, 1, 1], [0], [0]>} : vector<2x16x8xf32>, vector<2x16x8xf32>, vector<2x16x16xf32> -> vector<2x16x16xf32>
    "tpu.trace_stop"() : () -> ()
    %cst_78 = arith.constant 0.353553385 : f32
    %234 = vector.broadcast %cst_78 : f32 to vector<2x16x16xf32>
    %235 = arith.mulf %233, %234 : vector<2x16x16xf32>
    %236 = vector.shape_cast %15 : vector<16x16xf32> to vector<1x16x16xf32>
    %237 = vector.broadcast %236 : vector<1x16x16xf32> to vector<2x16x16xf32>
    %238 = arith.addf %235, %237 : vector<2x16x16xf32>
    %cst_79 = arith.constant dense<0xFF800000> : vector<2x16xf32>
    %239 = vector.multi_reduction <maximumf>, %238, %cst_79 [2] : vector<2x16x16xf32> to vector<2x16xf32>
    %240 = vector.shape_cast %239 : vector<2x16xf32> to vector<2x16x1xf32>
    %241 = vector.broadcast %240 : vector<2x16x1xf32> to vector<2x16x16xf32>
    %242 = arith.subf %238, %241 : vector<2x16x16xf32>
    %243 = math.exp %242 : vector<2x16x16xf32>
    %cst_80 = arith.constant dense<0.000000e+00> : vector<2x16xf32>
    %244 = vector.multi_reduction <add>, %243, %cst_80 [2] : vector<2x16x16xf32> to vector<2x16xf32>
    %245 = vector.shape_cast %244 : vector<2x16xf32> to vector<2x16x1xf32>
    %246 = tpu.reciprocal %245 {approx = true} : vector<2x16x1xf32> -> vector<2x16x1xf32>
    %247 = vector.broadcast %246 : vector<2x16x1xf32> to vector<2x16x16xf32>
    %248 = arith.mulf %243, %247 : vector<2x16x16xf32>
    "tpu.trace_start"() <{level = 10 : i32, message = "bqk,bkd->bqd"}> : () -> ()
    %cst_81 = arith.constant dense<0.000000e+00> : vector<2x16x8xf32>
    %249 = tpu.matmul %248, %232, %cst_81 {dimension_numbers = #tpu.dot_dimension_numbers<[2], [1], [1], [2], [0, 0, 0, 1, 1, 2], [0], [0]>} : vector<2x16x16xf32>, vector<2x16x8xf32>, vector<2x16x8xf32> -> vector<2x16x8xf32>
    "tpu.trace_stop"() : () -> ()
    %250 = vector.shape_cast %249 : vector<2x16x8xf32> to vector<32x8xf32>
    %251 = vector.extract_strided_slice %227 {offsets = [0, 0], sizes = [8, 32], strides = [1, 1]} : vector<32x32xf32> to vector<8x32xf32>
    %cst_82 = arith.constant dense<0.000000e+00> : vector<32x32xf32>
    %252 = tpu.matmul %250, %251, %cst_82 {dimension_numbers = #tpu.dot_dimension_numbers<[1], [0], [0], [1], [0, 0, 1, 1], [], []>} : vector<32x8xf32>, vector<8x32xf32>, vector<32x32xf32> -> vector<32x32xf32>
    %253 = arith.addf %229, %252 : vector<32x32xf32>
    %254 = vector.extract_strided_slice %224 {offsets = [0, 0, 8], sizes = [2, 16, 8], strides = [1, 1, 1]} : vector<2x16x96xf32> to vector<2x16x8xf32>
    %255 = vector.extract_strided_slice %224 {offsets = [0, 0, 40], sizes = [2, 16, 8], strides = [1, 1, 1]} : vector<2x16x96xf32> to vector<2x16x8xf32>
    %256 = vector.extract_strided_slice %224 {offsets = [0, 0, 72], sizes = [2, 16, 8], strides = [1, 1, 1]} : vector<2x16x96xf32> to vector<2x16x8xf32>
    "tpu.trace_start"() <{level = 10 : i32, message = "bqd,bkd->bqk"}> : () -> ()
    %cst_83 = arith.constant dense<0.000000e+00> : vector<2x16x16xf32>
    %257 = tpu.matmul %254, %255, %cst_83 {dimension_numbers = #tpu.dot_dimension_numbers<[2], [2], [1], [1], [0, 0, 0, 1, 1, 1], [0], [0]>} : vector<2x16x8xf32>, vector<2x16x8xf32>, vector<2x16x16xf32> -> vector<2x16x16xf32>
    "tpu.trace_stop"() : () -> ()
    %cst_84 = arith.constant 0.353553385 : f32
    %258 = vector.broadcast %cst_84 : f32 to vector<2x16x16xf32>
    %259 = arith.mulf %257, %258 : vector<2x16x16xf32>
    %260 = vector.shape_cast %15 : vector<16x16xf32> to vector<1x16x16xf32>
    %261 = vector.broadcast %260 : vector<1x16x16xf32> to vector<2x16x16xf32>
    %262 = arith.addf %259, %261 : vector<2x16x16xf32>
    %cst_85 = arith.constant dense<0xFF800000> : vector<2x16xf32>
    %263 = vector.multi_reduction <maximumf>, %262, %cst_85 [2] : vector<2x16x16xf32> to vector<2x16xf32>
    %264 = vector.shape_cast %263 : vector<2x16xf32> to vector<2x16x1xf32>
    %265 = vector.broadcast %264 : vector<2x16x1xf32> to vector<2x16x16xf32>
    %266 = arith.subf %262, %265 : vector<2x16x16xf32>
    %267 = math.exp %266 : vector<2x16x16xf32>
    %cst_86 = arith.constant dense<0.000000e+00> : vector<2x16xf32>
    %268 = vector.multi_reduction <add>, %267, %cst_86 [2] : vector<2x16x16xf32> to vector<2x16xf32>
    %269 = vector.shape_cast %268 : vector<2x16xf32> to vector<2x16x1xf32>
    %270 = tpu.reciprocal %269 {approx = true} : vector<2x16x1xf32> -> vector<2x16x1xf32>
    %271 = vector.broadcast %270 : vector<2x16x1xf32> to vector<2x16x16xf32>
    %272 = arith.mulf %267, %271 : vector<2x16x16xf32>
    "tpu.trace_start"() <{level = 10 : i32, message = "bqk,bkd->bqd"}> : () -> ()
    %cst_87 = arith.constant dense<0.000000e+00> : vector<2x16x8xf32>
    %273 = tpu.matmul %272, %256, %cst_87 {dimension_numbers = #tpu.dot_dimension_numbers<[2], [1], [1], [2], [0, 0, 0, 1, 1, 2], [0], [0]>} : vector<2x16x16xf32>, vector<2x16x8xf32>, vector<2x16x8xf32> -> vector<2x16x8xf32>
    "tpu.trace_stop"() : () -> ()
    %274 = vector.shape_cast %273 : vector<2x16x8xf32> to vector<32x8xf32>
    %275 = vector.extract_strided_slice %227 {offsets = [8, 0], sizes = [8, 32], strides = [1, 1]} : vector<32x32xf32> to vector<8x32xf32>
    %cst_88 = arith.constant dense<0.000000e+00> : vector<32x32xf32>
    %276 = tpu.matmul %274, %275, %cst_88 {dimension_numbers = #tpu.dot_dimension_numbers<[1], [0], [0], [1], [0, 0, 1, 1], [], []>} : vector<32x8xf32>, vector<8x32xf32>, vector<32x32xf32> -> vector<32x32xf32>
    %277 = arith.addf %253, %276 : vector<32x32xf32>
    %278 = vector.extract_strided_slice %224 {offsets = [0, 0, 16], sizes = [2, 16, 8], strides = [1, 1, 1]} : vector<2x16x96xf32> to vector<2x16x8xf32>
    %279 = vector.extract_strided_slice %224 {offsets = [0, 0, 48], sizes = [2, 16, 8], strides = [1, 1, 1]} : vector<2x16x96xf32> to vector<2x16x8xf32>
    %280 = vector.extract_strided_slice %224 {offsets = [0, 0, 80], sizes = [2, 16, 8], strides = [1, 1, 1]} : vector<2x16x96xf32> to vector<2x16x8xf32>
    "tpu.trace_start"() <{level = 10 : i32, message = "bqd,bkd->bqk"}> : () -> ()
    %cst_89 = arith.constant dense<0.000000e+00> : vector<2x16x16xf32>
    %281 = tpu.matmul %278, %279, %cst_89 {dimension_numbers = #tpu.dot_dimension_numbers<[2], [2], [1], [1], [0, 0, 0, 1, 1, 1], [0], [0]>} : vector<2x16x8xf32>, vector<2x16x8xf32>, vector<2x16x16xf32> -> vector<2x16x16xf32>
    "tpu.trace_stop"() : () -> ()
    %cst_90 = arith.constant 0.353553385 : f32
    %282 = vector.broadcast %cst_90 : f32 to vector<2x16x16xf32>
    %283 = arith.mulf %281, %282 : vector<2x16x16xf32>
    %284 = vector.shape_cast %15 : vector<16x16xf32> to vector<1x16x16xf32>
    %285 = vector.broadcast %284 : vector<1x16x16xf32> to vector<2x16x16xf32>
    %286 = arith.addf %283, %285 : vector<2x16x16xf32>
    %cst_91 = arith.constant dense<0xFF800000> : vector<2x16xf32>
    %287 = vector.multi_reduction <maximumf>, %286, %cst_91 [2] : vector<2x16x16xf32> to vector<2x16xf32>
    %288 = vector.shape_cast %287 : vector<2x16xf32> to vector<2x16x1xf32>
    %289 = vector.broadcast %288 : vector<2x16x1xf32> to vector<2x16x16xf32>
    %290 = arith.subf %286, %289 : vector<2x16x16xf32>
    %291 = math.exp %290 : vector<2x16x16xf32>
    %cst_92 = arith.constant dense<0.000000e+00> : vector<2x16xf32>
    %292 = vector.multi_reduction <add>, %291, %cst_92 [2] : vector<2x16x16xf32> to vector<2x16xf32>
    %293 = vector.shape_cast %292 : vector<2x16xf32> to vector<2x16x1xf32>
    %294 = tpu.reciprocal %293 {approx = true} : vector<2x16x1xf32> -> vector<2x16x1xf32>
    %295 = vector.broadcast %294 : vector<2x16x1xf32> to vector<2x16x16xf32>
    %296 = arith.mulf %291, %295 : vector<2x16x16xf32>
    "tpu.trace_start"() <{level = 10 : i32, message = "bqk,bkd->bqd"}> : () -> ()
    %cst_93 = arith.constant dense<0.000000e+00> : vector<2x16x8xf32>
    %297 = tpu.matmul %296, %280, %cst_93 {dimension_numbers = #tpu.dot_dimension_numbers<[2], [1], [1], [2], [0, 0, 0, 1, 1, 2], [0], [0]>} : vector<2x16x16xf32>, vector<2x16x8xf32>, vector<2x16x8xf32> -> vector<2x16x8xf32>
    "tpu.trace_stop"() : () -> ()
    %298 = vector.shape_cast %297 : vector<2x16x8xf32> to vector<32x8xf32>
    %299 = vector.extract_strided_slice %227 {offsets = [16, 0], sizes = [8, 32], strides = [1, 1]} : vector<32x32xf32> to vector<8x32xf32>
    %cst_94 = arith.constant dense<0.000000e+00> : vector<32x32xf32>
    %300 = tpu.matmul %298, %299, %cst_94 {dimension_numbers = #tpu.dot_dimension_numbers<[1], [0], [0], [1], [0, 0, 1, 1], [], []>} : vector<32x8xf32>, vector<8x32xf32>, vector<32x32xf32> -> vector<32x32xf32>
    %301 = arith.addf %277, %300 : vector<32x32xf32>
    %302 = vector.extract_strided_slice %224 {offsets = [0, 0, 24], sizes = [2, 16, 8], strides = [1, 1, 1]} : vector<2x16x96xf32> to vector<2x16x8xf32>
    %303 = vector.extract_strided_slice %224 {offsets = [0, 0, 56], sizes = [2, 16, 8], strides = [1, 1, 1]} : vector<2x16x96xf32> to vector<2x16x8xf32>
    %304 = vector.extract_strided_slice %224 {offsets = [0, 0, 88], sizes = [2, 16, 8], strides = [1, 1, 1]} : vector<2x16x96xf32> to vector<2x16x8xf32>
    "tpu.trace_start"() <{level = 10 : i32, message = "bqd,bkd->bqk"}> : () -> ()
    %cst_95 = arith.constant dense<0.000000e+00> : vector<2x16x16xf32>
    %305 = tpu.matmul %302, %303, %cst_95 {dimension_numbers = #tpu.dot_dimension_numbers<[2], [2], [1], [1], [0, 0, 0, 1, 1, 1], [0], [0]>} : vector<2x16x8xf32>, vector<2x16x8xf32>, vector<2x16x16xf32> -> vector<2x16x16xf32>
    "tpu.trace_stop"() : () -> ()
    %cst_96 = arith.constant 0.353553385 : f32
    %306 = vector.broadcast %cst_96 : f32 to vector<2x16x16xf32>
    %307 = arith.mulf %305, %306 : vector<2x16x16xf32>
    %308 = vector.shape_cast %15 : vector<16x16xf32> to vector<1x16x16xf32>
    %309 = vector.broadcast %308 : vector<1x16x16xf32> to vector<2x16x16xf32>
    %310 = arith.addf %307, %309 : vector<2x16x16xf32>
    %cst_97 = arith.constant dense<0xFF800000> : vector<2x16xf32>
    %311 = vector.multi_reduction <maximumf>, %310, %cst_97 [2] : vector<2x16x16xf32> to vector<2x16xf32>
    %312 = vector.shape_cast %311 : vector<2x16xf32> to vector<2x16x1xf32>
    %313 = vector.broadcast %312 : vector<2x16x1xf32> to vector<2x16x16xf32>
    %314 = arith.subf %310, %313 : vector<2x16x16xf32>
    %315 = math.exp %314 : vector<2x16x16xf32>
    %cst_98 = arith.constant dense<0.000000e+00> : vector<2x16xf32>
    %316 = vector.multi_reduction <add>, %315, %cst_98 [2] : vector<2x16x16xf32> to vector<2x16xf32>
    %317 = vector.shape_cast %316 : vector<2x16xf32> to vector<2x16x1xf32>
    %318 = tpu.reciprocal %317 {approx = true} : vector<2x16x1xf32> -> vector<2x16x1xf32>
    %319 = vector.broadcast %318 : vector<2x16x1xf32> to vector<2x16x16xf32>
    %320 = arith.mulf %315, %319 : vector<2x16x16xf32>
    "tpu.trace_start"() <{level = 10 : i32, message = "bqk,bkd->bqd"}> : () -> ()
    %cst_99 = arith.constant dense<0.000000e+00> : vector<2x16x8xf32>
    %321 = tpu.matmul %320, %304, %cst_99 {dimension_numbers = #tpu.dot_dimension_numbers<[2], [1], [1], [2], [0, 0, 0, 1, 1, 2], [0], [0]>} : vector<2x16x16xf32>, vector<2x16x8xf32>, vector<2x16x8xf32> -> vector<2x16x8xf32>
    "tpu.trace_stop"() : () -> ()
    %322 = vector.shape_cast %321 : vector<2x16x8xf32> to vector<32x8xf32>
    %323 = vector.extract_strided_slice %227 {offsets = [24, 0], sizes = [8, 32], strides = [1, 1]} : vector<32x32xf32> to vector<8x32xf32>
    %cst_100 = arith.constant dense<0.000000e+00> : vector<32x32xf32>
    %324 = tpu.matmul %322, %323, %cst_100 {dimension_numbers = #tpu.dot_dimension_numbers<[1], [0], [0], [1], [0, 0, 1, 1], [], []>} : vector<32x8xf32>, vector<8x32xf32>, vector<32x32xf32> -> vector<32x32xf32>
    %325 = arith.addf %301, %324 : vector<32x32xf32>
    %326 = arith.addf %190, %325 : vector<32x32xf32>
    %327 = vector.broadcast %228 : vector<1x32xf32> to vector<32x32xf32>
    %328 = arith.addf %326, %327 : vector<32x32xf32>
    %cst_101 = arith.constant dense<0.000000e+00> : vector<32xf32>
    %329 = vector.multi_reduction <add>, %328, %cst_101 [1] : vector<32x32xf32> to vector<32xf32>
    %330 = vector.shape_cast %329 : vector<32xf32> to vector<32x1xf32>
    %cst_102 = arith.constant 3.200000e+01 : f32
    %331 = vector.broadcast %cst_102 : f32 to vector<32x1xf32>
    %332 = arith.divf %330, %331 : vector<32x1xf32>
    %333 = vector.broadcast %332 : vector<32x1xf32> to vector<32x32xf32>
    %334 = arith.subf %328, %333 : vector<32x32xf32>
    %335 = arith.mulf %334, %334 : vector<32x32xf32>
    %cst_103 = arith.constant dense<0.000000e+00> : vector<32xf32>
    %336 = vector.multi_reduction <add>, %335, %cst_103 [1] : vector<32x32xf32> to vector<32xf32>
    %337 = vector.shape_cast %336 : vector<32xf32> to vector<32x1xf32>
    %cst_104 = arith.constant 3.200000e+01 : f32
    %338 = vector.broadcast %cst_104 : f32 to vector<32x1xf32>
    %339 = arith.divf %337, %338 : vector<32x1xf32>
    %cst_105 = arith.constant 9.99999974E-6 : f32
    %340 = vector.broadcast %cst_105 : f32 to vector<32x1xf32>
    %341 = arith.addf %339, %340 : vector<32x1xf32>
    %342 = math.rsqrt %341 : vector<32x1xf32>
    %343 = vector.broadcast %342 : vector<32x1xf32> to vector<32x32xf32>
    %344 = arith.mulf %334, %343 : vector<32x32xf32>
    %345 = vector.broadcast %195 : vector<1x32xf32> to vector<32x32xf32>
    %346 = arith.mulf %344, %345 : vector<32x32xf32>
    %347 = vector.broadcast %196 : vector<1x32xf32> to vector<32x32xf32>
    %348 = arith.addf %346, %347 : vector<32x32xf32>
    %c1_106 = arith.constant 1 : index
    %c0_107 = arith.constant 0 : index
    %c0_108 = arith.constant 0 : index
    %349 = vector.load %arg7[%c1_106, %c0_107, %c0_108] : memref<2x33x64xf32, #tpu.memory_space<vmem>>, vector<1x33x64xf32>
    %350 = vector.shape_cast %349 : vector<1x33x64xf32> to vector<33x64xf32>
    %c1_109 = arith.constant 1 : index
    %c0_110 = arith.constant 0 : index
    %c0_111 = arith.constant 0 : index
    %351 = vector.load %arg8[%c1_109, %c0_110, %c0_111] : memref<2x65x32xf32, #tpu.memory_space<vmem>>, vector<1x65x32xf32>
    %352 = vector.shape_cast %351 : vector<1x65x32xf32> to vector<65x32xf32>
    %353 = vector.extract_strided_slice %350 {offsets = [0, 0], sizes = [32, 64], strides = [1, 1]} : vector<33x64xf32> to vector<32x64xf32>
    %cst_112 = arith.constant dense<0.000000e+00> : vector<32x64xf32>
    %354 = tpu.matmul %348, %353, %cst_112 {dimension_numbers = #tpu.dot_dimension_numbers<[1], [0], [0], [1], [0, 0, 1, 1], [], []>} : vector<32x32xf32>, vector<32x64xf32>, vector<32x64xf32> -> vector<32x64xf32>
    %355 = vector.extract_strided_slice %350 {offsets = [32, 0], sizes = [1, 64], strides = [1, 1]} : vector<33x64xf32> to vector<1x64xf32>
    %356 = vector.broadcast %355 : vector<1x64xf32> to vector<32x64xf32>
    %357 = arith.addf %354, %356 : vector<32x64xf32>
    %cst_113 = arith.constant 0.000000e+00 : f32
    %358 = vector.broadcast %cst_113 : f32 to vector<32x64xf32>
    %359 = arith.maximumf %357, %358 : vector<32x64xf32>
    %360 = vector.extract_strided_slice %352 {offsets = [0, 0], sizes = [64, 32], strides = [1, 1]} : vector<65x32xf32> to vector<64x32xf32>
    %cst_114 = arith.constant dense<0.000000e+00> : vector<32x32xf32>
    %361 = tpu.matmul %359, %360, %cst_114 {dimension_numbers = #tpu.dot_dimension_numbers<[1], [0], [0], [1], [0, 0, 1, 1], [], []>} : vector<32x64xf32>, vector<64x32xf32>, vector<32x32xf32> -> vector<32x32xf32>
    %362 = arith.addf %328, %361 : vector<32x32xf32>
    %363 = vector.extract_strided_slice %352 {offsets = [64, 0], sizes = [1, 32], strides = [1, 1]} : vector<65x32xf32> to vector<1x32xf32>
    %364 = vector.broadcast %363 : vector<1x32xf32> to vector<32x32xf32>
    %365 = arith.addf %362, %364 : vector<32x32xf32>
    %366 = vector.shape_cast %365 : vector<32x32xf32> to vector<2x16x32xf32>
    %367 = vector.extract_strided_slice %366 {offsets = [0, 8, 0], sizes = [2, 8, 32], strides = [1, 1, 1]} : vector<2x16x32xf32> to vector<2x8x32xf32>
    %c0_115 = arith.constant 0 : index
    %c0_116 = arith.constant 0 : index
    %c0_117 = arith.constant 0 : index
    %368 = vector.load %arg9[%c0_115, %c0_116, %c0_117] : memref<2x8x32xf32, #tpu.memory_space<vmem>>, vector<2x8x32xf32>
    tpu.vector_store %arg9[%c0_115, %c0_116, %c0_117], %367 {strides = array<i32>} : memref<2x8x32xf32, #tpu.memory_space<vmem>>, vector<2x8x32xf32>,
    return
  }
  func.func @transform_0(%arg0: i32) -> (i32, i32, i32) {
    %c0_i32 = arith.constant 0 : i32
    %c0_i32_0 = arith.constant 0 : i32
    %c0_i32_1 = arith.constant 0 : i32
    return %arg0, %c0_i32, %c0_i32_0 : i32, i32, i32
  }
  func.func @transform_1(%arg0: i32) -> (i32, i32) {
    %c0_i32 = arith.constant 0 : i32
    %c0_i32_0 = arith.constant 0 : i32
    %c0_i32_1 = arith.constant 0 : i32
    return %c0_i32, %c0_i32_0 : i32, i32
  }
  func.func @transform_2(%arg0: i32) -> (i32, i32) {
    %c0_i32 = arith.constant 0 : i32
    %c0_i32_0 = arith.constant 0 : i32
    %c0_i32_1 = arith.constant 0 : i32
    return %c0_i32, %c0_i32_0 : i32, i32
  }
  func.func @transform_3(%arg0: i32) -> (i32, i32, i32) {
    %c0_i32 = arith.constant 0 : i32
    %c0_i32_0 = arith.constant 0 : i32
    %c0_i32_1 = arith.constant 0 : i32
    %c0_i32_2 = arith.constant 0 : i32
    return %c0_i32, %c0_i32_0, %c0_i32_1 : i32, i32, i32
  }
  func.func @transform_4(%arg0: i32) -> (i32, i32, i32) {
    %c0_i32 = arith.constant 0 : i32
    %c0_i32_0 = arith.constant 0 : i32
    %c0_i32_1 = arith.constant 0 : i32
    %c0_i32_2 = arith.constant 0 : i32
    return %c0_i32, %c0_i32_0, %c0_i32_1 : i32, i32, i32
  }
  func.func @transform_5(%arg0: i32) -> (i32, i32, i32) {
    %c0_i32 = arith.constant 0 : i32
    %c0_i32_0 = arith.constant 0 : i32
    %c0_i32_1 = arith.constant 0 : i32
    %c0_i32_2 = arith.constant 0 : i32
    return %c0_i32, %c0_i32_0, %c0_i32_1 : i32, i32, i32
  }
  func.func @transform_6(%arg0: i32) -> (i32, i32, i32) {
    %c0_i32 = arith.constant 0 : i32
    %c0_i32_0 = arith.constant 0 : i32
    %c0_i32_1 = arith.constant 0 : i32
    %c0_i32_2 = arith.constant 0 : i32
    return %c0_i32, %c0_i32_0, %c0_i32_1 : i32, i32, i32
  }
  func.func @transform_7(%arg0: i32) -> (i32, i32, i32) {
    %c0_i32 = arith.constant 0 : i32
    %c0_i32_0 = arith.constant 0 : i32
    %c0_i32_1 = arith.constant 0 : i32
    %c0_i32_2 = arith.constant 0 : i32
    return %c0_i32, %c0_i32_0, %c0_i32_1 : i32, i32, i32
  }
  func.func @transform_8(%arg0: i32) -> (i32, i32, i32) {
    %c0_i32 = arith.constant 0 : i32
    %c0_i32_0 = arith.constant 0 : i32
    %c0_i32_1 = arith.constant 0 : i32
    return %arg0, %c0_i32, %c0_i32_0 : i32, i32, i32
  }
}

</mosaic_0001>

<llo_original>
// kernel: tpu_custom_call.1
$region0: #{tpu_custom_call.1}
  #allocation0 [shape = 'u32[]', space=smem, size = 0x4, offset = 0x4, fixed_abs, tag = 'smem constant byte address 0x4 - core index']
  #allocation1 [shape = 'u32[144,128]{1,0:T(1,128)}', space=vmem, size = 0x12000, scoped, tag = 'internal scratch']
  %s0 = inlined_call_operand.vmem [shape: f32[4,16,4], index: 0, kind: input, shape index: {}]
  %s1 = inlined_call_operand.vmem [shape: f32[16,16], index: 1, kind: input, shape index: {}]
  %s2 = inlined_call_operand.vmem [shape: f32[38,32], index: 2, kind: input, shape index: {}]
  %s3 = inlined_call_operand.vmem [shape: f32[2,33,96], index: 3, kind: input, shape index: {}]
  %s4 = inlined_call_operand.vmem [shape: f32[2,33,32], index: 4, kind: input, shape index: {}]
  %s5 = inlined_call_operand.vmem [shape: f32[2,4,32], index: 5, kind: input, shape index: {}]
  %s6 = inlined_call_operand.vmem [shape: f32[2,33,64], index: 6, kind: input, shape index: {}]
  %s7 = inlined_call_operand.vmem [shape: f32[2,65,32], index: 7, kind: input, shape index: {}]
  %s8 = inlined_call_operand.hbm [shape: f32[4,8,32], index: 8, kind: output, shape index: {}]
  %s9 = sld [smem:[#allocation0]]
  $region65: #{tpu_custom_call.1} parent=0
    _
  %s11 = ssub.s32 1, %s9
  %s12 = scalar_select 0, %s11, %s9
  $region1: #{tpu_custom_call.1} parent=0
    #allocation2 [shape = 'u8[16384]{0}', space=vmem, size = 0x4000, scoped, tag = 'output window, operand 0']
    #allocation3 [shape = 's32[2]{0}', space=sflag, size = 0x8, scoped, tag = 'scoped memory for tpu_custom_call.1']
    %13 = vsyncpa [#allocation3], 0
    %s14 = scalar_lea.sflag [#allocation3], 1
    %15 = vsyncpa %s14, 0
    loop: start=0, step=1, limit=4
    $region2: #{tpu_custom_call.1} parent=1 // loop_pre_header
      _
    $region3: #{tpu_custom_call.1} parent=1 // loop_header
      %s17 = sphi 0, %s21
      %p18 = scmp.ge.s32.totalorder %s17, 4
      %s27 = sphi 0, %s29
      %s30 = sphi 0, %s27
      %s31 = sphi 0, %s30
      %s47 = sphi 0, %s31
      %s51 = sphi 0, %s51
      %s53 = sphi 0, %s51
      %s54 = sphi 0, %s53
      %s68 = sphi 0, %s54
      %s72 = sphi 0, %s72
      %s74 = sphi 0, %s72
      %s75 = sphi 0, %s74
      %s89 = sphi 0, %s75
      %s93 = sphi 0, %s93
      %s95 = sphi 0, %s93
      %s96 = sphi 0, %s95
      %s110 = sphi 0, %s96
      %s114 = sphi 0, %s114
      %s116 = sphi 0, %s114
      %s117 = sphi 0, %s116
      %s131 = sphi 0, %s117
      %s135 = sphi 0, %s135
      %s137 = sphi 0, %s135
      %s138 = sphi 0, %s137
      %s152 = sphi 0, %s138
      %s156 = sphi 0, %s156
      %s158 = sphi 0, %s156
      %s159 = sphi 0, %s158
      %s173 = sphi 0, %s159
      %s177 = sphi 0, %s177
      %s179 = sphi 0, %s177
      %s180 = sphi 0, %s179
      %s194 = sphi 0, %s180
      %s200 = sphi 0, %s202
      %s203 = sphi 0, %s200
      %s204 = sphi 0, %s203
      %s220 = sphi 0, %s204
    $region4: #{tpu_custom_call.1} parent=1 // loop_header_branch
      %20 = sbr.rel (%p18) target = $region8
    $region5: #{tpu_custom_call.1} parent=1 // loop_body
      %s22 = ssub.s32 %s17, 1
      %s23 = ssub.s32 %s17, 2
      %s24 = sadd.s32 %s17, 1
      %s25 = ssub.s32 %s17, %s24
      %p26 = scmp.eq.s32.totalorder %s25, 0
      %s28 = sadd.s32 %s27, 1
      %s29 = scalar_select %p26, %s27, %s28
      %p32 = pneg %p26
      %p33 = scmp.eq.s32.totalorder %s17, 1
      %p34 = por %p32, %p33
      %p35 = scmp.ne.s32.totalorder %s27, %s30
      %p36 = scmp.eq.s32.totalorder %s17, 0
      %p37 = por %p35, %p36
      %p38 = scmp.ne.s32.totalorder %s27, %s30
      %p39 = scmp.eq.s32.totalorder %s22, 1
      %p40 = por %p38, %p39
      %p41 = scmp.ne.s32.totalorder %s30, %s31
      %p42 = scmp.eq.s32.totalorder %s22, 0
      %p43 = por %p41, %p42
      %p44 = scmp.ne.s32.totalorder %s30, %s31
      %p45 = scmp.eq.s32.totalorder %s23, 1
      %p46 = por %p44, %p45
      %p48 = scmp.ne.s32.totalorder %s31, %s47
      %p49 = scmp.eq.s32.totalorder %s23, 0
      %p50 = por %p48, %p49
      %s52 = sadd.s32 %s51, 1
      %p55 = scmp.eq.s32.totalorder %s17, 1
      %p56 = scmp.ne.s32.totalorder %s51, %s53
      %p57 = scmp.eq.s32.totalorder %s17, 0
      %p58 = por %p56, %p57
      %p59 = scmp.ne.s32.totalorder %s51, %s53
      %p60 = scmp.eq.s32.totalorder %s22, 1
      %p61 = por %p59, %p60
      %p62 = scmp.ne.s32.totalorder %s53, %s54
      %p63 = scmp.eq.s32.totalorder %s22, 0
      %p64 = por %p62, %p63
      %p65 = scmp.ne.s32.totalorder %s53, %s54
      %p66 = scmp.eq.s32.totalorder %s23, 1
      %p67 = por %p65, %p66
      %p69 = scmp.ne.s32.totalorder %s54, %s68
      %p70 = scmp.eq.s32.totalorder %s23, 0
      %p71 = por %p69, %p70
      %s73 = sadd.s32 %s72, 1
      %p76 = scmp.eq.s32.totalorder %s17, 1
      %p77 = scmp.ne.s32.totalorder %s72, %s74
      %p78 = scmp.eq.s32.totalorder %s17, 0
      %p79 = por %p77, %p78
      %p80 = scmp.ne.s32.totalorder %s72, %s74
      %p81 = scmp.eq.s32.totalorder %s22, 1
      %p82 = por %p80, %p81
      %p83 = scmp.ne.s32.totalorder %s74, %s75
      %p84 = scmp.eq.s32.totalorder %s22, 0
      %p85 = por %p83, %p84
      %p86 = scmp.ne.s32.totalorder %s74, %s75
      %p87 = scmp.eq.s32.totalorder %s23, 1
      %p88 = por %p86, %p87
      %p90 = scmp.ne.s32.totalorder %s75, %s89
      %p91 = scmp.eq.s32.totalorder %s23, 0
      %p92 = por %p90, %p91
      %s94 = sadd.s32 %s93, 1
      %p97 = scmp.eq.s32.totalorder %s17, 1
      %p98 = scmp.ne.s32.totalorder %s93, %s95
      %p99 = scmp.eq.s32.totalorder %s17, 0
      %p100 = por %p98, %p99
      %p101 = scmp.ne.s32.totalorder %s93, %s95
      %p102 = scmp.eq.s32.totalorder %s22, 1
      %p103 = por %p101, %p102
      %p104 = scmp.ne.s32.totalorder %s95, %s96
      %p105 = scmp.eq.s32.totalorder %s22, 0
      %p106 = por %p104, %p105
      %p107 = scmp.ne.s32.totalorder %s95, %s96
      %p108 = scmp.eq.s32.totalorder %s23, 1
      %p109 = por %p107, %p108
      %p111 = scmp.ne.s32.totalorder %s96, %s110
      %p112 = scmp.eq.s32.totalorder %s23, 0
      %p113 = por %p111, %p112
      %s115 = sadd.s32 %s114, 1
      %p118 = scmp.eq.s32.totalorder %s17, 1
      %p119 = scmp.ne.s32.totalorder %s114, %s116
      %p120 = scmp.eq.s32.totalorder %s17, 0
      %p121 = por %p119, %p120
      %p122 = scmp.ne.s32.totalorder %s114, %s116
      %p123 = scmp.eq.s32.totalorder %s22, 1
      %p124 = por %p122, %p123
      %p125 = scmp.ne.s32.totalorder %s116, %s117
      %p126 = scmp.eq.s32.totalorder %s22, 0
      %p127 = por %p125, %p126
      %p128 = scmp.ne.s32.totalorder %s116, %s117
      %p129 = scmp.eq.s32.totalorder %s23, 1
      %p130 = por %p128, %p129
      %p132 = scmp.ne.s32.totalorder %s117, %s131
      %p133 = scmp.eq.s32.totalorder %s23, 0
      %p134 = por %p132, %p133
      %s136 = sadd.s32 %s135, 1
      %p139 = scmp.eq.s32.totalorder %s17, 1
      %p140 = scmp.ne.s32.totalorder %s135, %s137
      %p141 = scmp.eq.s32.totalorder %s17, 0
      %p142 = por %p140, %p141
      %p143 = scmp.ne.s32.totalorder %s135, %s137
      %p144 = scmp.eq.s32.totalorder %s22, 1
      %p145 = por %p143, %p144
      %p146 = scmp.ne.s32.totalorder %s137, %s138
      %p147 = scmp.eq.s32.totalorder %s22, 0
      %p148 = por %p146, %p147
      %p149 = scmp.ne.s32.totalorder %s137, %s138
      %p150 = scmp.eq.s32.totalorder %s23, 1
      %p151 = por %p149, %p150
      %p153 = scmp.ne.s32.totalorder %s138, %s152
      %p154 = scmp.eq.s32.totalorder %s23, 0
      %p155 = por %p153, %p154
      %s157 = sadd.s32 %s156, 1
      %p160 = scmp.eq.s32.totalorder %s17, 1
      %p161 = scmp.ne.s32.totalorder %s156, %s158
      %p162 = scmp.eq.s32.totalorder %s17, 0
      %p163 = por %p161, %p162
      %p164 = scmp.ne.s32.totalorder %s156, %s158
      %p165 = scmp.eq.s32.totalorder %s22, 1
      %p166 = por %p164, %p165
      %p167 = scmp.ne.s32.totalorder %s158, %s159
      %p168 = scmp.eq.s32.totalorder %s22, 0
      %p169 = por %p167, %p168
      %p170 = scmp.ne.s32.totalorder %s158, %s159
      %p171 = scmp.eq.s32.totalorder %s23, 1
      %p172 = por %p170, %p171
      %p174 = scmp.ne.s32.totalorder %s159, %s173
      %p175 = scmp.eq.s32.totalorder %s23, 0
      %p176 = por %p174, %p175
      %s178 = sadd.s32 %s177, 1
      %p181 = scmp.eq.s32.totalorder %s17, 1
      %p182 = scmp.ne.s32.totalorder %s177, %s179
      %p183 = scmp.eq.s32.totalorder %s17, 0
      %p184 = por %p182, %p183
      %p185 = scmp.ne.s32.totalorder %s177, %s179
      %p186 = scmp.eq.s32.totalorder %s22, 1
      %p187 = por %p185, %p186
      %p188 = scmp.ne.s32.totalorder %s179, %s180
      %p189 = scmp.eq.s32.totalorder %s22, 0
      %p190 = por %p188, %p189
      %p191 = scmp.ne.s32.totalorder %s179, %s180
      %p192 = scmp.eq.s32.totalorder %s23, 1
      %p193 = por %p191, %p192
      %p195 = scmp.ne.s32.totalorder %s180, %s194
      %p196 = scmp.eq.s32.totalorder %s23, 0
      %p197 = por %p195, %p196
      %s198 = ssub.s32 %s17, %s24
      %p199 = scmp.eq.s32.totalorder %s198, 0
      %s201 = sadd.s32 %s200, 1
      %s202 = scalar_select %p199, %s200, %s201
      %p205 = pneg %p199
      %p206 = scmp.eq.s32.totalorder %s17, 1
      %p207 = por %p205, %p206
      %p208 = scmp.ne.s32.totalorder %s200, %s203
      %p209 = scmp.eq.s32.totalorder %s17, 0
      %p210 = por %p208, %p209
      %p211 = scmp.ne.s32.totalorder %s200, %s203
      %p212 = scmp.eq.s32.totalorder %s22, 1
      %p213 = por %p211, %p212
      %p214 = scmp.ne.s32.totalorder %s203, %s204
      %p215 = scmp.eq.s32.totalorder %s22, 0
      %p216 = por %p214, %p215
      %p217 = scmp.ne.s32.totalorder %s203, %s204
      %p218 = scmp.eq.s32.totalorder %s23, 1
      %p219 = por %p217, %p218
      %p221 = scmp.ne.s32.totalorder %s204, %s220
      %p222 = scmp.eq.s32.totalorder %s23, 0
      %p223 = por %p221, %p222
      %p224 = scmp.le.s32.totalorder 1, %s17
      %p225 = scmp.lt.s32.totalorder %s17, 3
      %p226 = pnand %p224, %p225
      %p227 = pneg %p226
      // Predicated region
      $region9: #{tpu_custom_call.1} parent=5 // pred_check
        _
      $region10: #{tpu_custom_call.1} parent=5 // pred_check_branch
        %229 = sbr.rel (%p226) target = $region12
      $region11: #{tpu_custom_call.1} parent=5 // pred_region
        %s230 = ssub.s32 %s17, 1
        // Predicated region
        $region13: #{tpu_custom_call.1} parent=11 // pred_check
          %p231 = pneg %p64
        $region14: #{tpu_custom_call.1} parent=11 // pred_check_branch
          %233 = sbr.rel (%p231) target = $region16
        $region15: #{tpu_custom_call.1} parent=11 // pred_region
          _
        $region16: #{tpu_custom_call.1} parent=11 // pred_fallthru
          _
        // Predicated region
        $region17: #{tpu_custom_call.1} parent=11 // pred_check
          %p234 = pneg %p85
        $region18: #{tpu_custom_call.1} parent=11 // pred_check_branch
          %236 = sbr.rel (%p234) target = $region20
        $region19: #{tpu_custom_call.1} parent=11 // pred_region
          _
        $region20: #{tpu_custom_call.1} parent=11 // pred_fallthru
          _
        // Predicated region
        $region21: #{tpu_custom_call.1} parent=11 // pred_check
          %p237 = pneg %p106
        $region22: #{tpu_custom_call.1} parent=11 // pred_check_branch
          %239 = sbr.rel (%p237) target = $region24
        $region23: #{tpu_custom_call.1} parent=11 // pred_region
          _
        $region24: #{tpu_custom_call.1} parent=11 // pred_fallthru
          _
        // Predicated region
        $region25: #{tpu_custom_call.1} parent=11 // pred_check
          %p240 = pneg %p127
        $region26: #{tpu_custom_call.1} parent=11 // pred_check_branch
          %242 = sbr.rel (%p240) target = $region28
        $region27: #{tpu_custom_call.1} parent=11 // pred_region
          _
        $region28: #{tpu_custom_call.1} parent=11 // pred_fallthru
          _
        // Predicated region
        $region29: #{tpu_custom_call.1} parent=11 // pred_check
          %p243 = pneg %p148
        $region30: #{tpu_custom_call.1} parent=11 // pred_check_branch
          %245 = sbr.rel (%p243) target = $region32
        $region31: #{tpu_custom_call.1} parent=11 // pred_region
          _
        $region32: #{tpu_custom_call.1} parent=11 // pred_fallthru
          _
        // Predicated region
        $region33: #{tpu_custom_call.1} parent=11 // pred_check
          %p246 = pneg %p169
        $region34: #{tpu_custom_call.1} parent=11 // pred_check_branch
          %248 = sbr.rel (%p246) target = $region36
        $region35: #{tpu_custom_call.1} parent=11 // pred_region
          _
        $region36: #{tpu_custom_call.1} parent=11 // pred_fallthru
          _
        // Predicated region
        $region37: #{tpu_custom_call.1} parent=11 // pred_check
          %p249 = pneg %p190
        $region38: #{tpu_custom_call.1} parent=11 // pred_check_branch
          %251 = sbr.rel (%p249) target = $region40
        $region39: #{tpu_custom_call.1} parent=11 // pred_region
          _
        $region40: #{tpu_custom_call.1} parent=11 // pred_fallthru
          _
      $region12: #{tpu_custom_call.1} parent=5 // pred_fallthru
        _
      %p252 = scmp.lt.s32.totalorder %s17, 2
      // Predicated region
      $region41: #{tpu_custom_call.1} parent=5 // pred_check
        %p253 = pneg %p252
      $region42: #{tpu_custom_call.1} parent=5 // pred_check_branch
        %255 = sbr.rel (%p253) target = $region44
      $region43: #{tpu_custom_call.1} parent=5 // pred_region
        // Predicated region
        $region45: #{tpu_custom_call.1} parent=43 // pred_check
          %p256 = pneg %p37
        $region46: #{tpu_custom_call.1} parent=43 // pred_check_branch
          %258 = sbr.rel (%p256) target = $region48
        $region47: #{tpu_custom_call.1} parent=43 // pred_region
          %s259 = smul.u32 2, %s17
          %p260 = scmp.lt.s32.totalorder %s259, 3
          %s261 = scalar_select %p260, %s259, 3
          %s262 = smul.addr %s261, 2
          %s263 = smul.addr %s262, 8
          %s264 = scalar_lea.vmem %s0, %s263
          %s265 = smul.u32 2, %s17
        $region48: #{tpu_custom_call.1} parent=43 // pred_fallthru
          _
      $region44: #{tpu_custom_call.1} parent=5 // pred_fallthru
        _
      %p266 = scmp.le.s32.totalorder 1, %s17
      %p267 = scmp.lt.s32.totalorder %s17, 3
      %p268 = pnand %p266, %p267
      %p269 = pneg %p268
      // Predicated region
      $region49: #{tpu_custom_call.1} parent=5 // pred_check
        _
      $region50: #{tpu_custom_call.1} parent=5 // pred_check_branch
        %271 = sbr.rel (%p268) target = $region52
      $region51: #{tpu_custom_call.1} parent=5 // pred_region
        %s272 = ssub.s32 %s17, 1
        %s273 = smul.u32 2, %s22
        %p274 = scmp.lt.s32.totalorder %s273, 3
        %s275 = scalar_select %p274, %s273, 3
        %s276 = smul.addr %s275, 2
        %s277 = smul.addr %s276, 8
        %s278 = scalar_lea.vmem %s0, %s277
        %p279 = pneg %p43
        %p280 = pneg %p40
        %p281 = pneg %p64
        %p282 = pneg %p61
        %p283 = pneg %p85
        %p284 = pneg %p82
        %p285 = pneg %p106
        %p286 = pneg %p103
        %p287 = pneg %p127
        %p288 = pneg %p124
        %p289 = pneg %p148
        %p290 = pneg %p145
        %p291 = pneg %p169
        %p292 = pneg %p166
        %p293 = pneg %p190
        %p294 = pneg %p187
        %p295 = pneg %p216
        %p296 = pneg %p213
        %s297 = sand.u32 %s203, 1
        %s298 = scalar_lea.sflag [#allocation3], %s297
        %s299 = sand.u32 %s203, 1
        %s300 = smul.addr %s299, 16
        %s301 = scalar_lea.vmem [#allocation2], %s300
        %s302 = smul.u32 2, %s22
        %p303 = scmp.lt.s32.totalorder %s302, 3
        %s304 = scalar_select %p303, %s302, 3
        %s305 = smul.addr %s304, 2
        %s306 = smul.addr %s305, 8
        %s307 = scalar_lea.vmem %s0, %s306
        %s308 = smul.u32 2, %s22
        %s309 = smul.u32 2, %s22
        %v310 = vld [vmem:[%s307] sm:$0xff]
        %v311 = vld [vmem:[%s307 + $0x8] sm:$0xff]
        %v312 = vld [vmem:[%s307 + $0x10] sm:$0xff]
        %v313 = vld [vmem:[%s307 + $0x18] sm:$0xff]
        %v314 = vld [vmem:[%s2] sm:$0xff]
        %v315 = vld [vmem:[%s2 + $0x8] sm:$0xff]
        %v316 = vld [vmem:[%s2 + $0x10] sm:$0xff]
        %v317 = vld [vmem:[%s2 + $0x18] sm:$0xff]
        %v318 = vld [vmem:[%s2 + $0x20] sm:$0x3f]
        %v319 = vlaneseq
        %v320 = vshrl.u32 %v319, 7
        %v321 = vsub.s32 4, %v320
        %v322 = vrot.slane %v314, %v321
        %vm323 = vcmask 31744
        %v325 = vsel %vm323, %v310, 0
        %v328 = vsel %vm323, %v311, 0
        %v331 = vsel %vm323, %v312, 0
        %v334 = vsel %vm323, %v313, 0
        %vm336 = vcmask 1043456
        %v338 = vsel %vm336, %v314, 0
        %340 = vmatprep.subr.mxu0 0.0
        %341 = vmatpush1.msra.mxu0 %v338
        %342 = vmatprep.subr.mxu0 0.0
        %343 = vmatpush1.msra.mxu0 0.0
        %344 = vmatprep.subr.mxu0 0.0
        %345 = vmatpush1.msra.mxu0 0.0
        %346 = vmatprep.subr.mxu0 0.0
        %347 = vmatpush1.msra.mxu0 0.0
        %348 = vmatprep.subr.mxu0 0.0
        %349 = vmatpush1.msra.mxu0 0.0
        %350 = vmatprep.subr.mxu0 0.0
        %351 = vmatpush1.msra.mxu0 0.0
        %352 = vmatprep.subr.mxu0 0.0
        %353 = vmatpush1.msra.mxu0 0.0
        %354 = vmatprep.subr.mxu0 0.0
        %355 = vmatpush1.msra.mxu0 0.0
        %356 = vmatprep.subr.mxu0 0.0
        %357 = vmatpush1.msra.mxu0 0.0
        %358 = vmatprep.subr.mxu0 0.0
        %359 = vmatpush1.msra.mxu0 0.0
        %360 = vmatprep.subr.mxu0 0.0
        %361 = vmatpush1.msra.mxu0 0.0
        %362 = vmatprep.subr.mxu0 0.0
        %363 = vmatpush1.msra.mxu0 0.0
        %364 = vmatprep.subr.mxu0 0.0
        %365 = vmatpush1.msra.mxu0 0.0
        %366 = vmatprep.subr.mxu0 0.0
        %367 = vmatpush1.msra.mxu0 0.0
        %368 = vmatprep.subr.mxu0 0.0
        %369 = vmatpush1.msra.mxu0 0.0
        %370 = vmatprep.subr.mxu0 0.0
        %371 = vmatpush1.msra.mxu0 0.0
        %372 = vmatprep.subr.mxu0 0.0
        %373 = vmatpush1.msra.mxu0 0.0
        %374 = vmatprep.subr.mxu0 0.0
        %375 = vmatpush1.msra.mxu0 0.0
        %376 = vmatprep.subr.mxu0 0.0
        %377 = vmatpush1.msra.mxu0 0.0
        %378 = vmatprep.subr.mxu0 0.0
        %379 = vmatpush1.msra.mxu0 0.0
        %380 = vmatprep.subr.mxu0 0.0
        %381 = vmatpush1.msra.mxu0 0.0
        %382 = vmatprep.subr.mxu0 0.0
        %383 = vmatpush1.msra.mxu0 0.0
        %384 = vmatprep.subr.mxu0 0.0
        %385 = vmatpush1.msra.mxu0 0.0
        %386 = vmatprep.subr.mxu0 0.0
        %387 = vmatpush1.msra.mxu0 0.0
        %388 = vmatprep.subr.mxu0 0.0
        %389 = vmatpush1.msra.mxu0 0.0
        %390 = vmatprep.subr.mxu0 0.0
        %391 = vmatpush1.msra.mxu0 0.0
        %392 = vmatprep.subr.mxu0 0.0
        %393 = vmatpush1.msra.mxu0 0.0
        %394 = vmatprep.subr.mxu0 0.0
        %395 = vmatpush1.msra.mxu0 0.0
        %396 = vmatprep.subr.mxu0 0.0
        %397 = vmatpush1.msra.mxu0 0.0
        %398 = vmatprep.subr.mxu0 0.0
        %399 = vmatpush1.msra.mxu0 0.0
        %400 = vmatprep.subr.mxu0 0.0
        %401 = vmatpush1.msra.mxu0 0.0
        %402 = vmatprep.subr.mxu0 0.0
        %403 = vmatpush1.msra.mxu0 0.0
        %404 = vmatprep.mubr.f32.mxu0 0.0
        %405 = vmatmul.mubr.f32.gmra.mrb[0].mxu0 %v325
        %v406 = vpop.f32.mrb[0].mxu0
        %v407 = vadd.f32 %v322, %v406
        %v408 = vpop.f32.mrb[0].mxu0
        %409 = vmatprep.mubr.f32.mxu0 0.0
        %410 = vmatmul.mubr.f32.gmra.mrb[0].mxu0 %v328
        %v411 = vpop.f32.mrb[0].mxu0
        %v412 = vadd.f32 %v322, %v411
        %v413 = vpop.f32.mrb[0].mxu0
        %414 = vmatprep.mubr.f32.mxu0 0.0
        %415 = vmatmul.mubr.f32.gmra.mrb[0].mxu0 %v331
        %v416 = vpop.f32.mrb[0].mxu0
        %v417 = vadd.f32 %v322, %v416
        %v418 = vpop.f32.mrb[0].mxu0
        %419 = vmatprep.mubr.f32.mxu0 0.0
        %420 = vmatmul.mubr.f32.gmra.mrb[0].mxu0 %v334
        %v421 = vpop.f32.mrb[0].mxu0
        %v422 = vadd.f32 %v322, %v421
        %v423 = vpop.f32.mrb[0].mxu0
        %424 = vdwg.mxu0
        %v425 = vmax.f32 %v407, 0.0
        %v426 = vmax.f32 %v412, 0.0
        %v427 = vmax.f32 %v417, 0.0
        %v428 = vmax.f32 %v422, 0.0
        %v429 = vlaneseq
        %v430 = vshrl.u32 %v429, 7
        %v431 = vsub.s32 5, %v430
        %v432 = vrot.slane %v318, %v431
        %vm437 = vcmask 1042432
        %v438 = vrot.slane %v314, 5
        %v439 = vrot.slane %v315, 5
        %v440 = vsel %vm437, %v438, %v439
        %v441 = vrot.slane %v316, 5
        %v442 = vsel %vm437, %v439, %v441
        %v443 = vrot.slane %v317, 5
        %v444 = vsel %vm437, %v441, %v443
        %v445 = vrot.slane %v318, 5
        %v446 = vsel %vm437, %v443, %v445
        %vm451 = vcmask 261120
        %v453 = vsel %vm451, %v425, 0
        %v456 = vsel %vm451, %v426, 0
        %v459 = vsel %vm451, %v427, 0
        %v462 = vsel %vm451, %v428, 0
        %464 = vmatprep.subr.mxu0 0.0
        %465 = vmatpush1.msra.mxu0 %v440
        %466 = vmatprep.subr.mxu0 0.0
        %467 = vmatpush1.msra.mxu0 %v442
        %468 = vmatprep.subr.mxu0 0.0
        %469 = vmatpush1.msra.mxu0 %v444
        %470 = vmatprep.subr.mxu0 0.0
        %471 = vmatpush1.msra.mxu0 %v446
        %472 = vmatprep.subr.mxu0 0.0
        %473 = vmatpush1.msra.mxu0 0.0
        %474 = vmatprep.subr.mxu0 0.0
        %475 = vmatpush1.msra.mxu0 0.0
        %476 = vmatprep.subr.mxu0 0.0
        %477 = vmatpush1.msra.mxu0 0.0
        %478 = vmatprep.subr.mxu0 0.0
        %479 = vmatpush1.msra.mxu0 0.0
        %480 = vmatprep.subr.mxu0 0.0
        %481 = vmatpush1.msra.mxu0 0.0
        %482 = vmatprep.subr.mxu0 0.0
        %483 = vmatpush1.msra.mxu0 0.0
        %484 = vmatprep.subr.mxu0 0.0
        %485 = vmatpush1.msra.mxu0 0.0
        %486 = vmatprep.subr.mxu0 0.0
        %487 = vmatpush1.msra.mxu0 0.0
        %488 = vmatprep.subr.mxu0 0.0
        %489 = vmatpush1.msra.mxu0 0.0
        %490 = vmatprep.subr.mxu0 0.0
        %491 = vmatpush1.msra.mxu0 0.0
        %492 = vmatprep.subr.mxu0 0.0
        %493 = vmatpush1.msra.mxu0 0.0
        %494 = vmatprep.subr.mxu0 0.0
        %495 = vmatpush1.msra.mxu0 0.0
        %496 = vmatprep.subr.mxu0 0.0
        %497 = vmatpush1.msra.mxu0 0.0
        %498 = vmatprep.subr.mxu0 0.0
        %499 = vmatpush1.msra.mxu0 0.0
        %500 = vmatprep.subr.mxu0 0.0
        %501 = vmatpush1.msra.mxu0 0.0
        %502 = vmatprep.subr.mxu0 0.0
        %503 = vmatpush1.msra.mxu0 0.0
        %504 = vmatprep.subr.mxu0 0.0
        %505 = vmatpush1.msra.mxu0 0.0
        %506 = vmatprep.subr.mxu0 0.0
        %507 = vmatpush1.msra.mxu0 0.0
        %508 = vmatprep.subr.mxu0 0.0
        %509 = vmatpush1.msra.mxu0 0.0
        %510 = vmatprep.subr.mxu0 0.0
        %511 = vmatpush1.msra.mxu0 0.0
        %512 = vmatprep.subr.mxu0 0.0
        %513 = vmatpush1.msra.mxu0 0.0
        %514 = vmatprep.subr.mxu0 0.0
        %515 = vmatpush1.msra.mxu0 0.0
        %516 = vmatprep.subr.mxu0 0.0
        %517 = vmatpush1.msra.mxu0 0.0
        %518 = vmatprep.subr.mxu0 0.0
        %519 = vmatpush1.msra.mxu0 0.0
        %520 = vmatprep.subr.mxu0 0.0
        %521 = vmatpush1.msra.mxu0 0.0
        %522 = vmatprep.subr.mxu0 0.0
        %523 = vmatpush1.msra.mxu0 0.0
        %524 = vmatprep.subr.mxu0 0.0
        %525 = vmatpush1.msra.mxu0 0.0
        %526 = vmatprep.subr.mxu0 0.0
        %527 = vmatpush1.msra.mxu0 0.0
        %528 = vmatprep.mubr.f32.mxu0 0.0
        %529 = vmatmul.mubr.f32.gmra.mrb[0].mxu0 %v453
        %v530 = vpop.f32.mrb[0].mxu0
        %v531 = vadd.f32 %v432, %v530
        %v532 = vpop.f32.mrb[0].mxu0
        %533 = vmatprep.mubr.f32.mxu0 0.0
        %534 = vmatmul.mubr.f32.gmra.mrb[0].mxu0 %v456
        %v535 = vpop.f32.mrb[0].mxu0
        %v536 = vadd.f32 %v432, %v535
        %v537 = vpop.f32.mrb[0].mxu0
        %538 = vmatprep.mubr.f32.mxu0 0.0
        %539 = vmatmul.mubr.f32.gmra.mrb[0].mxu0 %v459
        %v540 = vpop.f32.mrb[0].mxu0
        %v541 = vadd.f32 %v432, %v540
        %v542 = vpop.f32.mrb[0].mxu0
        %543 = vmatprep.mubr.f32.mxu0 0.0
        %544 = vmatmul.mubr.f32.gmra.mrb[0].mxu0 %v462
        %v545 = vpop.f32.mrb[0].mxu0
        %v546 = vadd.f32 %v432, %v545
        %v547 = vpop.f32.mrb[0].mxu0
        %548 = vdwg.mxu0
        %v549 = vld [vmem:[%s1] sm:$0xff]
        %v550 = vld [vmem:[%s1 + $0x8] sm:$0xff]
        %v551 = vld [vmem:[%s5] sm:$0xf]
        %v552 = vsel %vm451, %v531, 0.0
        %553 = vadd.xlane.f32.xlu0 %v552
        %v554 = vpop.xlane.xlu0 %553
        %v555 = vsel %vm451, %v536, 0.0
        %556 = vadd.xlane.f32.xlu0 %v555
        %v557 = vpop.xlane.xlu0 %556
        %v558 = vsel %vm451, %v541, 0.0
        %559 = vadd.xlane.f32.xlu0 %v558
        %v560 = vpop.xlane.xlu0 %559
        %v561 = vsel %vm451, %v546, 0.0
        %562 = vadd.xlane.f32.xlu0 %v561
        %v563 = vpop.xlane.xlu0 %562
        %v564 = vrcp.pop 32.0
        %v565 = vmul.f32 %v554, %v564
        %v566 = vmul.f32 %v557, %v564
        %v567 = vmul.f32 %v560, %v564
        %v568 = vmul.f32 %v563, %v564
        %v569 = vsub.f32 %v531, %v565
        %v570 = vsub.f32 %v536, %v566
        %v571 = vsub.f32 %v541, %v567
        %v572 = vsub.f32 %v546, %v568
        %v573 = vmul.f32 %v569, %v569
        %v574 = vmul.f32 %v570, %v570
        %v575 = vmul.f32 %v571, %v571
        %v576 = vmul.f32 %v572, %v572
        %v577 = vsel %vm451, %v573, 0.0
        %578 = vadd.xlane.f32.xlu0 %v577
        %v579 = vpop.xlane.xlu0 %578
        %v580 = vsel %vm451, %v574, 0.0
        %581 = vadd.xlane.f32.xlu0 %v580
        %v582 = vpop.xlane.xlu0 %581
        %v583 = vsel %vm451, %v575, 0.0
        %584 = vadd.xlane.f32.xlu0 %v583
        %v585 = vpop.xlane.xlu0 %584
        %v586 = vsel %vm451, %v576, 0.0
        %587 = vadd.xlane.f32.xlu0 %v586
        %v588 = vpop.xlane.xlu0 %587
        %v589 = vmul.f32 %v579, %v564
        %v590 = vmul.f32 %v582, %v564
        %v591 = vmul.f32 %v585, %v564
        %v592 = vmul.f32 %v588, %v564
        %v593 = vadd.f32 %v589, 1e-05
        %v594 = vadd.f32 %v590, 1e-05
        %v595 = vadd.f32 %v591, 1e-05
        %v596 = vadd.f32 %v592, 1e-05
        %v597 = vrsqrt.pop %v593
        %v598 = vrsqrt.pop %v594
        %v599 = vrsqrt.pop %v595
        %v600 = vrsqrt.pop %v596
        %v601 = vmul.f32 %v569, %v597
        %v602 = vmul.f32 %v570, %v598
        %v603 = vmul.f32 %v571, %v599
        %v604 = vmul.f32 %v572, %v600
        %v605 = vlaneseq
        %v606 = vshrl.u32 %v605, 7
        %v607 = vsub.s32 0, %v606
        %v608 = vrot.slane %v551, %v607
        %v609 = vmul.f32 %v601, %v608
        %v610 = vmul.f32 %v602, %v608
        %v611 = vmul.f32 %v603, %v608
        %v612 = vmul.f32 %v604, %v608
        %v613 = vlaneseq
        %v614 = vshrl.u32 %v613, 7
        %v615 = vsub.s32 1, %v614
        %v616 = vrot.slane %v551, %v615
        %v617 = vadd.f32 %v609, %v616
        %v618 = vadd.f32 %v610, %v616
        %v619 = vadd.f32 %v611, %v616
        %v620 = vadd.f32 %v612, %v616
        %v621 = vld [vmem:[%s3] sm:$0xff]
        %v622 = vld [vmem:[%s3 + $0x8] sm:$0xff]
        %v623 = vld [vmem:[%s3 + $0x10] sm:$0xff]
        %v624 = vld [vmem:[%s3 + $0x18] sm:$0xff]
        %v625 = vld [vmem:[%s3 + $0x20] sm:$0x1]
        %v626 = vlaneseq
        %v627 = vshrl.u32 %v626, 7
        %v628 = vsub.s32 0, %v627
        %v629 = vrot.slane %v625, %v628
        %v631 = vsel %vm451, %v617, 0
        %v634 = vsel %vm451, %v618, 0
        %v637 = vsel %vm451, %v619, 0
        %v640 = vsel %vm451, %v620, 0
        %642 = vmatprep.subr.mxu0 0.0
        %643 = vmatpush1.msra.mxu0 %v621
        %644 = vmatprep.subr.mxu0 0.0
        %645 = vmatpush1.msra.mxu0 %v622
        %646 = vmatprep.subr.mxu0 0.0
        %647 = vmatpush1.msra.mxu0 %v623
        %648 = vmatprep.subr.mxu0 0.0
        %649 = vmatpush1.msra.mxu0 %v624
        %650 = vmatprep.subr.mxu0 0.0
        %651 = vmatpush1.msra.mxu0 0.0
        %652 = vmatprep.subr.mxu0 0.0
        %653 = vmatpush1.msra.mxu0 0.0
        %654 = vmatprep.subr.mxu0 0.0
        %655 = vmatpush1.msra.mxu0 0.0
        %656 = vmatprep.subr.mxu0 0.0
        %657 = vmatpush1.msra.mxu0 0.0
        %658 = vmatprep.subr.mxu0 0.0
        %659 = vmatpush1.msra.mxu0 0.0
        %660 = vmatprep.subr.mxu0 0.0
        %661 = vmatpush1.msra.mxu0 0.0
        %662 = vmatprep.subr.mxu0 0.0
        %663 = vmatpush1.msra.mxu0 0.0
        %664 = vmatprep.subr.mxu0 0.0
        %665 = vmatpush1.msra.mxu0 0.0
        %666 = vmatprep.subr.mxu0 0.0
        %667 = vmatpush1.msra.mxu0 0.0
        %668 = vmatprep.subr.mxu0 0.0
        %669 = vmatpush1.msra.mxu0 0.0
        %670 = vmatprep.subr.mxu0 0.0
        %671 = vmatpush1.msra.mxu0 0.0
        %672 = vmatprep.subr.mxu0 0.0
        %673 = vmatpush1.msra.mxu0 0.0
        %674 = vmatprep.subr.mxu0 0.0
        %675 = vmatpush1.msra.mxu0 0.0
        %676 = vmatprep.subr.mxu0 0.0
        %677 = vmatpush1.msra.mxu0 0.0
        %678 = vmatprep.subr.mxu0 0.0
        %679 = vmatpush1.msra.mxu0 0.0
        %680 = vmatprep.subr.mxu0 0.0
        %681 = vmatpush1.msra.mxu0 0.0
        %682 = vmatprep.subr.mxu0 0.0
        %683 = vmatpush1.msra.mxu0 0.0
        %684 = vmatprep.subr.mxu0 0.0
        %685 = vmatpush1.msra.mxu0 0.0
        %686 = vmatprep.subr.mxu0 0.0
        %687 = vmatpush1.msra.mxu0 0.0
        %688 = vmatprep.subr.mxu0 0.0
        %689 = vmatpush1.msra.mxu0 0.0
        %690 = vmatprep.subr.mxu0 0.0
        %691 = vmatpush1.msra.mxu0 0.0
        %692 = vmatprep.subr.mxu0 0.0
        %693 = vmatpush1.msra.mxu0 0.0
        %694 = vmatprep.subr.mxu0 0.0
        %695 = vmatpush1.msra.mxu0 0.0
        %696 = vmatprep.subr.mxu0 0.0
        %697 = vmatpush1.msra.mxu0 0.0
        %698 = vmatprep.subr.mxu0 0.0
        %699 = vmatpush1.msra.mxu0 0.0
        %700 = vmatprep.subr.mxu0 0.0
        %701 = vmatpush1.msra.mxu0 0.0
        %702 = vmatprep.subr.mxu0 0.0
        %703 = vmatpush1.msra.mxu0 0.0
        %704 = vmatprep.subr.mxu0 0.0
        %705 = vmatpush1.msra.mxu0 0.0
        %706 = vmatprep.mubr.f32.mxu0 0.0
        %707 = vmatmul.mubr.f32.gmra.mrb[0].mxu0 %v631
        %v708 = vpop.f32.mrb[0].mxu0
        %v709 = vadd.f32 %v629, %v708
        %v710 = vpop.f32.mrb[0].mxu0
        %711 = vmatprep.mubr.f32.mxu0 0.0
        %712 = vmatmul.mubr.f32.gmra.mrb[0].mxu0 %v634
        %v713 = vpop.f32.mrb[0].mxu0
        %v714 = vadd.f32 %v629, %v713
        %v715 = vpop.f32.mrb[0].mxu0
        %716 = vmatprep.mubr.f32.mxu0 0.0
        %717 = vmatmul.mubr.f32.gmra.mrb[0].mxu0 %v637
        %v718 = vpop.f32.mrb[0].mxu0
        %v719 = vadd.f32 %v629, %v718
        %v720 = vpop.f32.mrb[0].mxu0
        %721 = vmatprep.mubr.f32.mxu0 0.0
        %722 = vmatmul.mubr.f32.gmra.mrb[0].mxu0 %v640
        %v723 = vpop.f32.mrb[0].mxu0
        %v724 = vadd.f32 %v629, %v723
        %v725 = vpop.f32.mrb[0].mxu0
        %726 = vdwg.mxu0
        %v727 = vld [vmem:[%s4] sm:$0xff]
        %v728 = vld [vmem:[%s4 + $0x8] sm:$0xff]
        %v729 = vld [vmem:[%s4 + $0x10] sm:$0xff]
        %v730 = vld [vmem:[%s4 + $0x18] sm:$0xff]
        %v731 = vld [vmem:[%s4 + $0x20] sm:$0x1]
        %734 = vrot.lane.b32.xlu0 %v709, 96
        %v735 = vpop.permute.xlu0 %734
        %736 = vrot.lane.b32.xlu0 %v714, 96
        %v737 = vpop.permute.xlu0 %736
        %vm738 = vcmask 64512
        %v739 = vsel %vm738, %v709, 0
        %v741 = vsel %vm738, %v714, 0
        %v743 = vsel %vm738, %v735, 0
        %v745 = vsel %vm738, %v737, 0
        %747 = vmatprep.subr.mxu0 0.0
        %748 = vmatpush1.xpose.msra.mxu0 %v743
        %749 = vmatprep.subr.mxu0 0.0
        %750 = vmatpush1.xpose.msra.mxu0 %v745
        %751 = vmatprep.subr.mxu0 0.0
        %752 = vmatpush1.xpose.msra.mxu0 0.0
        %753 = vmatprep.subr.mxu0 0.0
        %754 = vmatpush1.xpose.msra.mxu0 0.0
        %755 = vmatprep.subr.mxu0 0.0
        %756 = vmatpush1.xpose.msra.mxu0 0.0
        %757 = vmatprep.subr.mxu0 0.0
        %758 = vmatpush1.xpose.msra.mxu0 0.0
        %759 = vmatprep.subr.mxu0 0.0
        %760 = vmatpush1.xpose.msra.mxu0 0.0
        %761 = vmatprep.subr.mxu0 0.0
        %762 = vmatpush1.xpose.msra.mxu0 0.0
        %763 = vmatprep.subr.mxu0 0.0
        %764 = vmatpush1.xpose.msra.mxu0 0.0
        %765 = vmatprep.subr.mxu0 0.0
        %766 = vmatpush1.xpose.msra.mxu0 0.0
        %767 = vmatprep.subr.mxu0 0.0
        %768 = vmatpush1.xpose.msra.mxu0 0.0
        %769 = vmatprep.subr.mxu0 0.0
        %770 = vmatpush1.xpose.msra.mxu0 0.0
        %771 = vmatprep.subr.mxu0 0.0
        %772 = vmatpush1.xpose.msra.mxu0 0.0
        %773 = vmatprep.subr.mxu0 0.0
        %774 = vmatpush1.xpose.msra.mxu0 0.0
        %775 = vmatprep.subr.mxu0 0.0
        %776 = vmatpush1.xpose.msra.mxu0 0.0
        %777 = vmatprep.subr.mxu0 0.0
        %778 = vmatpush1.xpose.msra.mxu0 0.0
        %779 = vmatprep.subr.mxu0 0.0
        %780 = vmatpush1.xpose.msra.mxu0 0.0
        %781 = vmatprep.subr.mxu0 0.0
        %782 = vmatpush1.xpose.msra.mxu0 0.0
        %783 = vmatprep.subr.mxu0 0.0
        %784 = vmatpush1.xpose.msra.mxu0 0.0
        %785 = vmatprep.subr.mxu0 0.0
        %786 = vmatpush1.xpose.msra.mxu0 0.0
        %787 = vmatprep.subr.mxu0 0.0
        %788 = vmatpush1.xpose.msra.mxu0 0.0
        %789 = vmatprep.subr.mxu0 0.0
        %790 = vmatpush1.xpose.msra.mxu0 0.0
        %791 = vmatprep.subr.mxu0 0.0
        %792 = vmatpush1.xpose.msra.mxu0 0.0
        %793 = vmatprep.subr.mxu0 0.0
        %794 = vmatpush1.xpose.msra.mxu0 0.0
        %795 = vmatprep.subr.mxu0 0.0
        %796 = vmatpush1.xpose.msra.mxu0 0.0
        %797 = vmatprep.subr.mxu0 0.0
        %798 = vmatpush1.xpose.msra.mxu0 0.0
        %799 = vmatprep.subr.mxu0 0.0
        %800 = vmatpush1.xpose.msra.mxu0 0.0
        %801 = vmatprep.subr.mxu0 0.0
        %802 = vmatpush1.xpose.msra.mxu0 0.0
        %803 = vmatprep.subr.mxu0 0.0
        %804 = vmatpush1.xpose.msra.mxu0 0.0
        %805 = vmatprep.subr.mxu0 0.0
        %806 = vmatpush1.xpose.msra.mxu0 0.0
        %807 = vmatprep.subr.mxu0 0.0
        %808 = vmatpush1.xpose.msra.mxu0 0.0
        %809 = vmatprep.subr.mxu0 0.0
        %810 = vmatpush1.xpose.msra.mxu0 0.0
        %811 = vmatprep.mubr.f32.mxu0 0.0
        %812 = vmatmul.mubr.f32.gmra.mrb[0].mxu0 %v739
        %v813 = vpop.f32.mrb[0].mxu0
        %v814 = vadd.f32 0.0, %v813
        %v815 = vpop.f32.mrb[0].mxu0
        %816 = vmatprep.mubr.f32.mxu0 0.0
        %817 = vmatmul.mubr.f32.gmra.mrb[0].mxu0 %v741
        %v818 = vpop.f32.mrb[0].mxu0
        %v819 = vadd.f32 0.0, %v818
        %v820 = vpop.f32.mrb[0].mxu0
        %821 = vdwg.mxu0
        %824 = vrot.lane.b32.xlu0 %v719, 96
        %v825 = vpop.permute.xlu0 %824
        %826 = vrot.lane.b32.xlu0 %v724, 96
        %v827 = vpop.permute.xlu0 %826
        %v828 = vsel %vm738, %v719, 0
        %v830 = vsel %vm738, %v724, 0
        %v832 = vsel %vm738, %v825, 0
        %v834 = vsel %vm738, %v827, 0
        %836 = vmatprep.subr.mxu0 0.0
        %837 = vmatpush1.xpose.msra.mxu0 %v832
        %838 = vmatprep.subr.mxu0 0.0
        %839 = vmatpush1.xpose.msra.mxu0 %v834
        %840 = vmatprep.subr.mxu0 0.0
        %841 = vmatpush1.xpose.msra.mxu0 0.0
        %842 = vmatprep.subr.mxu0 0.0
        %843 = vmatpush1.xpose.msra.mxu0 0.0
        %844 = vmatprep.subr.mxu0 0.0
        %845 = vmatpush1.xpose.msra.mxu0 0.0
        %846 = vmatprep.subr.mxu0 0.0
        %847 = vmatpush1.xpose.msra.mxu0 0.0
        %848 = vmatprep.subr.mxu0 0.0
        %849 = vmatpush1.xpose.msra.mxu0 0.0
        %850 = vmatprep.subr.mxu0 0.0
        %851 = vmatpush1.xpose.msra.mxu0 0.0
        %852 = vmatprep.subr.mxu0 0.0
        %853 = vmatpush1.xpose.msra.mxu0 0.0
        %854 = vmatprep.subr.mxu0 0.0
        %855 = vmatpush1.xpose.msra.mxu0 0.0
        %856 = vmatprep.subr.mxu0 0.0
        %857 = vmatpush1.xpose.msra.mxu0 0.0
        %858 = vmatprep.subr.mxu0 0.0
        %859 = vmatpush1.xpose.msra.mxu0 0.0
        %860 = vmatprep.subr.mxu0 0.0
        %861 = vmatpush1.xpose.msra.mxu0 0.0
        %862 = vmatprep.subr.mxu0 0.0
        %863 = vmatpush1.xpose.msra.mxu0 0.0
        %864 = vmatprep.subr.mxu0 0.0
        %865 = vmatpush1.xpose.msra.mxu0 0.0
        %866 = vmatprep.subr.mxu0 0.0
        %867 = vmatpush1.xpose.msra.mxu0 0.0
        %868 = vmatprep.subr.mxu0 0.0
        %869 = vmatpush1.xpose.msra.mxu0 0.0
        %870 = vmatprep.subr.mxu0 0.0
        %871 = vmatpush1.xpose.msra.mxu0 0.0
        %872 = vmatprep.subr.mxu0 0.0
        %873 = vmatpush1.xpose.msra.mxu0 0.0
        %874 = vmatprep.subr.mxu0 0.0
        %875 = vmatpush1.xpose.msra.mxu0 0.0
        %876 = vmatprep.subr.mxu0 0.0
        %877 = vmatpush1.xpose.msra.mxu0 0.0
        %878 = vmatprep.subr.mxu0 0.0
        %879 = vmatpush1.xpose.msra.mxu0 0.0
        %880 = vmatprep.subr.mxu0 0.0
        %881 = vmatpush1.xpose.msra.mxu0 0.0
        %882 = vmatprep.subr.mxu0 0.0
        %883 = vmatpush1.xpose.msra.mxu0 0.0
        %884 = vmatprep.subr.mxu0 0.0
        %885 = vmatpush1.xpose.msra.mxu0 0.0
        %886 = vmatprep.subr.mxu0 0.0
        %887 = vmatpush1.xpose.msra.mxu0 0.0
        %888 = vmatprep.subr.mxu0 0.0
        %889 = vmatpush1.xpose.msra.mxu0 0.0
        %890 = vmatprep.subr.mxu0 0.0
        %891 = vmatpush1.xpose.msra.mxu0 0.0
        %892 = vmatprep.subr.mxu0 0.0
        %893 = vmatpush1.xpose.msra.mxu0 0.0
        %894 = vmatprep.subr.mxu0 0.0
        %895 = vmatpush1.xpose.msra.mxu0 0.0
        %896 = vmatprep.subr.mxu0 0.0
        %897 = vmatpush1.xpose.msra.mxu0 0.0
        %898 = vmatprep.subr.mxu0 0.0
        %899 = vmatpush1.xpose.msra.mxu0 0.0
        %900 = vmatprep.mubr.f32.mxu0 0.0
        %901 = vmatmul.mubr.f32.gmra.mrb[0].mxu0 %v828
        %v902 = vpop.f32.mrb[0].mxu0
        %v903 = vadd.f32 0.0, %v902
        %v904 = vpop.f32.mrb[0].mxu0
        %905 = vmatprep.mubr.f32.mxu0 0.0
        %906 = vmatmul.mubr.f32.gmra.mrb[0].mxu0 %v830
        %v907 = vpop.f32.mrb[0].mxu0
        %v908 = vadd.f32 0.0, %v907
        %v909 = vpop.f32.mrb[0].mxu0
        %910 = vdwg.mxu0
        %v911 = vmul.f32 %v814, 0.35355338
        %v912 = vmul.f32 %v819, 0.35355338
        %v913 = vmul.f32 %v903, 0.35355338
        %v914 = vmul.f32 %v908, 0.35355338
        %v915 = vadd.f32 %v911, %v549
        %v916 = vadd.f32 %v912, %v550
        %v917 = vadd.f32 %v913, %v549
        %v918 = vadd.f32 %v914, %v550
        %vm919 = vcmask 130048
        %v920 = vsel %vm919, %v915, -inf
        %921 = vmax.xlane.f32.xlu0 %v920
        %v922 = vpop.xlane.xlu0 %921
        %v923 = vsel %vm919, %v916, -inf
        %924 = vmax.xlane.f32.xlu0 %v923
        %v925 = vpop.xlane.xlu0 %924
        %v926 = vsel %vm919, %v917, -inf
        %927 = vmax.xlane.f32.xlu0 %v926
        %v928 = vpop.xlane.xlu0 %927
        %v929 = vsel %vm919, %v918, -inf
        %930 = vmax.xlane.f32.xlu0 %v929
        %v931 = vpop.xlane.xlu0 %930
        %v932 = vsub.f32 %v915, %v922
        %v933 = vsub.f32 %v916, %v925
        %v934 = vsub.f32 %v917, %v928
        %v935 = vsub.f32 %v918, %v931
        %v936 = vmul.f32 %v932, 1.442695
        %v937 = vpow.pop %v936
        %v938 = vmul.f32 %v933, 1.442695
        %v939 = vpow.pop %v938
        %v940 = vmul.f32 %v934, 1.442695
        %v941 = vpow.pop %v940
        %v942 = vmul.f32 %v935, 1.442695
        %v943 = vpow.pop %v942
        %v944 = vsel %vm919, %v937, 0.0
        %945 = vadd.xlane.f32.xlu0 %v944
        %v946 = vpop.xlane.xlu0 %945
        %v947 = vsel %vm919, %v939, 0.0
        %948 = vadd.xlane.f32.xlu0 %v947
        %v949 = vpop.xlane.xlu0 %948
        %v950 = vsel %vm919, %v941, 0.0
        %951 = vadd.xlane.f32.xlu0 %v950
        %v952 = vpop.xlane.xlu0 %951
        %v953 = vsel %vm919, %v943, 0.0
        %954 = vadd.xlane.f32.xlu0 %v953
        %v955 = vpop.xlane.xlu0 %954
        %v956 = vrcp.pop %v946
        %v957 = vrcp.pop %v949
        %v958 = vrcp.pop %v952
        %v959 = vrcp.pop %v955
        %v960 = vmul.f32 %v937, %v956
        %v961 = vmul.f32 %v939, %v957
        %v962 = vmul.f32 %v941, %v958
        %v963 = vmul.f32 %v943, %v959
        %964 = vrot.lane.b32.xlu0 %v709, 64
        %v965 = vpop.permute.xlu0 %964
        %966 = vrot.lane.b32.xlu0 %v714, 64
        %v967 = vpop.permute.xlu0 %966
        %v971 = vsel %vm919, %v960, 0
        %v974 = vsel %vm919, %v961, 0
        %976 = vmatprep.subr.mxu0 0.0
        %977 = vmatpush1.msra.mxu0 %v965
        %978 = vmatprep.subr.mxu0 0.0
        %979 = vmatpush1.msra.mxu0 %v967
        %980 = vmatprep.subr.mxu0 0.0
        %981 = vmatpush1.msra.mxu0 0.0
        %982 = vmatprep.subr.mxu0 0.0
        %983 = vmatpush1.msra.mxu0 0.0
        %984 = vmatprep.subr.mxu0 0.0
        %985 = vmatpush1.msra.mxu0 0.0
        %986 = vmatprep.subr.mxu0 0.0
        %987 = vmatpush1.msra.mxu0 0.0
        %988 = vmatprep.subr.mxu0 0.0
        %989 = vmatpush1.msra.mxu0 0.0
        %990 = vmatprep.subr.mxu0 0.0
        %991 = vmatpush1.msra.mxu0 0.0
        %992 = vmatprep.subr.mxu0 0.0
        %993 = vmatpush1.msra.mxu0 0.0
        %994 = vmatprep.subr.mxu0 0.0
        %995 = vmatpush1.msra.mxu0 0.0
        %996 = vmatprep.subr.mxu0 0.0
        %997 = vmatpush1.msra.mxu0 0.0
        %998 = vmatprep.subr.mxu0 0.0
        %999 = vmatpush1.msra.mxu0 0.0
        %1000 = vmatprep.subr.mxu0 0.0
        %1001 = vmatpush1.msra.mxu0 0.0
        %1002 = vmatprep.subr.mxu0 0.0
        %1003 = vmatpush1.msra.mxu0 0.0
        %1004 = vmatprep.subr.mxu0 0.0
        %1005 = vmatpush1.msra.mxu0 0.0
        %1006 = vmatprep.subr.mxu0 0.0
        %1007 = vmatpush1.msra.mxu0 0.0
        %1008 = vmatprep.subr.mxu0 0.0
        %1009 = vmatpush1.msra.mxu0 0.0
        %1010 = vmatprep.subr.mxu0 0.0
        %1011 = vmatpush1.msra.mxu0 0.0
        %1012 = vmatprep.subr.mxu0 0.0
        %1013 = vmatpush1.msra.mxu0 0.0
        %1014 = vmatprep.subr.mxu0 0.0
        %1015 = vmatpush1.msra.mxu0 0.0
        %1016 = vmatprep.subr.mxu0 0.0
        %1017 = vmatpush1.msra.mxu0 0.0
        %1018 = vmatprep.subr.mxu0 0.0
        %1019 = vmatpush1.msra.mxu0 0.0
        %1020 = vmatprep.subr.mxu0 0.0
        %1021 = vmatpush1.msra.mxu0 0.0
        %1022 = vmatprep.subr.mxu0 0.0
        %1023 = vmatpush1.msra.mxu0 0.0
        %1024 = vmatprep.subr.mxu0 0.0
        %1025 = vmatpush1.msra.mxu0 0.0
        %1026 = vmatprep.subr.mxu0 0.0
        %1027 = vmatpush1.msra.mxu0 0.0
        %1028 = vmatprep.subr.mxu0 0.0
        %1029 = vmatpush1.msra.mxu0 0.0
        %1030 = vmatprep.subr.mxu0 0.0
        %1031 = vmatpush1.msra.mxu0 0.0
        %1032 = vmatprep.subr.mxu0 0.0
        %1033 = vmatpush1.msra.mxu0 0.0
        %1034 = vmatprep.subr.mxu0 0.0
        %1035 = vmatpush1.msra.mxu0 0.0
        %1036 = vmatprep.subr.mxu0 0.0
        %1037 = vmatpush1.msra.mxu0 0.0
        %1038 = vmatprep.subr.mxu0 0.0
        %1039 = vmatpush1.msra.mxu0 0.0
        %1040 = vmatprep.mubr.f32.mxu0 0.0
        %1041 = vmatmul.mubr.f32.gmra.mrb[0].mxu0 %v971
        %v1042 = vpop.f32.mrb[0].mxu0
        %v1043 = vadd.f32 0.0, %v1042
        %v1044 = vpop.f32.mrb[0].mxu0
        %1045 = vmatprep.mubr.f32.mxu0 0.0
        %1046 = vmatmul.mubr.f32.gmra.mrb[0].mxu0 %v974
        %v1047 = vpop.f32.mrb[0].mxu0
        %v1048 = vadd.f32 0.0, %v1047
        %v1049 = vpop.f32.mrb[0].mxu0
        %1050 = vdwg.mxu0
        %1051 = vrot.lane.b32.xlu0 %v719, 64
        %v1052 = vpop.permute.xlu0 %1051
        %1053 = vrot.lane.b32.xlu0 %v724, 64
        %v1054 = vpop.permute.xlu0 %1053
        %v1058 = vsel %vm919, %v962, 0
        %v1061 = vsel %vm919, %v963, 0
        %1063 = vmatprep.subr.mxu0 0.0
        %1064 = vmatpush1.msra.mxu0 %v1052
        %1065 = vmatprep.subr.mxu0 0.0
        %1066 = vmatpush1.msra.mxu0 %v1054
        %1067 = vmatprep.subr.mxu0 0.0
        %1068 = vmatpush1.msra.mxu0 0.0
        %1069 = vmatprep.subr.mxu0 0.0
        %1070 = vmatpush1.msra.mxu0 0.0
        %1071 = vmatprep.subr.mxu0 0.0
        %1072 = vmatpush1.msra.mxu0 0.0
        %1073 = vmatprep.subr.mxu0 0.0
        %1074 = vmatpush1.msra.mxu0 0.0
        %1075 = vmatprep.subr.mxu0 0.0
        %1076 = vmatpush1.msra.mxu0 0.0
        %1077 = vmatprep.subr.mxu0 0.0
        %1078 = vmatpush1.msra.mxu0 0.0
        %1079 = vmatprep.subr.mxu0 0.0
        %1080 = vmatpush1.msra.mxu0 0.0
        %1081 = vmatprep.subr.mxu0 0.0
        %1082 = vmatpush1.msra.mxu0 0.0
        %1083 = vmatprep.subr.mxu0 0.0
        %1084 = vmatpush1.msra.mxu0 0.0
        %1085 = vmatprep.subr.mxu0 0.0
        %1086 = vmatpush1.msra.mxu0 0.0
        %1087 = vmatprep.subr.mxu0 0.0
        %1088 = vmatpush1.msra.mxu0 0.0
        %1089 = vmatprep.subr.mxu0 0.0
        %1090 = vmatpush1.msra.mxu0 0.0
        %1091 = vmatprep.subr.mxu0 0.0
        %1092 = vmatpush1.msra.mxu0 0.0
        %1093 = vmatprep.subr.mxu0 0.0
        %1094 = vmatpush1.msra.mxu0 0.0
        %1095 = vmatprep.subr.mxu0 0.0
        %1096 = vmatpush1.msra.mxu0 0.0
        %1097 = vmatprep.subr.mxu0 0.0
        %1098 = vmatpush1.msra.mxu0 0.0
        %1099 = vmatprep.subr.mxu0 0.0
        %1100 = vmatpush1.msra.mxu0 0.0
        %1101 = vmatprep.subr.mxu0 0.0
        %1102 = vmatpush1.msra.mxu0 0.0
        %1103 = vmatprep.subr.mxu0 0.0
        %1104 = vmatpush1.msra.mxu0 0.0
        %1105 = vmatprep.subr.mxu0 0.0
        %1106 = vmatpush1.msra.mxu0 0.0
        %1107 = vmatprep.subr.mxu0 0.0
        %1108 = vmatpush1.msra.mxu0 0.0
        %1109 = vmatprep.subr.mxu0 0.0
        %1110 = vmatpush1.msra.mxu0 0.0
        %1111 = vmatprep.subr.mxu0 0.0
        %1112 = vmatpush1.msra.mxu0 0.0
        %1113 = vmatprep.subr.mxu0 0.0
        %1114 = vmatpush1.msra.mxu0 0.0
        %1115 = vmatprep.subr.mxu0 0.0
        %1116 = vmatpush1.msra.mxu0 0.0
        %1117 = vmatprep.subr.mxu0 0.0
        %1118 = vmatpush1.msra.mxu0 0.0
        %1119 = vmatprep.subr.mxu0 0.0
        %1120 = vmatpush1.msra.mxu0 0.0
        %1121 = vmatprep.subr.mxu0 0.0
        %1122 = vmatpush1.msra.mxu0 0.0
        %1123 = vmatprep.subr.mxu0 0.0
        %1124 = vmatpush1.msra.mxu0 0.0
        %1125 = vmatprep.subr.mxu0 0.0
        %1126 = vmatpush1.msra.mxu0 0.0
        %1127 = vmatprep.mubr.f32.mxu0 0.0
        %1128 = vmatmul.mubr.f32.gmra.mrb[0].mxu0 %v1058
        %v1129 = vpop.f32.mrb[0].mxu0
        %v1130 = vadd.f32 0.0, %v1129
        %v1131 = vpop.f32.mrb[0].mxu0
        %1132 = vmatprep.mubr.f32.mxu0 0.0
        %1133 = vmatmul.mubr.f32.gmra.mrb[0].mxu0 %v1061
        %v1134 = vpop.f32.mrb[0].mxu0
        %v1135 = vadd.f32 0.0, %v1134
        %v1136 = vpop.f32.mrb[0].mxu0
        %1137 = vdwg.mxu0
        %1138 = vrot.lane.b32.xlu0 %v709, 120
        %v1139 = vpop.permute.xlu0 %1138
        %1140 = vrot.lane.b32.xlu0 %v714, 120
        %v1141 = vpop.permute.xlu0 %1140
        %1142 = vrot.lane.b32.xlu0 %v709, 88
        %v1143 = vpop.permute.xlu0 %1142
        %1144 = vrot.lane.b32.xlu0 %v714, 88
        %v1145 = vpop.permute.xlu0 %1144
        %v1146 = vsel %vm738, %v1139, 0
        %v1148 = vsel %vm738, %v1141, 0
        %v1150 = vsel %vm738, %v1143, 0
        %v1152 = vsel %vm738, %v1145, 0
        %1154 = vmatprep.subr.mxu0 0.0
        %1155 = vmatpush1.xpose.msra.mxu0 %v1150
        %1156 = vmatprep.subr.mxu0 0.0
        %1157 = vmatpush1.xpose.msra.mxu0 %v1152
        %1158 = vmatprep.subr.mxu0 0.0
        %1159 = vmatpush1.xpose.msra.mxu0 0.0
        %1160 = vmatprep.subr.mxu0 0.0
        %1161 = vmatpush1.xpose.msra.mxu0 0.0
        %1162 = vmatprep.subr.mxu0 0.0
        %1163 = vmatpush1.xpose.msra.mxu0 0.0
        %1164 = vmatprep.subr.mxu0 0.0
        %1165 = vmatpush1.xpose.msra.mxu0 0.0
        %1166 = vmatprep.subr.mxu0 0.0
        %1167 = vmatpush1.xpose.msra.mxu0 0.0
        %1168 = vmatprep.subr.mxu0 0.0
        %1169 = vmatpush1.xpose.msra.mxu0 0.0
        %1170 = vmatprep.subr.mxu0 0.0
        %1171 = vmatpush1.xpose.msra.mxu0 0.0
        %1172 = vmatprep.subr.mxu0 0.0
        %1173 = vmatpush1.xpose.msra.mxu0 0.0
        %1174 = vmatprep.subr.mxu0 0.0
        %1175 = vmatpush1.xpose.msra.mxu0 0.0
        %1176 = vmatprep.subr.mxu0 0.0
        %1177 = vmatpush1.xpose.msra.mxu0 0.0
        %1178 = vmatprep.subr.mxu0 0.0
        %1179 = vmatpush1.xpose.msra.mxu0 0.0
        %1180 = vmatprep.subr.mxu0 0.0
        %1181 = vmatpush1.xpose.msra.mxu0 0.0
        %1182 = vmatprep.subr.mxu0 0.0
        %1183 = vmatpush1.xpose.msra.mxu0 0.0
        %1184 = vmatprep.subr.mxu0 0.0
        %1185 = vmatpush1.xpose.msra.mxu0 0.0
        %1186 = vmatprep.subr.mxu0 0.0
        %1187 = vmatpush1.xpose.msra.mxu0 0.0
        %1188 = vmatprep.subr.mxu0 0.0
        %1189 = vmatpush1.xpose.msra.mxu0 0.0
        %1190 = vmatprep.subr.mxu0 0.0
        %1191 = vmatpush1.xpose.msra.mxu0 0.0
        %1192 = vmatprep.subr.mxu0 0.0
        %1193 = vmatpush1.xpose.msra.mxu0 0.0
        %1194 = vmatprep.subr.mxu0 0.0
        %1195 = vmatpush1.xpose.msra.mxu0 0.0
        %1196 = vmatprep.subr.mxu0 0.0
        %1197 = vmatpush1.xpose.msra.mxu0 0.0
        %1198 = vmatprep.subr.mxu0 0.0
        %1199 = vmatpush1.xpose.msra.mxu0 0.0
        %1200 = vmatprep.subr.mxu0 0.0
        %1201 = vmatpush1.xpose.msra.mxu0 0.0
        %1202 = vmatprep.subr.mxu0 0.0
        %1203 = vmatpush1.xpose.msra.mxu0 0.0
        %1204 = vmatprep.subr.mxu0 0.0
        %1205 = vmatpush1.xpose.msra.mxu0 0.0
        %1206 = vmatprep.subr.mxu0 0.0
        %1207 = vmatpush1.xpose.msra.mxu0 0.0
        %1208 = vmatprep.subr.mxu0 0.0
        %1209 = vmatpush1.xpose.msra.mxu0 0.0
        %1210 = vmatprep.subr.mxu0 0.0
        %1211 = vmatpush1.xpose.msra.mxu0 0.0
        %1212 = vmatprep.subr.mxu0 0.0
        %1213 = vmatpush1.xpose.msra.mxu0 0.0
        %1214 = vmatprep.subr.mxu0 0.0
        %1215 = vmatpush1.xpose.msra.mxu0 0.0
        %1216 = vmatprep.subr.mxu0 0.0
        %1217 = vmatpush1.xpose.msra.mxu0 0.0
        %1218 = vmatprep.mubr.f32.mxu0 0.0
        %1219 = vmatmul.mubr.f32.gmra.mrb[0].mxu0 %v1146
        %v1220 = vpop.f32.mrb[0].mxu0
        %v1221 = vadd.f32 0.0, %v1220
        %v1222 = vpop.f32.mrb[0].mxu0
        %1223 = vmatprep.mubr.f32.mxu0 0.0
        %1224 = vmatmul.mubr.f32.gmra.mrb[0].mxu0 %v1148
        %v1225 = vpop.f32.mrb[0].mxu0
        %v1226 = vadd.f32 0.0, %v1225
        %v1227 = vpop.f32.mrb[0].mxu0
        %1228 = vdwg.mxu0
        %1229 = vrot.lane.b32.xlu0 %v719, 120
        %v1230 = vpop.permute.xlu0 %1229
        %1231 = vrot.lane.b32.xlu0 %v724, 120
        %v1232 = vpop.permute.xlu0 %1231
        %1233 = vrot.lane.b32.xlu0 %v719, 88
        %v1234 = vpop.permute.xlu0 %1233
        %1235 = vrot.lane.b32.xlu0 %v724, 88
        %v1236 = vpop.permute.xlu0 %1235
        %v1237 = vsel %vm738, %v1230, 0
        %v1239 = vsel %vm738, %v1232, 0
        %v1241 = vsel %vm738, %v1234, 0
        %v1243 = vsel %vm738, %v1236, 0
        %1245 = vmatprep.subr.mxu0 0.0
        %1246 = vmatpush1.xpose.msra.mxu0 %v1241
        %1247 = vmatprep.subr.mxu0 0.0
        %1248 = vmatpush1.xpose.msra.mxu0 %v1243
        %1249 = vmatprep.subr.mxu0 0.0
        %1250 = vmatpush1.xpose.msra.mxu0 0.0
        %1251 = vmatprep.subr.mxu0 0.0
        %1252 = vmatpush1.xpose.msra.mxu0 0.0
        %1253 = vmatprep.subr.mxu0 0.0
        %1254 = vmatpush1.xpose.msra.mxu0 0.0
        %1255 = vmatprep.subr.mxu0 0.0
        %1256 = vmatpush1.xpose.msra.mxu0 0.0
        %1257 = vmatprep.subr.mxu0 0.0
        %1258 = vmatpush1.xpose.msra.mxu0 0.0
        %1259 = vmatprep.subr.mxu0 0.0
        %1260 = vmatpush1.xpose.msra.mxu0 0.0
        %1261 = vmatprep.subr.mxu0 0.0
        %1262 = vmatpush1.xpose.msra.mxu0 0.0
        %1263 = vmatprep.subr.mxu0 0.0
        %1264 = vmatpush1.xpose.msra.mxu0 0.0
        %1265 = vmatprep.subr.mxu0 0.0
        %1266 = vmatpush1.xpose.msra.mxu0 0.0
        %1267 = vmatprep.subr.mxu0 0.0
        %1268 = vmatpush1.xpose.msra.mxu0 0.0
        %1269 = vmatprep.subr.mxu0 0.0
        %1270 = vmatpush1.xpose.msra.mxu0 0.0
        %1271 = vmatprep.subr.mxu0 0.0
        %1272 = vmatpush1.xpose.msra.mxu0 0.0
        %1273 = vmatprep.subr.mxu0 0.0
        %1274 = vmatpush1.xpose.msra.mxu0 0.0
        %1275 = vmatprep.subr.mxu0 0.0
        %1276 = vmatpush1.xpose.msra.mxu0 0.0
        %1277 = vmatprep.subr.mxu0 0.0
        %1278 = vmatpush1.xpose.msra.mxu0 0.0
        %1279 = vmatprep.subr.mxu0 0.0
        %1280 = vmatpush1.xpose.msra.mxu0 0.0
        %1281 = vmatprep.subr.mxu0 0.0
        %1282 = vmatpush1.xpose.msra.mxu0 0.0
        %1283 = vmatprep.subr.mxu0 0.0
        %1284 = vmatpush1.xpose.msra.mxu0 0.0
        %1285 = vmatprep.subr.mxu0 0.0
        %1286 = vmatpush1.xpose.msra.mxu0 0.0
        %1287 = vmatprep.subr.mxu0 0.0
        %1288 = vmatpush1.xpose.msra.mxu0 0.0
        %1289 = vmatprep.subr.mxu0 0.0
        %1290 = vmatpush1.xpose.msra.mxu0 0.0
        %1291 = vmatprep.subr.mxu0 0.0
        %1292 = vmatpush1.xpose.msra.mxu0 0.0
        %1293 = vmatprep.subr.mxu0 0.0
        %1294 = vmatpush1.xpose.msra.mxu0 0.0
        %1295 = vmatprep.subr.mxu0 0.0
        %1296 = vmatpush1.xpose.msra.mxu0 0.0
        %1297 = vmatprep.subr.mxu0 0.0
        %1298 = vmatpush1.xpose.msra.mxu0 0.0
        %1299 = vmatprep.subr.mxu0 0.0
        %1300 = vmatpush1.xpose.msra.mxu0 0.0
        %1301 = vmatprep.subr.mxu0 0.0
        %1302 = vmatpush1.xpose.msra.mxu0 0.0
        %1303 = vmatprep.subr.mxu0 0.0
        %1304 = vmatpush1.xpose.msra.mxu0 0.0
        %1305 = vmatprep.subr.mxu0 0.0
        %1306 = vmatpush1.xpose.msra.mxu0 0.0
        %1307 = vmatprep.subr.mxu0 0.0
        %1308 = vmatpush1.xpose.msra.mxu0 0.0
        %1309 = vmatprep.mubr.f32.mxu0 0.0
        %1310 = vmatmul.mubr.f32.gmra.mrb[0].mxu0 %v1237
        %v1311 = vpop.f32.mrb[0].mxu0
        %v1312 = vadd.f32 0.0, %v1311
        %v1313 = vpop.f32.mrb[0].mxu0
        %1314 = vmatprep.mubr.f32.mxu0 0.0
        %1315 = vmatmul.mubr.f32.gmra.mrb[0].mxu0 %v1239
        %v1316 = vpop.f32.mrb[0].mxu0
        %v1317 = vadd.f32 0.0, %v1316
        %v1318 = vpop.f32.mrb[0].mxu0
        %1319 = vdwg.mxu0
        %v1320 = vmul.f32 %v1221, 0.35355338
        %v1321 = vmul.f32 %v1226, 0.35355338
        %v1322 = vmul.f32 %v1312, 0.35355338
        %v1323 = vmul.f32 %v1317, 0.35355338
        %v1324 = vadd.f32 %v1320, %v549
        %v1325 = vadd.f32 %v1321, %v550
        %v1326 = vadd.f32 %v1322, %v549
        %v1327 = vadd.f32 %v1323, %v550
        %v1328 = vsel %vm919, %v1324, -inf
        %1329 = vmax.xlane.f32.xlu0 %v1328
        %v1330 = vpop.xlane.xlu0 %1329
        %v1331 = vsel %vm919, %v1325, -inf
        %1332 = vmax.xlane.f32.xlu0 %v1331
        %v1333 = vpop.xlane.xlu0 %1332
        %v1334 = vsel %vm919, %v1326, -inf
        %1335 = vmax.xlane.f32.xlu0 %v1334
        %v1336 = vpop.xlane.xlu0 %1335
        %v1337 = vsel %vm919, %v1327, -inf
        %1338 = vmax.xlane.f32.xlu0 %v1337
        %v1339 = vpop.xlane.xlu0 %1338
        %v1340 = vsub.f32 %v1324, %v1330
        %v1341 = vsub.f32 %v1325, %v1333
        %v1342 = vsub.f32 %v1326, %v1336
        %v1343 = vsub.f32 %v1327, %v1339
        %v1344 = vmul.f32 %v1340, 1.442695
        %v1345 = vpow.pop %v1344
        %v1346 = vmul.f32 %v1341, 1.442695
        %v1347 = vpow.pop %v1346
        %v1348 = vmul.f32 %v1342, 1.442695
        %v1349 = vpow.pop %v1348
        %v1350 = vmul.f32 %v1343, 1.442695
        %v1351 = vpow.pop %v1350
        %v1352 = vsel %vm919, %v1345, 0.0
        %1353 = vadd.xlane.f32.xlu0 %v1352
        %v1354 = vpop.xlane.xlu0 %1353
        %v1355 = vsel %vm919, %v1347, 0.0
        %1356 = vadd.xlane.f32.xlu0 %v1355
        %v1357 = vpop.xlane.xlu0 %1356
        %v1358 = vsel %vm919, %v1349, 0.0
        %1359 = vadd.xlane.f32.xlu0 %v1358
        %v1360 = vpop.xlane.xlu0 %1359
        %v1361 = vsel %vm919, %v1351, 0.0
        %1362 = vadd.xlane.f32.xlu0 %v1361
        %v1363 = vpop.xlane.xlu0 %1362
        %v1364 = vrcp.pop %v1354
        %v1365 = vrcp.pop %v1357
        %v1366 = vrcp.pop %v1360
        %v1367 = vrcp.pop %v1363
        %v1368 = vmul.f32 %v1345, %v1364
        %v1369 = vmul.f32 %v1347, %v1365
        %v1370 = vmul.f32 %v1349, %v1366
        %v1371 = vmul.f32 %v1351, %v1367
        %1372 = vrot.lane.b32.xlu0 %v709, 56
        %v1373 = vpop.permute.xlu0 %1372
        %1374 = vrot.lane.b32.xlu0 %v714, 56
        %v1375 = vpop.permute.xlu0 %1374
        %v1379 = vsel %vm919, %v1368, 0
        %v1382 = vsel %vm919, %v1369, 0
        %1384 = vmatprep.subr.mxu0 0.0
        %1385 = vmatpush1.msra.mxu0 %v1373
        %1386 = vmatprep.subr.mxu0 0.0
        %1387 = vmatpush1.msra.mxu0 %v1375
        %1388 = vmatprep.subr.mxu0 0.0
        %1389 = vmatpush1.msra.mxu0 0.0
        %1390 = vmatprep.subr.mxu0 0.0
        %1391 = vmatpush1.msra.mxu0 0.0
        %1392 = vmatprep.subr.mxu0 0.0
        %1393 = vmatpush1.msra.mxu0 0.0
        %1394 = vmatprep.subr.mxu0 0.0
        %1395 = vmatpush1.msra.mxu0 0.0
        %1396 = vmatprep.subr.mxu0 0.0
        %1397 = vmatpush1.msra.mxu0 0.0
        %1398 = vmatprep.subr.mxu0 0.0
        %1399 = vmatpush1.msra.mxu0 0.0
        %1400 = vmatprep.subr.mxu0 0.0
        %1401 = vmatpush1.msra.mxu0 0.0
        %1402 = vmatprep.subr.mxu0 0.0
        %1403 = vmatpush1.msra.mxu0 0.0
        %1404 = vmatprep.subr.mxu0 0.0
        %1405 = vmatpush1.msra.mxu0 0.0
        %1406 = vmatprep.subr.mxu0 0.0
        %1407 = vmatpush1.msra.mxu0 0.0
        %1408 = vmatprep.subr.mxu0 0.0
        %1409 = vmatpush1.msra.mxu0 0.0
        %1410 = vmatprep.subr.mxu0 0.0
        %1411 = vmatpush1.msra.mxu0 0.0
        %1412 = vmatprep.subr.mxu0 0.0
        %1413 = vmatpush1.msra.mxu0 0.0
        %1414 = vmatprep.subr.mxu0 0.0
        %1415 = vmatpush1.msra.mxu0 0.0
        %1416 = vmatprep.subr.mxu0 0.0
        %1417 = vmatpush1.msra.mxu0 0.0
        %1418 = vmatprep.subr.mxu0 0.0
        %1419 = vmatpush1.msra.mxu0 0.0
        %1420 = vmatprep.subr.mxu0 0.0
        %1421 = vmatpush1.msra.mxu0 0.0
        %1422 = vmatprep.subr.mxu0 0.0
        %1423 = vmatpush1.msra.mxu0 0.0
        %1424 = vmatprep.subr.mxu0 0.0
        %1425 = vmatpush1.msra.mxu0 0.0
        %1426 = vmatprep.subr.mxu0 0.0
        %1427 = vmatpush1.msra.mxu0 0.0
        %1428 = vmatprep.subr.mxu0 0.0
        %1429 = vmatpush1.msra.mxu0 0.0
        %1430 = vmatprep.subr.mxu0 0.0
        %1431 = vmatpush1.msra.mxu0 0.0
        %1432 = vmatprep.subr.mxu0 0.0
        %1433 = vmatpush1.msra.mxu0 0.0
        %1434 = vmatprep.subr.mxu0 0.0
        %1435 = vmatpush1.msra.mxu0 0.0
        %1436 = vmatprep.subr.mxu0 0.0
        %1437 = vmatpush1.msra.mxu0 0.0
        %1438 = vmatprep.subr.mxu0 0.0
        %1439 = vmatpush1.msra.mxu0 0.0
        %1440 = vmatprep.subr.mxu0 0.0
        %1441 = vmatpush1.msra.mxu0 0.0
        %1442 = vmatprep.subr.mxu0 0.0
        %1443 = vmatpush1.msra.mxu0 0.0
        %1444 = vmatprep.subr.mxu0 0.0
        %1445 = vmatpush1.msra.mxu0 0.0
        %1446 = vmatprep.subr.mxu0 0.0
        %1447 = vmatpush1.msra.mxu0 0.0
        %1448 = vmatprep.mubr.f32.mxu0 0.0
        %1449 = vmatmul.mubr.f32.gmra.mrb[0].mxu0 %v1379
        %v1450 = vpop.f32.mrb[0].mxu0
        %v1451 = vadd.f32 0.0, %v1450
        %v1452 = vpop.f32.mrb[0].mxu0
        %1453 = vmatprep.mubr.f32.mxu0 0.0
        %1454 = vmatmul.mubr.f32.gmra.mrb[0].mxu0 %v1382
        %v1455 = vpop.f32.mrb[0].mxu0
        %v1456 = vadd.f32 0.0, %v1455
        %v1457 = vpop.f32.mrb[0].mxu0
        %1458 = vdwg.mxu0
        %1459 = vrot.lane.b32.xlu0 %v719, 56
        %v1460 = vpop.permute.xlu0 %1459
        %1461 = vrot.lane.b32.xlu0 %v724, 56
        %v1462 = vpop.permute.xlu0 %1461
        %v1466 = vsel %vm919, %v1370, 0
        %v1469 = vsel %vm919, %v1371, 0
        %1471 = vmatprep.subr.mxu0 0.0
        %1472 = vmatpush1.msra.mxu0 %v1460
        %1473 = vmatprep.subr.mxu0 0.0
        %1474 = vmatpush1.msra.mxu0 %v1462
        %1475 = vmatprep.subr.mxu0 0.0
        %1476 = vmatpush1.msra.mxu0 0.0
        %1477 = vmatprep.subr.mxu0 0.0
        %1478 = vmatpush1.msra.mxu0 0.0
        %1479 = vmatprep.subr.mxu0 0.0
        %1480 = vmatpush1.msra.mxu0 0.0
        %1481 = vmatprep.subr.mxu0 0.0
        %1482 = vmatpush1.msra.mxu0 0.0
        %1483 = vmatprep.subr.mxu0 0.0
        %1484 = vmatpush1.msra.mxu0 0.0
        %1485 = vmatprep.subr.mxu0 0.0
        %1486 = vmatpush1.msra.mxu0 0.0
        %1487 = vmatprep.subr.mxu0 0.0
        %1488 = vmatpush1.msra.mxu0 0.0
        %1489 = vmatprep.subr.mxu0 0.0
        %1490 = vmatpush1.msra.mxu0 0.0
        %1491 = vmatprep.subr.mxu0 0.0
        %1492 = vmatpush1.msra.mxu0 0.0
        %1493 = vmatprep.subr.mxu0 0.0
        %1494 = vmatpush1.msra.mxu0 0.0
        %1495 = vmatprep.subr.mxu0 0.0
        %1496 = vmatpush1.msra.mxu0 0.0
        %1497 = vmatprep.subr.mxu0 0.0
        %1498 = vmatpush1.msra.mxu0 0.0
        %1499 = vmatprep.subr.mxu0 0.0
        %1500 = vmatpush1.msra.mxu0 0.0
        %1501 = vmatprep.subr.mxu0 0.0
        %1502 = vmatpush1.msra.mxu0 0.0
        %1503 = vmatprep.subr.mxu0 0.0
        %1504 = vmatpush1.msra.mxu0 0.0
        %1505 = vmatprep.subr.mxu0 0.0
        %1506 = vmatpush1.msra.mxu0 0.0
        %1507 = vmatprep.subr.mxu0 0.0
        %1508 = vmatpush1.msra.mxu0 0.0
        %1509 = vmatprep.subr.mxu0 0.0
        %1510 = vmatpush1.msra.mxu0 0.0
        %1511 = vmatprep.subr.mxu0 0.0
        %1512 = vmatpush1.msra.mxu0 0.0
        %1513 = vmatprep.subr.mxu0 0.0
        %1514 = vmatpush1.msra.mxu0 0.0
        %1515 = vmatprep.subr.mxu0 0.0
        %1516 = vmatpush1.msra.mxu0 0.0
        %1517 = vmatprep.subr.mxu0 0.0
        %1518 = vmatpush1.msra.mxu0 0.0
        %1519 = vmatprep.subr.mxu0 0.0
        %1520 = vmatpush1.msra.mxu0 0.0
        %1521 = vmatprep.subr.mxu0 0.0
        %1522 = vmatpush1.msra.mxu0 0.0
        %1523 = vmatprep.subr.mxu0 0.0
        %1524 = vmatpush1.msra.mxu0 0.0
        %1525 = vmatprep.subr.mxu0 0.0
        %1526 = vmatpush1.msra.mxu0 0.0
        %1527 = vmatprep.subr.mxu0 0.0
        %1528 = vmatpush1.msra.mxu0 0.0
        %1529 = vmatprep.subr.mxu0 0.0
        %1530 = vmatpush1.msra.mxu0 0.0
        %1531 = vmatprep.subr.mxu0 0.0
        %1532 = vmatpush1.msra.mxu0 0.0
        %1533 = vmatprep.subr.mxu0 0.0
        %1534 = vmatpush1.msra.mxu0 0.0
        %1535 = vmatprep.mubr.f32.mxu0 0.0
        %1536 = vmatmul.mubr.f32.gmra.mrb[0].mxu0 %v1466
        %v1537 = vpop.f32.mrb[0].mxu0
        %v1538 = vadd.f32 0.0, %v1537
        %v1539 = vpop.f32.mrb[0].mxu0
        %1540 = vmatprep.mubr.f32.mxu0 0.0
        %1541 = vmatmul.mubr.f32.gmra.mrb[0].mxu0 %v1469
        %v1542 = vpop.f32.mrb[0].mxu0
        %v1543 = vadd.f32 0.0, %v1542
        %v1544 = vpop.f32.mrb[0].mxu0
        %1545 = vdwg.mxu0
        %v1547 = vsel %vm738, %v1451, 0
        %v1550 = vsel %vm738, %v1456, 0
        %v1553 = vsel %vm738, %v1538, 0
        %v1556 = vsel %vm738, %v1543, 0
        %1558 = vmatprep.subr.mxu0 0.0
        %1559 = vmatpush1.msra.mxu0 %v728
        %1560 = vmatprep.subr.mxu0 0.0
        %1561 = vmatpush1.msra.mxu0 0.0
        %1562 = vmatprep.subr.mxu0 0.0
        %1563 = vmatpush1.msra.mxu0 0.0
        %1564 = vmatprep.subr.mxu0 0.0
        %1565 = vmatpush1.msra.mxu0 0.0
        %1566 = vmatprep.subr.mxu0 0.0
        %1567 = vmatpush1.msra.mxu0 0.0
        %1568 = vmatprep.subr.mxu0 0.0
        %1569 = vmatpush1.msra.mxu0 0.0
        %1570 = vmatprep.subr.mxu0 0.0
        %1571 = vmatpush1.msra.mxu0 0.0
        %1572 = vmatprep.subr.mxu0 0.0
        %1573 = vmatpush1.msra.mxu0 0.0
        %1574 = vmatprep.subr.mxu0 0.0
        %1575 = vmatpush1.msra.mxu0 0.0
        %1576 = vmatprep.subr.mxu0 0.0
        %1577 = vmatpush1.msra.mxu0 0.0
        %1578 = vmatprep.subr.mxu0 0.0
        %1579 = vmatpush1.msra.mxu0 0.0
        %1580 = vmatprep.subr.mxu0 0.0
        %1581 = vmatpush1.msra.mxu0 0.0
        %1582 = vmatprep.subr.mxu0 0.0
        %1583 = vmatpush1.msra.mxu0 0.0
        %1584 = vmatprep.subr.mxu0 0.0
        %1585 = vmatpush1.msra.mxu0 0.0
        %1586 = vmatprep.subr.mxu0 0.0
        %1587 = vmatpush1.msra.mxu0 0.0
        %1588 = vmatprep.subr.mxu0 0.0
        %1589 = vmatpush1.msra.mxu0 0.0
        %1590 = vmatprep.subr.mxu0 0.0
        %1591 = vmatpush1.msra.mxu0 0.0
        %1592 = vmatprep.subr.mxu0 0.0
        %1593 = vmatpush1.msra.mxu0 0.0
        %1594 = vmatprep.subr.mxu0 0.0
        %1595 = vmatpush1.msra.mxu0 0.0
        %1596 = vmatprep.subr.mxu0 0.0
        %1597 = vmatpush1.msra.mxu0 0.0
        %1598 = vmatprep.subr.mxu0 0.0
        %1599 = vmatpush1.msra.mxu0 0.0
        %1600 = vmatprep.subr.mxu0 0.0
        %1601 = vmatpush1.msra.mxu0 0.0
        %1602 = vmatprep.subr.mxu0 0.0
        %1603 = vmatpush1.msra.mxu0 0.0
        %1604 = vmatprep.subr.mxu0 0.0
        %1605 = vmatpush1.msra.mxu0 0.0
        %1606 = vmatprep.subr.mxu0 0.0
        %1607 = vmatpush1.msra.mxu0 0.0
        %1608 = vmatprep.subr.mxu0 0.0
        %1609 = vmatpush1.msra.mxu0 0.0
        %1610 = vmatprep.subr.mxu0 0.0
        %1611 = vmatpush1.msra.mxu0 0.0
        %1612 = vmatprep.subr.mxu0 0.0
        %1613 = vmatpush1.msra.mxu0 0.0
        %1614 = vmatprep.subr.mxu0 0.0
        %1615 = vmatpush1.msra.mxu0 0.0
        %1616 = vmatprep.subr.mxu0 0.0
        %1617 = vmatpush1.msra.mxu0 0.0
        %1618 = vmatprep.subr.mxu0 0.0
        %1619 = vmatpush1.msra.mxu0 0.0
        %1620 = vmatprep.subr.mxu0 0.0
        %1621 = vmatpush1.msra.mxu0 0.0
        %1622 = vmatprep.mubr.f32.mxu0 0.0
        %1623 = vmatmul.mubr.f32.gmra.mrb[0].mxu0 %v1547
        %v1624 = vpop.f32.mrb[0].mxu0
        %v1625 = vadd.f32 0.0, %v1624
        %v1626 = vpop.f32.mrb[0].mxu0
        %1627 = vmatprep.mubr.f32.mxu0 0.0
        %1628 = vmatmul.mubr.f32.gmra.mrb[0].mxu0 %v1550
        %v1629 = vpop.f32.mrb[0].mxu0
        %v1630 = vadd.f32 0.0, %v1629
        %v1631 = vpop.f32.mrb[0].mxu0
        %1632 = vmatprep.mubr.f32.mxu0 0.0
        %1633 = vmatmul.mubr.f32.gmra.mrb[0].mxu0 %v1553
        %v1634 = vpop.f32.mrb[0].mxu0
        %v1635 = vadd.f32 0.0, %v1634
        %v1636 = vpop.f32.mrb[0].mxu0
        %1637 = vmatprep.mubr.f32.mxu0 0.0
        %1638 = vmatmul.mubr.f32.gmra.mrb[0].mxu0 %v1556
        %v1639 = vpop.f32.mrb[0].mxu0
        %v1640 = vadd.f32 0.0, %v1639
        %v1641 = vpop.f32.mrb[0].mxu0
        %1642 = vdwg.mxu0
        %v1644 = vsel %vm738, %v1043, 0
        %v1647 = vsel %vm738, %v1048, 0
        %v1650 = vsel %vm738, %v1130, 0
        %v1653 = vsel %vm738, %v1135, 0
        %1655 = vmatprep.subr.mxu0 0.0
        %1656 = vmatpush1.msra.mxu0 %v727
        %1657 = vmatprep.subr.mxu0 0.0
        %1658 = vmatpush1.msra.mxu0 0.0
        %1659 = vmatprep.subr.mxu0 0.0
        %1660 = vmatpush1.msra.mxu0 0.0
        %1661 = vmatprep.subr.mxu0 0.0
        %1662 = vmatpush1.msra.mxu0 0.0
        %1663 = vmatprep.subr.mxu0 0.0
        %1664 = vmatpush1.msra.mxu0 0.0
        %1665 = vmatprep.subr.mxu0 0.0
        %1666 = vmatpush1.msra.mxu0 0.0
        %1667 = vmatprep.subr.mxu0 0.0
        %1668 = vmatpush1.msra.mxu0 0.0
        %1669 = vmatprep.subr.mxu0 0.0
        %1670 = vmatpush1.msra.mxu0 0.0
        %1671 = vmatprep.subr.mxu0 0.0
        %1672 = vmatpush1.msra.mxu0 0.0
        %1673 = vmatprep.subr.mxu0 0.0
        %1674 = vmatpush1.msra.mxu0 0.0
        %1675 = vmatprep.subr.mxu0 0.0
        %1676 = vmatpush1.msra.mxu0 0.0
        %1677 = vmatprep.subr.mxu0 0.0
        %1678 = vmatpush1.msra.mxu0 0.0
        %1679 = vmatprep.subr.mxu0 0.0
        %1680 = vmatpush1.msra.mxu0 0.0
        %1681 = vmatprep.subr.mxu0 0.0
        %1682 = vmatpush1.msra.mxu0 0.0
        %1683 = vmatprep.subr.mxu0 0.0
        %1684 = vmatpush1.msra.mxu0 0.0
        %1685 = vmatprep.subr.mxu0 0.0
        %1686 = vmatpush1.msra.mxu0 0.0
        %1687 = vmatprep.subr.mxu0 0.0
        %1688 = vmatpush1.msra.mxu0 0.0
        %1689 = vmatprep.subr.mxu0 0.0
        %1690 = vmatpush1.msra.mxu0 0.0
        %1691 = vmatprep.subr.mxu0 0.0
        %1692 = vmatpush1.msra.mxu0 0.0
        %1693 = vmatprep.subr.mxu0 0.0
        %1694 = vmatpush1.msra.mxu0 0.0
        %1695 = vmatprep.subr.mxu0 0.0
        %1696 = vmatpush1.msra.mxu0 0.0
        %1697 = vmatprep.subr.mxu0 0.0
        %1698 = vmatpush1.msra.mxu0 0.0
        %1699 = vmatprep.subr.mxu0 0.0
        %1700 = vmatpush1.msra.mxu0 0.0
        %1701 = vmatprep.subr.mxu0 0.0
        %1702 = vmatpush1.msra.mxu0 0.0
        %1703 = vmatprep.subr.mxu0 0.0
        %1704 = vmatpush1.msra.mxu0 0.0
        %1705 = vmatprep.subr.mxu0 0.0
        %1706 = vmatpush1.msra.mxu0 0.0
        %1707 = vmatprep.subr.mxu0 0.0
        %1708 = vmatpush1.msra.mxu0 0.0
        %1709 = vmatprep.subr.mxu0 0.0
        %1710 = vmatpush1.msra.mxu0 0.0
        %1711 = vmatprep.subr.mxu0 0.0
        %1712 = vmatpush1.msra.mxu0 0.0
        %1713 = vmatprep.subr.mxu0 0.0
        %1714 = vmatpush1.msra.mxu0 0.0
        %1715 = vmatprep.subr.mxu0 0.0
        %1716 = vmatpush1.msra.mxu0 0.0
        %1717 = vmatprep.subr.mxu0 0.0
        %1718 = vmatpush1.msra.mxu0 0.0
        %1719 = vmatprep.mubr.f32.mxu0 0.0
        %1720 = vmatmul.mubr.f32.gmra.mrb[0].mxu0 %v1644
        %v1721 = vpop.f32.mrb[0].mxu0
        %v1722 = vadd.f32 %v1625, %v1721
        %v1723 = vpop.f32.mrb[0].mxu0
        %1724 = vmatprep.mubr.f32.mxu0 0.0
        %1725 = vmatmul.mubr.f32.gmra.mrb[0].mxu0 %v1647
        %v1726 = vpop.f32.mrb[0].mxu0
        %v1727 = vadd.f32 %v1630, %v1726
        %v1728 = vpop.f32.mrb[0].mxu0
        %1729 = vmatprep.mubr.f32.mxu0 0.0
        %1730 = vmatmul.mubr.f32.gmra.mrb[0].mxu0 %v1650
        %v1731 = vpop.f32.mrb[0].mxu0
        %v1732 = vadd.f32 %v1635, %v1731
        %v1733 = vpop.f32.mrb[0].mxu0
        %1734 = vmatprep.mubr.f32.mxu0 0.0
        %1735 = vmatmul.mubr.f32.gmra.mrb[0].mxu0 %v1653
        %v1736 = vpop.f32.mrb[0].mxu0
        %v1737 = vadd.f32 %v1640, %v1736
        %v1738 = vpop.f32.mrb[0].mxu0
        %1739 = vdwg.mxu0
        %1740 = vrot.lane.b32.xlu0 %v709, 112
        %v1741 = vpop.permute.xlu0 %1740
        %1742 = vrot.lane.b32.xlu0 %v714, 112
        %v1743 = vpop.permute.xlu0 %1742
        %1744 = vrot.lane.b32.xlu0 %v709, 80
        %v1745 = vpop.permute.xlu0 %1744
        %1746 = vrot.lane.b32.xlu0 %v714, 80
        %v1747 = vpop.permute.xlu0 %1746
        %v1748 = vsel %vm738, %v1741, 0
        %v1750 = vsel %vm738, %v1743, 0
        %v1752 = vsel %vm738, %v1745, 0
        %v1754 = vsel %vm738, %v1747, 0
        %1756 = vmatprep.subr.mxu0 0.0
        %1757 = vmatpush1.xpose.msra.mxu0 %v1752
        %1758 = vmatprep.subr.mxu0 0.0
        %1759 = vmatpush1.xpose.msra.mxu0 %v1754
        %1760 = vmatprep.subr.mxu0 0.0
        %1761 = vmatpush1.xpose.msra.mxu0 0.0
        %1762 = vmatprep.subr.mxu0 0.0
        %1763 = vmatpush1.xpose.msra.mxu0 0.0
        %1764 = vmatprep.subr.mxu0 0.0
        %1765 = vmatpush1.xpose.msra.mxu0 0.0
        %1766 = vmatprep.subr.mxu0 0.0
        %1767 = vmatpush1.xpose.msra.mxu0 0.0
        %1768 = vmatprep.subr.mxu0 0.0
        %1769 = vmatpush1.xpose.msra.mxu0 0.0
        %1770 = vmatprep.subr.mxu0 0.0
        %1771 = vmatpush1.xpose.msra.mxu0 0.0
        %1772 = vmatprep.subr.mxu0 0.0
        %1773 = vmatpush1.xpose.msra.mxu0 0.0
        %1774 = vmatprep.subr.mxu0 0.0
        %1775 = vmatpush1.xpose.msra.mxu0 0.0
        %1776 = vmatprep.subr.mxu0 0.0
        %1777 = vmatpush1.xpose.msra.mxu0 0.0
        %1778 = vmatprep.subr.mxu0 0.0
        %1779 = vmatpush1.xpose.msra.mxu0 0.0
        %1780 = vmatprep.subr.mxu0 0.0
        %1781 = vmatpush1.xpose.msra.mxu0 0.0
        %1782 = vmatprep.subr.mxu0 0.0
        %1783 = vmatpush1.xpose.msra.mxu0 0.0
        %1784 = vmatprep.subr.mxu0 0.0
        %1785 = vmatpush1.xpose.msra.mxu0 0.0
        %1786 = vmatprep.subr.mxu0 0.0
        %1787 = vmatpush1.xpose.msra.mxu0 0.0
        %1788 = vmatprep.subr.mxu0 0.0
        %1789 = vmatpush1.xpose.msra.mxu0 0.0
        %1790 = vmatprep.subr.mxu0 0.0
        %1791 = vmatpush1.xpose.msra.mxu0 0.0
        %1792 = vmatprep.subr.mxu0 0.0
        %1793 = vmatpush1.xpose.msra.mxu0 0.0
        %1794 = vmatprep.subr.mxu0 0.0
        %1795 = vmatpush1.xpose.msra.mxu0 0.0
        %1796 = vmatprep.subr.mxu0 0.0
        %1797 = vmatpush1.xpose.msra.mxu0 0.0
        %1798 = vmatprep.subr.mxu0 0.0
        %1799 = vmatpush1.xpose.msra.mxu0 0.0
        %1800 = vmatprep.subr.mxu0 0.0
        %1801 = vmatpush1.xpose.msra.mxu0 0.0
        %1802 = vmatprep.subr.mxu0 0.0
        %1803 = vmatpush1.xpose.msra.mxu0 0.0
        %1804 = vmatprep.subr.mxu0 0.0
        %1805 = vmatpush1.xpose.msra.mxu0 0.0
        %1806 = vmatprep.subr.mxu0 0.0
        %1807 = vmatpush1.xpose.msra.mxu0 0.0
        %1808 = vmatprep.subr.mxu0 0.0
        %1809 = vmatpush1.xpose.msra.mxu0 0.0
        %1810 = vmatprep.subr.mxu0 0.0
        %1811 = vmatpush1.xpose.msra.mxu0 0.0
        %1812 = vmatprep.subr.mxu0 0.0
        %1813 = vmatpush1.xpose.msra.mxu0 0.0
        %1814 = vmatprep.subr.mxu0 0.0
        %1815 = vmatpush1.xpose.msra.mxu0 0.0
        %1816 = vmatprep.subr.mxu0 0.0
        %1817 = vmatpush1.xpose.msra.mxu0 0.0
        %1818 = vmatprep.subr.mxu0 0.0
        %1819 = vmatpush1.xpose.msra.mxu0 0.0
        %1820 = vmatprep.mubr.f32.mxu0 0.0
        %1821 = vmatmul.mubr.f32.gmra.mrb[0].mxu0 %v1748
        %v1822 = vpop.f32.mrb[0].mxu0
        %v1823 = vadd.f32 0.0, %v1822
        %v1824 = vpop.f32.mrb[0].mxu0
        %1825 = vmatprep.mubr.f32.mxu0 0.0
        %1826 = vmatmul.mubr.f32.gmra.mrb[0].mxu0 %v1750
        %v1827 = vpop.f32.mrb[0].mxu0
        %v1828 = vadd.f32 0.0, %v1827
        %v1829 = vpop.f32.mrb[0].mxu0
        %1830 = vdwg.mxu0
        %1831 = vrot.lane.b32.xlu0 %v719, 112
        %v1832 = vpop.permute.xlu0 %1831
        %1833 = vrot.lane.b32.xlu0 %v724, 112
        %v1834 = vpop.permute.xlu0 %1833
        %1835 = vrot.lane.b32.xlu0 %v719, 80
        %v1836 = vpop.permute.xlu0 %1835
        %1837 = vrot.lane.b32.xlu0 %v724, 80
        %v1838 = vpop.permute.xlu0 %1837
        %v1839 = vsel %vm738, %v1832, 0
        %v1841 = vsel %vm738, %v1834, 0
        %v1843 = vsel %vm738, %v1836, 0
        %v1845 = vsel %vm738, %v1838, 0
        %1847 = vmatprep.subr.mxu0 0.0
        %1848 = vmatpush1.xpose.msra.mxu0 %v1843
        %1849 = vmatprep.subr.mxu0 0.0
        %1850 = vmatpush1.xpose.msra.mxu0 %v1845
        %1851 = vmatprep.subr.mxu0 0.0
        %1852 = vmatpush1.xpose.msra.mxu0 0.0
        %1853 = vmatprep.subr.mxu0 0.0
        %1854 = vmatpush1.xpose.msra.mxu0 0.0
        %1855 = vmatprep.subr.mxu0 0.0
        %1856 = vmatpush1.xpose.msra.mxu0 0.0
        %1857 = vmatprep.subr.mxu0 0.0
        %1858 = vmatpush1.xpose.msra.mxu0 0.0
        %1859 = vmatprep.subr.mxu0 0.0
        %1860 = vmatpush1.xpose.msra.mxu0 0.0
        %1861 = vmatprep.subr.mxu0 0.0
        %1862 = vmatpush1.xpose.msra.mxu0 0.0
        %1863 = vmatprep.subr.mxu0 0.0
        %1864 = vmatpush1.xpose.msra.mxu0 0.0
        %1865 = vmatprep.subr.mxu0 0.0
        %1866 = vmatpush1.xpose.msra.mxu0 0.0
        %1867 = vmatprep.subr.mxu0 0.0
        %1868 = vmatpush1.xpose.msra.mxu0 0.0
        %1869 = vmatprep.subr.mxu0 0.0
        %1870 = vmatpush1.xpose.msra.mxu0 0.0
        %1871 = vmatprep.subr.mxu0 0.0
        %1872 = vmatpush1.xpose.msra.mxu0 0.0
        %1873 = vmatprep.subr.mxu0 0.0
        %1874 = vmatpush1.xpose.msra.mxu0 0.0
        %1875 = vmatprep.subr.mxu0 0.0
        %1876 = vmatpush1.xpose.msra.mxu0 0.0
        %1877 = vmatprep.subr.mxu0 0.0
        %1878 = vmatpush1.xpose.msra.mxu0 0.0
        %1879 = vmatprep.subr.mxu0 0.0
        %1880 = vmatpush1.xpose.msra.mxu0 0.0
        %1881 = vmatprep.subr.mxu0 0.0
        %1882 = vmatpush1.xpose.msra.mxu0 0.0
        %1883 = vmatprep.subr.mxu0 0.0
        %1884 = vmatpush1.xpose.msra.mxu0 0.0
        %1885 = vmatprep.subr.mxu0 0.0
        %1886 = vmatpush1.xpose.msra.mxu0 0.0
        %1887 = vmatprep.subr.mxu0 0.0
        %1888 = vmatpush1.xpose.msra.mxu0 0.0
        %1889 = vmatprep.subr.mxu0 0.0
        %1890 = vmatpush1.xpose.msra.mxu0 0.0
        %1891 = vmatprep.subr.mxu0 0.0
        %1892 = vmatpush1.xpose.msra.mxu0 0.0
        %1893 = vmatprep.subr.mxu0 0.0
        %1894 = vmatpush1.xpose.msra.mxu0 0.0
        %1895 = vmatprep.subr.mxu0 0.0
        %1896 = vmatpush1.xpose.msra.mxu0 0.0
        %1897 = vmatprep.subr.mxu0 0.0
        %1898 = vmatpush1.xpose.msra.mxu0 0.0
        %1899 = vmatprep.subr.mxu0 0.0
        %1900 = vmatpush1.xpose.msra.mxu0 0.0
        %1901 = vmatprep.subr.mxu0 0.0
        %1902 = vmatpush1.xpose.msra.mxu0 0.0
        %1903 = vmatprep.subr.mxu0 0.0
        %1904 = vmatpush1.xpose.msra.mxu0 0.0
        %1905 = vmatprep.subr.mxu0 0.0
        %1906 = vmatpush1.xpose.msra.mxu0 0.0
        %1907 = vmatprep.subr.mxu0 0.0
        %1908 = vmatpush1.xpose.msra.mxu0 0.0
        %1909 = vmatprep.subr.mxu0 0.0
        %1910 = vmatpush1.xpose.msra.mxu0 0.0
        %1911 = vmatprep.mubr.f32.mxu0 0.0
        %1912 = vmatmul.mubr.f32.gmra.mrb[0].mxu0 %v1839
        %v1913 = vpop.f32.mrb[0].mxu0
        %v1914 = vadd.f32 0.0, %v1913
        %v1915 = vpop.f32.mrb[0].mxu0
        %1916 = vmatprep.mubr.f32.mxu0 0.0
        %1917 = vmatmul.mubr.f32.gmra.mrb[0].mxu0 %v1841
        %v1918 = vpop.f32.mrb[0].mxu0
        %v1919 = vadd.f32 0.0, %v1918
        %v1920 = vpop.f32.mrb[0].mxu0
        %1921 = vdwg.mxu0
        %v1922 = vmul.f32 %v1823, 0.35355338
        %v1923 = vmul.f32 %v1828, 0.35355338
        %v1924 = vmul.f32 %v1914, 0.35355338
        %v1925 = vmul.f32 %v1919, 0.35355338
        %v1926 = vadd.f32 %v1922, %v549
        %v1927 = vadd.f32 %v1923, %v550
        %v1928 = vadd.f32 %v1924, %v549
        %v1929 = vadd.f32 %v1925, %v550
        %v1930 = vsel %vm919, %v1926, -inf
        %1931 = vmax.xlane.f32.xlu0 %v1930
        %v1932 = vpop.xlane.xlu0 %1931
        %v1933 = vsel %vm919, %v1927, -inf
        %1934 = vmax.xlane.f32.xlu0 %v1933
        %v1935 = vpop.xlane.xlu0 %1934
        %v1936 = vsel %vm919, %v1928, -inf
        %1937 = vmax.xlane.f32.xlu0 %v1936
        %v1938 = vpop.xlane.xlu0 %1937
        %v1939 = vsel %vm919, %v1929, -inf
        %1940 = vmax.xlane.f32.xlu0 %v1939
        %v1941 = vpop.xlane.xlu0 %1940
        %v1942 = vsub.f32 %v1926, %v1932
        %v1943 = vsub.f32 %v1927, %v1935
        %v1944 = vsub.f32 %v1928, %v1938
        %v1945 = vsub.f32 %v1929, %v1941
        %v1946 = vmul.f32 %v1942, 1.442695
        %v1947 = vpow.pop %v1946
        %v1948 = vmul.f32 %v1943, 1.442695
        %v1949 = vpow.pop %v1948
        %v1950 = vmul.f32 %v1944, 1.442695
        %v1951 = vpow.pop %v1950
        %v1952 = vmul.f32 %v1945, 1.442695
        %v1953 = vpow.pop %v1952
        %v1954 = vsel %vm919, %v1947, 0.0
        %1955 = vadd.xlane.f32.xlu0 %v1954
        %v1956 = vpop.xlane.xlu0 %1955
        %v1957 = vsel %vm919, %v1949, 0.0
        %1958 = vadd.xlane.f32.xlu0 %v1957
        %v1959 = vpop.xlane.xlu0 %1958
        %v1960 = vsel %vm919, %v1951, 0.0
        %1961 = vadd.xlane.f32.xlu0 %v1960
        %v1962 = vpop.xlane.xlu0 %1961
        %v1963 = vsel %vm919, %v1953, 0.0
        %1964 = vadd.xlane.f32.xlu0 %v1963
        %v1965 = vpop.xlane.xlu0 %1964
        %v1966 = vrcp.pop %v1956
        %v1967 = vrcp.pop %v1959
        %v1968 = vrcp.pop %v1962
        %v1969 = vrcp.pop %v1965
        %v1970 = vmul.f32 %v1947, %v1966
        %v1971 = vmul.f32 %v1949, %v1967
        %v1972 = vmul.f32 %v1951, %v1968
        %v1973 = vmul.f32 %v1953, %v1969
        %1974 = vrot.lane.b32.xlu0 %v709, 48
        %v1975 = vpop.permute.xlu0 %1974
        %1976 = vrot.lane.b32.xlu0 %v714, 48
        %v1977 = vpop.permute.xlu0 %1976
        %v1981 = vsel %vm919, %v1970, 0
        %v1984 = vsel %vm919, %v1971, 0
        %1986 = vmatprep.subr.mxu0 0.0
        %1987 = vmatpush1.msra.mxu0 %v1975
        %1988 = vmatprep.subr.mxu0 0.0
        %1989 = vmatpush1.msra.mxu0 %v1977
        %1990 = vmatprep.subr.mxu0 0.0
        %1991 = vmatpush1.msra.mxu0 0.0
        %1992 = vmatprep.subr.mxu0 0.0
        %1993 = vmatpush1.msra.mxu0 0.0
        %1994 = vmatprep.subr.mxu0 0.0
        %1995 = vmatpush1.msra.mxu0 0.0
        %1996 = vmatprep.subr.mxu0 0.0
        %1997 = vmatpush1.msra.mxu0 0.0
        %1998 = vmatprep.subr.mxu0 0.0
        %1999 = vmatpush1.msra.mxu0 0.0
        %2000 = vmatprep.subr.mxu0 0.0
        %2001 = vmatpush1.msra.mxu0 0.0
        %2002 = vmatprep.subr.mxu0 0.0
        %2003 = vmatpush1.msra.mxu0 0.0
        %2004 = vmatprep.subr.mxu0 0.0
        %2005 = vmatpush1.msra.mxu0 0.0
        %2006 = vmatprep.subr.mxu0 0.0
        %2007 = vmatpush1.msra.mxu0 0.0
        %2008 = vmatprep.subr.mxu0 0.0
        %2009 = vmatpush1.msra.mxu0 0.0
        %2010 = vmatprep.subr.mxu0 0.0
        %2011 = vmatpush1.msra.mxu0 0.0
        %2012 = vmatprep.subr.mxu0 0.0
        %2013 = vmatpush1.msra.mxu0 0.0
        %2014 = vmatprep.subr.mxu0 0.0
        %2015 = vmatpush1.msra.mxu0 0.0
        %2016 = vmatprep.subr.mxu0 0.0
        %2017 = vmatpush1.msra.mxu0 0.0
        %2018 = vmatprep.subr.mxu0 0.0
        %2019 = vmatpush1.msra.mxu0 0.0
        %2020 = vmatprep.subr.mxu0 0.0
        %2021 = vmatpush1.msra.mxu0 0.0
        %2022 = vmatprep.subr.mxu0 0.0
        %2023 = vmatpush1.msra.mxu0 0.0
        %2024 = vmatprep.subr.mxu0 0.0
        %2025 = vmatpush1.msra.mxu0 0.0
        %2026 = vmatprep.subr.mxu0 0.0
        %2027 = vmatpush1.msra.mxu0 0.0
        %2028 = vmatprep.subr.mxu0 0.0
        %2029 = vmatpush1.msra.mxu0 0.0
        %2030 = vmatprep.subr.mxu0 0.0
        %2031 = vmatpush1.msra.mxu0 0.0
        %2032 = vmatprep.subr.mxu0 0.0
        %2033 = vmatpush1.msra.mxu0 0.0
        %2034 = vmatprep.subr.mxu0 0.0
        %2035 = vmatpush1.msra.mxu0 0.0
        %2036 = vmatprep.subr.mxu0 0.0
        %2037 = vmatpush1.msra.mxu0 0.0
        %2038 = vmatprep.subr.mxu0 0.0
        %2039 = vmatpush1.msra.mxu0 0.0
        %2040 = vmatprep.subr.mxu0 0.0
        %2041 = vmatpush1.msra.mxu0 0.0
        %2042 = vmatprep.subr.mxu0 0.0
        %2043 = vmatpush1.msra.mxu0 0.0
        %2044 = vmatprep.subr.mxu0 0.0
        %2045 = vmatpush1.msra.mxu0 0.0
        %2046 = vmatprep.subr.mxu0 0.0
        %2047 = vmatpush1.msra.mxu0 0.0
        %2048 = vmatprep.subr.mxu0 0.0
        %2049 = vmatpush1.msra.mxu0 0.0
        %2050 = vmatprep.mubr.f32.mxu0 0.0
        %2051 = vmatmul.mubr.f32.gmra.mrb[0].mxu0 %v1981
        %v2052 = vpop.f32.mrb[0].mxu0
        %v2053 = vadd.f32 0.0, %v2052
        %v2054 = vpop.f32.mrb[0].mxu0
        %2055 = vmatprep.mubr.f32.mxu0 0.0
        %2056 = vmatmul.mubr.f32.gmra.mrb[0].mxu0 %v1984
        %v2057 = vpop.f32.mrb[0].mxu0
        %v2058 = vadd.f32 0.0, %v2057
        %v2059 = vpop.f32.mrb[0].mxu0
        %2060 = vdwg.mxu0
        %2061 = vrot.lane.b32.xlu0 %v719, 48
        %v2062 = vpop.permute.xlu0 %2061
        %2063 = vrot.lane.b32.xlu0 %v724, 48
        %v2064 = vpop.permute.xlu0 %2063
        %v2068 = vsel %vm919, %v1972, 0
        %v2071 = vsel %vm919, %v1973, 0
        %2073 = vmatprep.subr.mxu0 0.0
        %2074 = vmatpush1.msra.mxu0 %v2062
        %2075 = vmatprep.subr.mxu0 0.0
        %2076 = vmatpush1.msra.mxu0 %v2064
        %2077 = vmatprep.subr.mxu0 0.0
        %2078 = vmatpush1.msra.mxu0 0.0
        %2079 = vmatprep.subr.mxu0 0.0
        %2080 = vmatpush1.msra.mxu0 0.0
        %2081 = vmatprep.subr.mxu0 0.0
        %2082 = vmatpush1.msra.mxu0 0.0
        %2083 = vmatprep.subr.mxu0 0.0
        %2084 = vmatpush1.msra.mxu0 0.0
        %2085 = vmatprep.subr.mxu0 0.0
        %2086 = vmatpush1.msra.mxu0 0.0
        %2087 = vmatprep.subr.mxu0 0.0
        %2088 = vmatpush1.msra.mxu0 0.0
        %2089 = vmatprep.subr.mxu0 0.0
        %2090 = vmatpush1.msra.mxu0 0.0
        %2091 = vmatprep.subr.mxu0 0.0
        %2092 = vmatpush1.msra.mxu0 0.0
        %2093 = vmatprep.subr.mxu0 0.0
        %2094 = vmatpush1.msra.mxu0 0.0
        %2095 = vmatprep.subr.mxu0 0.0
        %2096 = vmatpush1.msra.mxu0 0.0
        %2097 = vmatprep.subr.mxu0 0.0
        %2098 = vmatpush1.msra.mxu0 0.0
        %2099 = vmatprep.subr.mxu0 0.0
        %2100 = vmatpush1.msra.mxu0 0.0
        %2101 = vmatprep.subr.mxu0 0.0
        %2102 = vmatpush1.msra.mxu0 0.0
        %2103 = vmatprep.subr.mxu0 0.0
        %2104 = vmatpush1.msra.mxu0 0.0
        %2105 = vmatprep.subr.mxu0 0.0
        %2106 = vmatpush1.msra.mxu0 0.0
        %2107 = vmatprep.subr.mxu0 0.0
        %2108 = vmatpush1.msra.mxu0 0.0
        %2109 = vmatprep.subr.mxu0 0.0
        %2110 = vmatpush1.msra.mxu0 0.0
        %2111 = vmatprep.subr.mxu0 0.0
        %2112 = vmatpush1.msra.mxu0 0.0
        %2113 = vmatprep.subr.mxu0 0.0
        %2114 = vmatpush1.msra.mxu0 0.0
        %2115 = vmatprep.subr.mxu0 0.0
        %2116 = vmatpush1.msra.mxu0 0.0
        %2117 = vmatprep.subr.mxu0 0.0
        %2118 = vmatpush1.msra.mxu0 0.0
        %2119 = vmatprep.subr.mxu0 0.0
        %2120 = vmatpush1.msra.mxu0 0.0
        %2121 = vmatprep.subr.mxu0 0.0
        %2122 = vmatpush1.msra.mxu0 0.0
        %2123 = vmatprep.subr.mxu0 0.0
        %2124 = vmatpush1.msra.mxu0 0.0
        %2125 = vmatprep.subr.mxu0 0.0
        %2126 = vmatpush1.msra.mxu0 0.0
        %2127 = vmatprep.subr.mxu0 0.0
        %2128 = vmatpush1.msra.mxu0 0.0
        %2129 = vmatprep.subr.mxu0 0.0
        %2130 = vmatpush1.msra.mxu0 0.0
        %2131 = vmatprep.subr.mxu0 0.0
        %2132 = vmatpush1.msra.mxu0 0.0
        %2133 = vmatprep.subr.mxu0 0.0
        %2134 = vmatpush1.msra.mxu0 0.0
        %2135 = vmatprep.subr.mxu0 0.0
        %2136 = vmatpush1.msra.mxu0 0.0
        %2137 = vmatprep.mubr.f32.mxu0 0.0
        %2138 = vmatmul.mubr.f32.gmra.mrb[0].mxu0 %v2068
        %v2139 = vpop.f32.mrb[0].mxu0
        %v2140 = vadd.f32 0.0, %v2139
        %v2141 = vpop.f32.mrb[0].mxu0
        %2142 = vmatprep.mubr.f32.mxu0 0.0
        %2143 = vmatmul.mubr.f32.gmra.mrb[0].mxu0 %v2071
        %v2144 = vpop.f32.mrb[0].mxu0
        %v2145 = vadd.f32 0.0, %v2144
        %v2146 = vpop.f32.mrb[0].mxu0
        %2147 = vdwg.mxu0
        %v2149 = vsel %vm738, %v2053, 0
        %v2152 = vsel %vm738, %v2058, 0
        %v2155 = vsel %vm738, %v2140, 0
        %v2158 = vsel %vm738, %v2145, 0
        %2160 = vmatprep.subr.mxu0 0.0
        %2161 = vmatpush1.msra.mxu0 %v729
        %2162 = vmatprep.subr.mxu0 0.0
        %2163 = vmatpush1.msra.mxu0 0.0
        %2164 = vmatprep.subr.mxu0 0.0
        %2165 = vmatpush1.msra.mxu0 0.0
        %2166 = vmatprep.subr.mxu0 0.0
        %2167 = vmatpush1.msra.mxu0 0.0
        %2168 = vmatprep.subr.mxu0 0.0
        %2169 = vmatpush1.msra.mxu0 0.0
        %2170 = vmatprep.subr.mxu0 0.0
        %2171 = vmatpush1.msra.mxu0 0.0
        %2172 = vmatprep.subr.mxu0 0.0
        %2173 = vmatpush1.msra.mxu0 0.0
        %2174 = vmatprep.subr.mxu0 0.0
        %2175 = vmatpush1.msra.mxu0 0.0
        %2176 = vmatprep.subr.mxu0 0.0
        %2177 = vmatpush1.msra.mxu0 0.0
        %2178 = vmatprep.subr.mxu0 0.0
        %2179 = vmatpush1.msra.mxu0 0.0
        %2180 = vmatprep.subr.mxu0 0.0
        %2181 = vmatpush1.msra.mxu0 0.0
        %2182 = vmatprep.subr.mxu0 0.0
        %2183 = vmatpush1.msra.mxu0 0.0
        %2184 = vmatprep.subr.mxu0 0.0
        %2185 = vmatpush1.msra.mxu0 0.0
        %2186 = vmatprep.subr.mxu0 0.0
        %2187 = vmatpush1.msra.mxu0 0.0
        %2188 = vmatprep.subr.mxu0 0.0
        %2189 = vmatpush1.msra.mxu0 0.0
        %2190 = vmatprep.subr.mxu0 0.0
        %2191 = vmatpush1.msra.mxu0 0.0
        %2192 = vmatprep.subr.mxu0 0.0
        %2193 = vmatpush1.msra.mxu0 0.0
        %2194 = vmatprep.subr.mxu0 0.0
        %2195 = vmatpush1.msra.mxu0 0.0
        %2196 = vmatprep.subr.mxu0 0.0
        %2197 = vmatpush1.msra.mxu0 0.0
        %2198 = vmatprep.subr.mxu0 0.0
        %2199 = vmatpush1.msra.mxu0 0.0
        %2200 = vmatprep.subr.mxu0 0.0
        %2201 = vmatpush1.msra.mxu0 0.0
        %2202 = vmatprep.subr.mxu0 0.0
        %2203 = vmatpush1.msra.mxu0 0.0
        %2204 = vmatprep.subr.mxu0 0.0
        %2205 = vmatpush1.msra.mxu0 0.0
        %2206 = vmatprep.subr.mxu0 0.0
        %2207 = vmatpush1.msra.mxu0 0.0
        %2208 = vmatprep.subr.mxu0 0.0
        %2209 = vmatpush1.msra.mxu0 0.0
        %2210 = vmatprep.subr.mxu0 0.0
        %2211 = vmatpush1.msra.mxu0 0.0
        %2212 = vmatprep.subr.mxu0 0.0
        %2213 = vmatpush1.msra.mxu0 0.0
        %2214 = vmatprep.subr.mxu0 0.0
        %2215 = vmatpush1.msra.mxu0 0.0
        %2216 = vmatprep.subr.mxu0 0.0
        %2217 = vmatpush1.msra.mxu0 0.0
        %2218 = vmatprep.subr.mxu0 0.0
        %2219 = vmatpush1.msra.mxu0 0.0
        %2220 = vmatprep.subr.mxu0 0.0
        %2221 = vmatpush1.msra.mxu0 0.0
        %2222 = vmatprep.subr.mxu0 0.0
        %2223 = vmatpush1.msra.mxu0 0.0
        %2224 = vmatprep.mubr.f32.mxu0 0.0
        %2225 = vmatmul.mubr.f32.gmra.mrb[0].mxu0 %v2149
        %v2226 = vpop.f32.mrb[0].mxu0
        %v2227 = vadd.f32 0.0, %v2226
        %v2228 = vpop.f32.mrb[0].mxu0
        %2229 = vmatprep.mubr.f32.mxu0 0.0
        %2230 = vmatmul.mubr.f32.gmra.mrb[0].mxu0 %v2152
        %v2231 = vpop.f32.mrb[0].mxu0
        %v2232 = vadd.f32 0.0, %v2231
        %v2233 = vpop.f32.mrb[0].mxu0
        %2234 = vmatprep.mubr.f32.mxu0 0.0
        %2235 = vmatmul.mubr.f32.gmra.mrb[0].mxu0 %v2155
        %v2236 = vpop.f32.mrb[0].mxu0
        %v2237 = vadd.f32 0.0, %v2236
        %v2238 = vpop.f32.mrb[0].mxu0
        %2239 = vmatprep.mubr.f32.mxu0 0.0
        %2240 = vmatmul.mubr.f32.gmra.mrb[0].mxu0 %v2158
        %v2241 = vpop.f32.mrb[0].mxu0
        %v2242 = vadd.f32 0.0, %v2241
        %v2243 = vpop.f32.mrb[0].mxu0
        %2244 = vdwg.mxu0
        %v2245 = vadd.f32 %v1722, %v2227
        %v2246 = vadd.f32 %v1727, %v2232
        %v2247 = vadd.f32 %v1732, %v2237
        %v2248 = vadd.f32 %v1737, %v2242
        %2249 = vrot.lane.b32.xlu0 %v709, 104
        %v2250 = vpop.permute.xlu0 %2249
        %2251 = vrot.lane.b32.xlu0 %v714, 104
        %v2252 = vpop.permute.xlu0 %2251
        %2253 = vrot.lane.b32.xlu0 %v709, 72
        %v2254 = vpop.permute.xlu0 %2253
        %2255 = vrot.lane.b32.xlu0 %v714, 72
        %v2256 = vpop.permute.xlu0 %2255
        %v2257 = vsel %vm738, %v2250, 0
        %v2259 = vsel %vm738, %v2252, 0
        %v2261 = vsel %vm738, %v2254, 0
        %v2263 = vsel %vm738, %v2256, 0
        %2265 = vmatprep.subr.mxu0 0.0
        %2266 = vmatpush1.xpose.msra.mxu0 %v2261
        %2267 = vmatprep.subr.mxu0 0.0
        %2268 = vmatpush1.xpose.msra.mxu0 %v2263
        %2269 = vmatprep.subr.mxu0 0.0
        %2270 = vmatpush1.xpose.msra.mxu0 0.0
        %2271 = vmatprep.subr.mxu0 0.0
        %2272 = vmatpush1.xpose.msra.mxu0 0.0
        %2273 = vmatprep.subr.mxu0 0.0
        %2274 = vmatpush1.xpose.msra.mxu0 0.0
        %2275 = vmatprep.subr.mxu0 0.0
        %2276 = vmatpush1.xpose.msra.mxu0 0.0
        %2277 = vmatprep.subr.mxu0 0.0
        %2278 = vmatpush1.xpose.msra.mxu0 0.0
        %2279 = vmatprep.subr.mxu0 0.0
        %2280 = vmatpush1.xpose.msra.mxu0 0.0
        %2281 = vmatprep.subr.mxu0 0.0
        %2282 = vmatpush1.xpose.msra.mxu0 0.0
        %2283 = vmatprep.subr.mxu0 0.0
        %2284 = vmatpush1.xpose.msra.mxu0 0.0
        %2285 = vmatprep.subr.mxu0 0.0
        %2286 = vmatpush1.xpose.msra.mxu0 0.0
        %2287 = vmatprep.subr.mxu0 0.0
        %2288 = vmatpush1.xpose.msra.mxu0 0.0
        %2289 = vmatprep.subr.mxu0 0.0
        %2290 = vmatpush1.xpose.msra.mxu0 0.0
        %2291 = vmatprep.subr.mxu0 0.0
        %2292 = vmatpush1.xpose.msra.mxu0 0.0
        %2293 = vmatprep.subr.mxu0 0.0
        %2294 = vmatpush1.xpose.msra.mxu0 0.0
        %2295 = vmatprep.subr.mxu0 0.0
        %2296 = vmatpush1.xpose.msra.mxu0 0.0
        %2297 = vmatprep.subr.mxu0 0.0
        %2298 = vmatpush1.xpose.msra.mxu0 0.0
        %2299 = vmatprep.subr.mxu0 0.0
        %2300 = vmatpush1.xpose.msra.mxu0 0.0
        %2301 = vmatprep.subr.mxu0 0.0
        %2302 = vmatpush1.xpose.msra.mxu0 0.0
        %2303 = vmatprep.subr.mxu0 0.0
        %2304 = vmatpush1.xpose.msra.mxu0 0.0
        %2305 = vmatprep.subr.mxu0 0.0
        %2306 = vmatpush1.xpose.msra.mxu0 0.0
        %2307 = vmatprep.subr.mxu0 0.0
        %2308 = vmatpush1.xpose.msra.mxu0 0.0
        %2309 = vmatprep.subr.mxu0 0.0
        %2310 = vmatpush1.xpose.msra.mxu0 0.0
        %2311 = vmatprep.subr.mxu0 0.0
        %2312 = vmatpush1.xpose.msra.mxu0 0.0
        %2313 = vmatprep.subr.mxu0 0.0
        %2314 = vmatpush1.xpose.msra.mxu0 0.0
        %2315 = vmatprep.subr.mxu0 0.0
        %2316 = vmatpush1.xpose.msra.mxu0 0.0
        %2317 = vmatprep.subr.mxu0 0.0
        %2318 = vmatpush1.xpose.msra.mxu0 0.0
        %2319 = vmatprep.subr.mxu0 0.0
        %2320 = vmatpush1.xpose.msra.mxu0 0.0
        %2321 = vmatprep.subr.mxu0 0.0
        %2322 = vmatpush1.xpose.msra.mxu0 0.0
        %2323 = vmatprep.subr.mxu0 0.0
        %2324 = vmatpush1.xpose.msra.mxu0 0.0
        %2325 = vmatprep.subr.mxu0 0.0
        %2326 = vmatpush1.xpose.msra.mxu0 0.0
        %2327 = vmatprep.subr.mxu0 0.0
        %2328 = vmatpush1.xpose.msra.mxu0 0.0
        %2329 = vmatprep.mubr.f32.mxu0 0.0
        %2330 = vmatmul.mubr.f32.gmra.mrb[0].mxu0 %v2257
        %v2331 = vpop.f32.mrb[0].mxu0
        %v2332 = vadd.f32 0.0, %v2331
        %v2333 = vpop.f32.mrb[0].mxu0
        %2334 = vmatprep.mubr.f32.mxu0 0.0
        %2335 = vmatmul.mubr.f32.gmra.mrb[0].mxu0 %v2259
        %v2336 = vpop.f32.mrb[0].mxu0
        %v2337 = vadd.f32 0.0, %v2336
        %v2338 = vpop.f32.mrb[0].mxu0
        %2339 = vdwg.mxu0
        %2340 = vrot.lane.b32.xlu0 %v719, 104
        %v2341 = vpop.permute.xlu0 %2340
        %2342 = vrot.lane.b32.xlu0 %v724, 104
        %v2343 = vpop.permute.xlu0 %2342
        %2344 = vrot.lane.b32.xlu0 %v719, 72
        %v2345 = vpop.permute.xlu0 %2344
        %2346 = vrot.lane.b32.xlu0 %v724, 72
        %v2347 = vpop.permute.xlu0 %2346
        %v2348 = vsel %vm738, %v2341, 0
        %v2350 = vsel %vm738, %v2343, 0
        %v2352 = vsel %vm738, %v2345, 0
        %v2354 = vsel %vm738, %v2347, 0
        %2356 = vmatprep.subr.mxu0 0.0
        %2357 = vmatpush1.xpose.msra.mxu0 %v2352
        %2358 = vmatprep.subr.mxu0 0.0
        %2359 = vmatpush1.xpose.msra.mxu0 %v2354
        %2360 = vmatprep.subr.mxu0 0.0
        %2361 = vmatpush1.xpose.msra.mxu0 0.0
        %2362 = vmatprep.subr.mxu0 0.0
        %2363 = vmatpush1.xpose.msra.mxu0 0.0
        %2364 = vmatprep.subr.mxu0 0.0
        %2365 = vmatpush1.xpose.msra.mxu0 0.0
        %2366 = vmatprep.subr.mxu0 0.0
        %2367 = vmatpush1.xpose.msra.mxu0 0.0
        %2368 = vmatprep.subr.mxu0 0.0
        %2369 = vmatpush1.xpose.msra.mxu0 0.0
        %2370 = vmatprep.subr.mxu0 0.0
        %2371 = vmatpush1.xpose.msra.mxu0 0.0
        %2372 = vmatprep.subr.mxu0 0.0
        %2373 = vmatpush1.xpose.msra.mxu0 0.0
        %2374 = vmatprep.subr.mxu0 0.0
        %2375 = vmatpush1.xpose.msra.mxu0 0.0
        %2376 = vmatprep.subr.mxu0 0.0
        %2377 = vmatpush1.xpose.msra.mxu0 0.0
        %2378 = vmatprep.subr.mxu0 0.0
        %2379 = vmatpush1.xpose.msra.mxu0 0.0
        %2380 = vmatprep.subr.mxu0 0.0
        %2381 = vmatpush1.xpose.msra.mxu0 0.0
        %2382 = vmatprep.subr.mxu0 0.0
        %2383 = vmatpush1.xpose.msra.mxu0 0.0
        %2384 = vmatprep.subr.mxu0 0.0
        %2385 = vmatpush1.xpose.msra.mxu0 0.0
        %2386 = vmatprep.subr.mxu0 0.0
        %2387 = vmatpush1.xpose.msra.mxu0 0.0
        %2388 = vmatprep.subr.mxu0 0.0
        %2389 = vmatpush1.xpose.msra.mxu0 0.0
        %2390 = vmatprep.subr.mxu0 0.0
        %2391 = vmatpush1.xpose.msra.mxu0 0.0
        %2392 = vmatprep.subr.mxu0 0.0
        %2393 = vmatpush1.xpose.msra.mxu0 0.0
        %2394 = vmatprep.subr.mxu0 0.0
        %2395 = vmatpush1.xpose.msra.mxu0 0.0
        %2396 = vmatprep.subr.mxu0 0.0
        %2397 = vmatpush1.xpose.msra.mxu0 0.0
        %2398 = vmatprep.subr.mxu0 0.0
        %2399 = vmatpush1.xpose.msra.mxu0 0.0
        %2400 = vmatprep.subr.mxu0 0.0
        %2401 = vmatpush1.xpose.msra.mxu0 0.0
        %2402 = vmatprep.subr.mxu0 0.0
        %2403 = vmatpush1.xpose.msra.mxu0 0.0
        %2404 = vmatprep.subr.mxu0 0.0
        %2405 = vmatpush1.xpose.msra.mxu0 0.0
        %2406 = vmatprep.subr.mxu0 0.0
        %2407 = vmatpush1.xpose.msra.mxu0 0.0
        %2408 = vmatprep.subr.mxu0 0.0
        %2409 = vmatpush1.xpose.msra.mxu0 0.0
        %2410 = vmatprep.subr.mxu0 0.0
        %2411 = vmatpush1.xpose.msra.mxu0 0.0
        %2412 = vmatprep.subr.mxu0 0.0
        %2413 = vmatpush1.xpose.msra.mxu0 0.0
        %2414 = vmatprep.subr.mxu0 0.0
        %2415 = vmatpush1.xpose.msra.mxu0 0.0
        %2416 = vmatprep.subr.mxu0 0.0
        %2417 = vmatpush1.xpose.msra.mxu0 0.0
        %2418 = vmatprep.subr.mxu0 0.0
        %2419 = vmatpush1.xpose.msra.mxu0 0.0
        %2420 = vmatprep.mubr.f32.mxu0 0.0
        %2421 = vmatmul.mubr.f32.gmra.mrb[0].mxu0 %v2348
        %v2422 = vpop.f32.mrb[0].mxu0
        %v2423 = vadd.f32 0.0, %v2422
        %v2424 = vpop.f32.mrb[0].mxu0
        %2425 = vmatprep.mubr.f32.mxu0 0.0
        %2426 = vmatmul.mubr.f32.gmra.mrb[0].mxu0 %v2350
        %v2427 = vpop.f32.mrb[0].mxu0
        %v2428 = vadd.f32 0.0, %v2427
        %v2429 = vpop.f32.mrb[0].mxu0
        %2430 = vdwg.mxu0
        %v2431 = vmul.f32 %v2332, 0.35355338
        %v2432 = vmul.f32 %v2337, 0.35355338
        %v2433 = vmul.f32 %v2423, 0.35355338
        %v2434 = vmul.f32 %v2428, 0.35355338
        %v2435 = vadd.f32 %v2431, %v549
        %v2436 = vadd.f32 %v2432, %v550
        %v2437 = vadd.f32 %v2433, %v549
        %v2438 = vadd.f32 %v2434, %v550
        %v2439 = vsel %vm919, %v2435, -inf
        %2440 = vmax.xlane.f32.xlu0 %v2439
        %v2441 = vpop.xlane.xlu0 %2440
        %v2442 = vsel %vm919, %v2436, -inf
        %2443 = vmax.xlane.f32.xlu0 %v2442
        %v2444 = vpop.xlane.xlu0 %2443
        %v2445 = vsel %vm919, %v2437, -inf
        %2446 = vmax.xlane.f32.xlu0 %v2445
        %v2447 = vpop.xlane.xlu0 %2446
        %v2448 = vsel %vm919, %v2438, -inf
        %2449 = vmax.xlane.f32.xlu0 %v2448
        %v2450 = vpop.xlane.xlu0 %2449
        %v2451 = vsub.f32 %v2435, %v2441
        %v2452 = vsub.f32 %v2436, %v2444
        %v2453 = vsub.f32 %v2437, %v2447
        %v2454 = vsub.f32 %v2438, %v2450
        %v2455 = vmul.f32 %v2451, 1.442695
        %v2456 = vpow.pop %v2455
        %v2457 = vmul.f32 %v2452, 1.442695
        %v2458 = vpow.pop %v2457
        %v2459 = vmul.f32 %v2453, 1.442695
        %v2460 = vpow.pop %v2459
        %v2461 = vmul.f32 %v2454, 1.442695
        %v2462 = vpow.pop %v2461
        %v2463 = vsel %vm919, %v2456, 0.0
        %2464 = vadd.xlane.f32.xlu0 %v2463
        %v2465 = vpop.xlane.xlu0 %2464
        %v2466 = vsel %vm919, %v2458, 0.0
        %2467 = vadd.xlane.f32.xlu0 %v2466
        %v2468 = vpop.xlane.xlu0 %2467
        %v2469 = vsel %vm919, %v2460, 0.0
        %2470 = vadd.xlane.f32.xlu0 %v2469
        %v2471 = vpop.xlane.xlu0 %2470
        %v2472 = vsel %vm919, %v2462, 0.0
        %2473 = vadd.xlane.f32.xlu0 %v2472
        %v2474 = vpop.xlane.xlu0 %2473
        %v2475 = vrcp.pop %v2465
        %v2476 = vrcp.pop %v2468
        %v2477 = vrcp.pop %v2471
        %v2478 = vrcp.pop %v2474
        %v2479 = vmul.f32 %v2456, %v2475
        %v2480 = vmul.f32 %v2458, %v2476
        %v2481 = vmul.f32 %v2460, %v2477
        %v2482 = vmul.f32 %v2462, %v2478
        %2483 = vrot.lane.b32.xlu0 %v709, 40
        %v2484 = vpop.permute.xlu0 %2483
        %2485 = vrot.lane.b32.xlu0 %v714, 40
        %v2486 = vpop.permute.xlu0 %2485
        %v2490 = vsel %vm919, %v2479, 0
        %v2493 = vsel %vm919, %v2480, 0
        %2495 = vmatprep.subr.mxu0 0.0
        %2496 = vmatpush1.msra.mxu0 %v2484
        %2497 = vmatprep.subr.mxu0 0.0
        %2498 = vmatpush1.msra.mxu0 %v2486
        %2499 = vmatprep.subr.mxu0 0.0
        %2500 = vmatpush1.msra.mxu0 0.0
        %2501 = vmatprep.subr.mxu0 0.0
        %2502 = vmatpush1.msra.mxu0 0.0
        %2503 = vmatprep.subr.mxu0 0.0
        %2504 = vmatpush1.msra.mxu0 0.0
        %2505 = vmatprep.subr.mxu0 0.0
        %2506 = vmatpush1.msra.mxu0 0.0
        %2507 = vmatprep.subr.mxu0 0.0
        %2508 = vmatpush1.msra.mxu0 0.0
        %2509 = vmatprep.subr.mxu0 0.0
        %2510 = vmatpush1.msra.mxu0 0.0
        %2511 = vmatprep.subr.mxu0 0.0
        %2512 = vmatpush1.msra.mxu0 0.0
        %2513 = vmatprep.subr.mxu0 0.0
        %2514 = vmatpush1.msra.mxu0 0.0
        %2515 = vmatprep.subr.mxu0 0.0
        %2516 = vmatpush1.msra.mxu0 0.0
        %2517 = vmatprep.subr.mxu0 0.0
        %2518 = vmatpush1.msra.mxu0 0.0
        %2519 = vmatprep.subr.mxu0 0.0
        %2520 = vmatpush1.msra.mxu0 0.0
        %2521 = vmatprep.subr.mxu0 0.0
        %2522 = vmatpush1.msra.mxu0 0.0
        %2523 = vmatprep.subr.mxu0 0.0
        %2524 = vmatpush1.msra.mxu0 0.0
        %2525 = vmatprep.subr.mxu0 0.0
        %2526 = vmatpush1.msra.mxu0 0.0
        %2527 = vmatprep.subr.mxu0 0.0
        %2528 = vmatpush1.msra.mxu0 0.0
        %2529 = vmatprep.subr.mxu0 0.0
        %2530 = vmatpush1.msra.mxu0 0.0
        %2531 = vmatprep.subr.mxu0 0.0
        %2532 = vmatpush1.msra.mxu0 0.0
        %2533 = vmatprep.subr.mxu0 0.0
        %2534 = vmatpush1.msra.mxu0 0.0
        %2535 = vmatprep.subr.mxu0 0.0
        %2536 = vmatpush1.msra.mxu0 0.0
        %2537 = vmatprep.subr.mxu0 0.0
        %2538 = vmatpush1.msra.mxu0 0.0
        %2539 = vmatprep.subr.mxu0 0.0
        %2540 = vmatpush1.msra.mxu0 0.0
        %2541 = vmatprep.subr.mxu0 0.0
        %2542 = vmatpush1.msra.mxu0 0.0
        %2543 = vmatprep.subr.mxu0 0.0
        %2544 = vmatpush1.msra.mxu0 0.0
        %2545 = vmatprep.subr.mxu0 0.0
        %2546 = vmatpush1.msra.mxu0 0.0
        %2547 = vmatprep.subr.mxu0 0.0
        %2548 = vmatpush1.msra.mxu0 0.0
        %2549 = vmatprep.subr.mxu0 0.0
        %2550 = vmatpush1.msra.mxu0 0.0
        %2551 = vmatprep.subr.mxu0 0.0
        %2552 = vmatpush1.msra.mxu0 0.0
        %2553 = vmatprep.subr.mxu0 0.0
        %2554 = vmatpush1.msra.mxu0 0.0
        %2555 = vmatprep.subr.mxu0 0.0
        %2556 = vmatpush1.msra.mxu0 0.0
        %2557 = vmatprep.subr.mxu0 0.0
        %2558 = vmatpush1.msra.mxu0 0.0
        %2559 = vmatprep.mubr.f32.mxu0 0.0
        %2560 = vmatmul.mubr.f32.gmra.mrb[0].mxu0 %v2490
        %v2561 = vpop.f32.mrb[0].mxu0
        %v2562 = vadd.f32 0.0, %v2561
        %v2563 = vpop.f32.mrb[0].mxu0
        %2564 = vmatprep.mubr.f32.mxu0 0.0
        %2565 = vmatmul.mubr.f32.gmra.mrb[0].mxu0 %v2493
        %v2566 = vpop.f32.mrb[0].mxu0
        %v2567 = vadd.f32 0.0, %v2566
        %v2568 = vpop.f32.mrb[0].mxu0
        %2569 = vdwg.mxu0
        %2570 = vrot.lane.b32.xlu0 %v719, 40
        %v2571 = vpop.permute.xlu0 %2570
        %2572 = vrot.lane.b32.xlu0 %v724, 40
        %v2573 = vpop.permute.xlu0 %2572
        %v2577 = vsel %vm919, %v2481, 0
        %v2580 = vsel %vm919, %v2482, 0
        %2582 = vmatprep.subr.mxu0 0.0
        %2583 = vmatpush1.msra.mxu0 %v2571
        %2584 = vmatprep.subr.mxu0 0.0
        %2585 = vmatpush1.msra.mxu0 %v2573
        %2586 = vmatprep.subr.mxu0 0.0
        %2587 = vmatpush1.msra.mxu0 0.0
        %2588 = vmatprep.subr.mxu0 0.0
        %2589 = vmatpush1.msra.mxu0 0.0
        %2590 = vmatprep.subr.mxu0 0.0
        %2591 = vmatpush1.msra.mxu0 0.0
        %2592 = vmatprep.subr.mxu0 0.0
        %2593 = vmatpush1.msra.mxu0 0.0
        %2594 = vmatprep.subr.mxu0 0.0
        %2595 = vmatpush1.msra.mxu0 0.0
        %2596 = vmatprep.subr.mxu0 0.0
        %2597 = vmatpush1.msra.mxu0 0.0
        %2598 = vmatprep.subr.mxu0 0.0
        %2599 = vmatpush1.msra.mxu0 0.0
        %2600 = vmatprep.subr.mxu0 0.0
        %2601 = vmatpush1.msra.mxu0 0.0
        %2602 = vmatprep.subr.mxu0 0.0
        %2603 = vmatpush1.msra.mxu0 0.0
        %2604 = vmatprep.subr.mxu0 0.0
        %2605 = vmatpush1.msra.mxu0 0.0
        %2606 = vmatprep.subr.mxu0 0.0
        %2607 = vmatpush1.msra.mxu0 0.0
        %2608 = vmatprep.subr.mxu0 0.0
        %2609 = vmatpush1.msra.mxu0 0.0
        %2610 = vmatprep.subr.mxu0 0.0
        %2611 = vmatpush1.msra.mxu0 0.0
        %2612 = vmatprep.subr.mxu0 0.0
        %2613 = vmatpush1.msra.mxu0 0.0
        %2614 = vmatprep.subr.mxu0 0.0
        %2615 = vmatpush1.msra.mxu0 0.0
        %2616 = vmatprep.subr.mxu0 0.0
        %2617 = vmatpush1.msra.mxu0 0.0
        %2618 = vmatprep.subr.mxu0 0.0
        %2619 = vmatpush1.msra.mxu0 0.0
        %2620 = vmatprep.subr.mxu0 0.0
        %2621 = vmatpush1.msra.mxu0 0.0
        %2622 = vmatprep.subr.mxu0 0.0
        %2623 = vmatpush1.msra.mxu0 0.0
        %2624 = vmatprep.subr.mxu0 0.0
        %2625 = vmatpush1.msra.mxu0 0.0
        %2626 = vmatprep.subr.mxu0 0.0
        %2627 = vmatpush1.msra.mxu0 0.0
        %2628 = vmatprep.subr.mxu0 0.0
        %2629 = vmatpush1.msra.mxu0 0.0
        %2630 = vmatprep.subr.mxu0 0.0
        %2631 = vmatpush1.msra.mxu0 0.0
        %2632 = vmatprep.subr.mxu0 0.0
        %2633 = vmatpush1.msra.mxu0 0.0
        %2634 = vmatprep.subr.mxu0 0.0
        %2635 = vmatpush1.msra.mxu0 0.0
        %2636 = vmatprep.subr.mxu0 0.0
        %2637 = vmatpush1.msra.mxu0 0.0
        %2638 = vmatprep.subr.mxu0 0.0
        %2639 = vmatpush1.msra.mxu0 0.0
        %2640 = vmatprep.subr.mxu0 0.0
        %2641 = vmatpush1.msra.mxu0 0.0
        %2642 = vmatprep.subr.mxu0 0.0
        %2643 = vmatpush1.msra.mxu0 0.0
        %2644 = vmatprep.subr.mxu0 0.0
        %2645 = vmatpush1.msra.mxu0 0.0
        %2646 = vmatprep.mubr.f32.mxu0 0.0
        %2647 = vmatmul.mubr.f32.gmra.mrb[0].mxu0 %v2577
        %v2648 = vpop.f32.mrb[0].mxu0
        %v2649 = vadd.f32 0.0, %v2648
        %v2650 = vpop.f32.mrb[0].mxu0
        %2651 = vmatprep.mubr.f32.mxu0 0.0
        %2652 = vmatmul.mubr.f32.gmra.mrb[0].mxu0 %v2580
        %v2653 = vpop.f32.mrb[0].mxu0
        %v2654 = vadd.f32 0.0, %v2653
        %v2655 = vpop.f32.mrb[0].mxu0
        %2656 = vdwg.mxu0
        %v2658 = vsel %vm738, %v2562, 0
        %v2661 = vsel %vm738, %v2567, 0
        %v2664 = vsel %vm738, %v2649, 0
        %v2667 = vsel %vm738, %v2654, 0
        %2669 = vmatprep.subr.mxu0 0.0
        %2670 = vmatpush1.msra.mxu0 %v730
        %2671 = vmatprep.subr.mxu0 0.0
        %2672 = vmatpush1.msra.mxu0 0.0
        %2673 = vmatprep.subr.mxu0 0.0
        %2674 = vmatpush1.msra.mxu0 0.0
        %2675 = vmatprep.subr.mxu0 0.0
        %2676 = vmatpush1.msra.mxu0 0.0
        %2677 = vmatprep.subr.mxu0 0.0
        %2678 = vmatpush1.msra.mxu0 0.0
        %2679 = vmatprep.subr.mxu0 0.0
        %2680 = vmatpush1.msra.mxu0 0.0
        %2681 = vmatprep.subr.mxu0 0.0
        %2682 = vmatpush1.msra.mxu0 0.0
        %2683 = vmatprep.subr.mxu0 0.0
        %2684 = vmatpush1.msra.mxu0 0.0
        %2685 = vmatprep.subr.mxu0 0.0
        %2686 = vmatpush1.msra.mxu0 0.0
        %2687 = vmatprep.subr.mxu0 0.0
        %2688 = vmatpush1.msra.mxu0 0.0
        %2689 = vmatprep.subr.mxu0 0.0
        %2690 = vmatpush1.msra.mxu0 0.0
        %2691 = vmatprep.subr.mxu0 0.0
        %2692 = vmatpush1.msra.mxu0 0.0
        %2693 = vmatprep.subr.mxu0 0.0
        %2694 = vmatpush1.msra.mxu0 0.0
        %2695 = vmatprep.subr.mxu0 0.0
        %2696 = vmatpush1.msra.mxu0 0.0
        %2697 = vmatprep.subr.mxu0 0.0
        %2698 = vmatpush1.msra.mxu0 0.0
        %2699 = vmatprep.subr.mxu0 0.0
        %2700 = vmatpush1.msra.mxu0 0.0
        %2701 = vmatprep.subr.mxu0 0.0
        %2702 = vmatpush1.msra.mxu0 0.0
        %2703 = vmatprep.subr.mxu0 0.0
        %2704 = vmatpush1.msra.mxu0 0.0
        %2705 = vmatprep.subr.mxu0 0.0
        %2706 = vmatpush1.msra.mxu0 0.0
        %2707 = vmatprep.subr.mxu0 0.0
        %2708 = vmatpush1.msra.mxu0 0.0
        %2709 = vmatprep.subr.mxu0 0.0
        %2710 = vmatpush1.msra.mxu0 0.0
        %2711 = vmatprep.subr.mxu0 0.0
        %2712 = vmatpush1.msra.mxu0 0.0
        %2713 = vmatprep.subr.mxu0 0.0
        %2714 = vmatpush1.msra.mxu0 0.0
        %2715 = vmatprep.subr.mxu0 0.0
        %2716 = vmatpush1.msra.mxu0 0.0
        %2717 = vmatprep.subr.mxu0 0.0
        %2718 = vmatpush1.msra.mxu0 0.0
        %2719 = vmatprep.subr.mxu0 0.0
        %2720 = vmatpush1.msra.mxu0 0.0
        %2721 = vmatprep.subr.mxu0 0.0
        %2722 = vmatpush1.msra.mxu0 0.0
        %2723 = vmatprep.subr.mxu0 0.0
        %2724 = vmatpush1.msra.mxu0 0.0
        %2725 = vmatprep.subr.mxu0 0.0
        %2726 = vmatpush1.msra.mxu0 0.0
        %2727 = vmatprep.subr.mxu0 0.0
        %2728 = vmatpush1.msra.mxu0 0.0
        %2729 = vmatprep.subr.mxu0 0.0
        %2730 = vmatpush1.msra.mxu0 0.0
        %2731 = vmatprep.subr.mxu0 0.0
        %2732 = vmatpush1.msra.mxu0 0.0
        %2733 = vmatprep.mubr.f32.mxu0 0.0
        %2734 = vmatmul.mubr.f32.gmra.mrb[0].mxu0 %v2658
        %v2735 = vpop.f32.mrb[0].mxu0
        %v2736 = vadd.f32 0.0, %v2735
        %v2737 = vpop.f32.mrb[0].mxu0
        %2738 = vmatprep.mubr.f32.mxu0 0.0
        %2739 = vmatmul.mubr.f32.gmra.mrb[0].mxu0 %v2661
        %v2740 = vpop.f32.mrb[0].mxu0
        %v2741 = vadd.f32 0.0, %v2740
        %v2742 = vpop.f32.mrb[0].mxu0
        %2743 = vmatprep.mubr.f32.mxu0 0.0
        %2744 = vmatmul.mubr.f32.gmra.mrb[0].mxu0 %v2664
        %v2745 = vpop.f32.mrb[0].mxu0
        %v2746 = vadd.f32 0.0, %v2745
        %v2747 = vpop.f32.mrb[0].mxu0
        %2748 = vmatprep.mubr.f32.mxu0 0.0
        %2749 = vmatmul.mubr.f32.gmra.mrb[0].mxu0 %v2667
        %v2750 = vpop.f32.mrb[0].mxu0
        %v2751 = vadd.f32 0.0, %v2750
        %v2752 = vpop.f32.mrb[0].mxu0
        %2753 = vdwg.mxu0
        %v2754 = vadd.f32 %v2245, %v2736
        %v2755 = vadd.f32 %v2246, %v2741
        %v2756 = vadd.f32 %v2247, %v2746
        %v2757 = vadd.f32 %v2248, %v2751
        %v2758 = vadd.f32 %v531, %v2754
        %v2759 = vadd.f32 %v536, %v2755
        %v2760 = vadd.f32 %v541, %v2756
        %v2761 = vadd.f32 %v546, %v2757
        %v2762 = vlaneseq
        %v2763 = vshrl.u32 %v2762, 7
        %v2764 = vsub.s32 0, %v2763
        %v2765 = vrot.slane %v731, %v2764
        %v2766 = vadd.f32 %v2758, %v2765
        %v2767 = vadd.f32 %v2759, %v2765
        %v2768 = vadd.f32 %v2760, %v2765
        %v2769 = vadd.f32 %v2761, %v2765
        %v2770 = vsel %vm451, %v2766, 0.0
        %2771 = vadd.xlane.f32.xlu0 %v2770
        %v2772 = vpop.xlane.xlu0 %2771
        %v2773 = vsel %vm451, %v2767, 0.0
        %2774 = vadd.xlane.f32.xlu0 %v2773
        %v2775 = vpop.xlane.xlu0 %2774
        %v2776 = vsel %vm451, %v2768, 0.0
        %2777 = vadd.xlane.f32.xlu0 %v2776
        %v2778 = vpop.xlane.xlu0 %2777
        %v2779 = vsel %vm451, %v2769, 0.0
        %2780 = vadd.xlane.f32.xlu0 %v2779
        %v2781 = vpop.xlane.xlu0 %2780
        %v2782 = vmul.f32 %v2772, %v564
        %v2783 = vmul.f32 %v2775, %v564
        %v2784 = vmul.f32 %v2778, %v564
        %v2785 = vmul.f32 %v2781, %v564
        %v2786 = vsub.f32 %v2766, %v2782
        %v2787 = vsub.f32 %v2767, %v2783
        %v2788 = vsub.f32 %v2768, %v2784
        %v2789 = vsub.f32 %v2769, %v2785
        %v2790 = vmul.f32 %v2786, %v2786
        %v2791 = vmul.f32 %v2787, %v2787
        %v2792 = vmul.f32 %v2788, %v2788
        %v2793 = vmul.f32 %v2789, %v2789
        %v2794 = vsel %vm451, %v2790, 0.0
        %2795 = vadd.xlane.f32.xlu0 %v2794
        %v2796 = vpop.xlane.xlu0 %2795
        %v2797 = vsel %vm451, %v2791, 0.0
        %2798 = vadd.xlane.f32.xlu0 %v2797
        %v2799 = vpop.xlane.xlu0 %2798
        %v2800 = vsel %vm451, %v2792, 0.0
        %2801 = vadd.xlane.f32.xlu0 %v2800
        %v2802 = vpop.xlane.xlu0 %2801
        %v2803 = vsel %vm451, %v2793, 0.0
        %2804 = vadd.xlane.f32.xlu0 %v2803
        %v2805 = vpop.xlane.xlu0 %2804
        %v2806 = vmul.f32 %v2796, %v564
        %v2807 = vmul.f32 %v2799, %v564
        %v2808 = vmul.f32 %v2802, %v564
        %v2809 = vmul.f32 %v2805, %v564
        %v2810 = vadd.f32 %v2806, 1e-05
        %v2811 = vadd.f32 %v2807, 1e-05
        %v2812 = vadd.f32 %v2808, 1e-05
        %v2813 = vadd.f32 %v2809, 1e-05
        %v2814 = vrsqrt.pop %v2810
        %v2815 = vrsqrt.pop %v2811
        %v2816 = vrsqrt.pop %v2812
        %v2817 = vrsqrt.pop %v2813
        %v2818 = vmul.f32 %v2786, %v2814
        %v2819 = vmul.f32 %v2787, %v2815
        %v2820 = vmul.f32 %v2788, %v2816
        %v2821 = vmul.f32 %v2789, %v2817
        %v2822 = vlaneseq
        %v2823 = vshrl.u32 %v2822, 7
        %v2824 = vsub.s32 2, %v2823
        %v2825 = vrot.slane %v551, %v2824
        %v2826 = vmul.f32 %v2818, %v2825
        %v2827 = vmul.f32 %v2819, %v2825
        %v2828 = vmul.f32 %v2820, %v2825
        %v2829 = vmul.f32 %v2821, %v2825
        %v2830 = vlaneseq
        %v2831 = vshrl.u32 %v2830, 7
        %v2832 = vsub.s32 3, %v2831
        %v2833 = vrot.slane %v551, %v2832
        %v2834 = vadd.f32 %v2826, %v2833
        %v2835 = vadd.f32 %v2827, %v2833
        %v2836 = vadd.f32 %v2828, %v2833
        %v2837 = vadd.f32 %v2829, %v2833
        %v2838 = vld [vmem:[%s6] sm:$0xff]
        %v2839 = vld [vmem:[%s6 + $0x8] sm:$0xff]
        %v2840 = vld [vmem:[%s6 + $0x10] sm:$0xff]
        %v2841 = vld [vmem:[%s6 + $0x18] sm:$0xff]
        %v2842 = vld [vmem:[%s6 + $0x20] sm:$0x1]
        %v2843 = vld [vmem:[%s7] sm:$0xff]
        %v2844 = vld [vmem:[%s7 + $0x8] sm:$0xff]
        %v2845 = vld [vmem:[%s7 + $0x10] sm:$0xff]
        %v2846 = vld [vmem:[%s7 + $0x18] sm:$0xff]
        %v2847 = vld [vmem:[%s7 + $0x20] sm:$0xff]
        %v2848 = vld [vmem:[%s7 + $0x28] sm:$0xff]
        %v2849 = vld [vmem:[%s7 + $0x30] sm:$0xff]
        %v2850 = vld [vmem:[%s7 + $0x38] sm:$0xff]
        %v2851 = vld [vmem:[%s7 + $0x40] sm:$0x1]
        %v2852 = vlaneseq
        %v2853 = vshrl.u32 %v2852, 7
        %v2854 = vsub.s32 0, %v2853
        %v2855 = vrot.slane %v2842, %v2854
        %v2857 = vsel %vm451, %v2834, 0
        %v2860 = vsel %vm451, %v2835, 0
        %v2863 = vsel %vm451, %v2836, 0
        %v2866 = vsel %vm451, %v2837, 0
        %2868 = vmatprep.subr.mxu0 0.0
        %2869 = vmatpush1.msra.mxu0 %v2838
        %2870 = vmatprep.subr.mxu0 0.0
        %2871 = vmatpush1.msra.mxu0 %v2839
        %2872 = vmatprep.subr.mxu0 0.0
        %2873 = vmatpush1.msra.mxu0 %v2840
        %2874 = vmatprep.subr.mxu0 0.0
        %2875 = vmatpush1.msra.mxu0 %v2841
        %2876 = vmatprep.subr.mxu0 0.0
        %2877 = vmatpush1.msra.mxu0 0.0
        %2878 = vmatprep.subr.mxu0 0.0
        %2879 = vmatpush1.msra.mxu0 0.0
        %2880 = vmatprep.subr.mxu0 0.0
        %2881 = vmatpush1.msra.mxu0 0.0
        %2882 = vmatprep.subr.mxu0 0.0
        %2883 = vmatpush1.msra.mxu0 0.0
        %2884 = vmatprep.subr.mxu0 0.0
        %2885 = vmatpush1.msra.mxu0 0.0
        %2886 = vmatprep.subr.mxu0 0.0
        %2887 = vmatpush1.msra.mxu0 0.0
        %2888 = vmatprep.subr.mxu0 0.0
        %2889 = vmatpush1.msra.mxu0 0.0
        %2890 = vmatprep.subr.mxu0 0.0
        %2891 = vmatpush1.msra.mxu0 0.0
        %2892 = vmatprep.subr.mxu0 0.0
        %2893 = vmatpush1.msra.mxu0 0.0
        %2894 = vmatprep.subr.mxu0 0.0
        %2895 = vmatpush1.msra.mxu0 0.0
        %2896 = vmatprep.subr.mxu0 0.0
        %2897 = vmatpush1.msra.mxu0 0.0
        %2898 = vmatprep.subr.mxu0 0.0
        %2899 = vmatpush1.msra.mxu0 0.0
        %2900 = vmatprep.subr.mxu0 0.0
        %2901 = vmatpush1.msra.mxu0 0.0
        %2902 = vmatprep.subr.mxu0 0.0
        %2903 = vmatpush1.msra.mxu0 0.0
        %2904 = vmatprep.subr.mxu0 0.0
        %2905 = vmatpush1.msra.mxu0 0.0
        %2906 = vmatprep.subr.mxu0 0.0
        %2907 = vmatpush1.msra.mxu0 0.0
        %2908 = vmatprep.subr.mxu0 0.0
        %2909 = vmatpush1.msra.mxu0 0.0
        %2910 = vmatprep.subr.mxu0 0.0
        %2911 = vmatpush1.msra.mxu0 0.0
        %2912 = vmatprep.subr.mxu0 0.0
        %2913 = vmatpush1.msra.mxu0 0.0
        %2914 = vmatprep.subr.mxu0 0.0
        %2915 = vmatpush1.msra.mxu0 0.0
        %2916 = vmatprep.subr.mxu0 0.0
        %2917 = vmatpush1.msra.mxu0 0.0
        %2918 = vmatprep.subr.mxu0 0.0
        %2919 = vmatpush1.msra.mxu0 0.0
        %2920 = vmatprep.subr.mxu0 0.0
        %2921 = vmatpush1.msra.mxu0 0.0
        %2922 = vmatprep.subr.mxu0 0.0
        %2923 = vmatpush1.msra.mxu0 0.0
        %2924 = vmatprep.subr.mxu0 0.0
        %2925 = vmatpush1.msra.mxu0 0.0
        %2926 = vmatprep.subr.mxu0 0.0
        %2927 = vmatpush1.msra.mxu0 0.0
        %2928 = vmatprep.subr.mxu0 0.0
        %2929 = vmatpush1.msra.mxu0 0.0
        %2930 = vmatprep.subr.mxu0 0.0
        %2931 = vmatpush1.msra.mxu0 0.0
        %2932 = vmatprep.mubr.f32.mxu0 0.0
        %2933 = vmatmul.mubr.f32.gmra.mrb[0].mxu0 %v2857
        %v2934 = vpop.f32.mrb[0].mxu0
        %v2935 = vadd.f32 %v2855, %v2934
        %v2936 = vpop.f32.mrb[0].mxu0
        %2937 = vmatprep.mubr.f32.mxu0 0.0
        %2938 = vmatmul.mubr.f32.gmra.mrb[0].mxu0 %v2860
        %v2939 = vpop.f32.mrb[0].mxu0
        %v2940 = vadd.f32 %v2855, %v2939
        %v2941 = vpop.f32.mrb[0].mxu0
        %2942 = vmatprep.mubr.f32.mxu0 0.0
        %2943 = vmatmul.mubr.f32.gmra.mrb[0].mxu0 %v2863
        %v2944 = vpop.f32.mrb[0].mxu0
        %v2945 = vadd.f32 %v2855, %v2944
        %v2946 = vpop.f32.mrb[0].mxu0
        %2947 = vmatprep.mubr.f32.mxu0 0.0
        %2948 = vmatmul.mubr.f32.gmra.mrb[0].mxu0 %v2866
        %v2949 = vpop.f32.mrb[0].mxu0
        %v2950 = vadd.f32 %v2855, %v2949
        %v2951 = vpop.f32.mrb[0].mxu0
        %2952 = vdwg.mxu0
        %v2953 = vmax.f32 %v2935, 0.0
        %v2954 = vmax.f32 %v2940, 0.0
        %v2955 = vmax.f32 %v2945, 0.0
        %v2956 = vmax.f32 %v2950, 0.0
        %vm2957 = vcmask 523264
        %v2959 = vsel %vm2957, %v2953, 0
        %v2962 = vsel %vm2957, %v2954, 0
        %v2965 = vsel %vm2957, %v2955, 0
        %v2968 = vsel %vm2957, %v2956, 0
        %2970 = vmatprep.subr.mxu0 0.0
        %2971 = vmatpush1.msra.mxu0 %v2843
        %2972 = vmatprep.subr.mxu0 0.0
        %2973 = vmatpush1.msra.mxu0 %v2844
        %2974 = vmatprep.subr.mxu0 0.0
        %2975 = vmatpush1.msra.mxu0 %v2845
        %2976 = vmatprep.subr.mxu0 0.0
        %2977 = vmatpush1.msra.mxu0 %v2846
        %2978 = vmatprep.subr.mxu0 0.0
        %2979 = vmatpush1.msra.mxu0 %v2847
        %2980 = vmatprep.subr.mxu0 0.0
        %2981 = vmatpush1.msra.mxu0 %v2848
        %2982 = vmatprep.subr.mxu0 0.0
        %2983 = vmatpush1.msra.mxu0 %v2849
        %2984 = vmatprep.subr.mxu0 0.0
        %2985 = vmatpush1.msra.mxu0 %v2850
        %2986 = vmatprep.subr.mxu0 0.0
        %2987 = vmatpush1.msra.mxu0 0.0
        %2988 = vmatprep.subr.mxu0 0.0
        %2989 = vmatpush1.msra.mxu0 0.0
        %2990 = vmatprep.subr.mxu0 0.0
        %2991 = vmatpush1.msra.mxu0 0.0
        %2992 = vmatprep.subr.mxu0 0.0
        %2993 = vmatpush1.msra.mxu0 0.0
        %2994 = vmatprep.subr.mxu0 0.0
        %2995 = vmatpush1.msra.mxu0 0.0
        %2996 = vmatprep.subr.mxu0 0.0
        %2997 = vmatpush1.msra.mxu0 0.0
        %2998 = vmatprep.subr.mxu0 0.0
        %2999 = vmatpush1.msra.mxu0 0.0
        %3000 = vmatprep.subr.mxu0 0.0
        %3001 = vmatpush1.msra.mxu0 0.0
        %3002 = vmatprep.subr.mxu0 0.0
        %3003 = vmatpush1.msra.mxu0 0.0
        %3004 = vmatprep.subr.mxu0 0.0
        %3005 = vmatpush1.msra.mxu0 0.0
        %3006 = vmatprep.subr.mxu0 0.0
        %3007 = vmatpush1.msra.mxu0 0.0
        %3008 = vmatprep.subr.mxu0 0.0
        %3009 = vmatpush1.msra.mxu0 0.0
        %3010 = vmatprep.subr.mxu0 0.0
        %3011 = vmatpush1.msra.mxu0 0.0
        %3012 = vmatprep.subr.mxu0 0.0
        %3013 = vmatpush1.msra.mxu0 0.0
        %3014 = vmatprep.subr.mxu0 0.0
        %3015 = vmatpush1.msra.mxu0 0.0
        %3016 = vmatprep.subr.mxu0 0.0
        %3017 = vmatpush1.msra.mxu0 0.0
        %3018 = vmatprep.subr.mxu0 0.0
        %3019 = vmatpush1.msra.mxu0 0.0
        %3020 = vmatprep.subr.mxu0 0.0
        %3021 = vmatpush1.msra.mxu0 0.0
        %3022 = vmatprep.subr.mxu0 0.0
        %3023 = vmatpush1.msra.mxu0 0.0
        %3024 = vmatprep.subr.mxu0 0.0
        %3025 = vmatpush1.msra.mxu0 0.0
        %3026 = vmatprep.subr.mxu0 0.0
        %3027 = vmatpush1.msra.mxu0 0.0
        %3028 = vmatprep.subr.mxu0 0.0
        %3029 = vmatpush1.msra.mxu0 0.0
        %3030 = vmatprep.subr.mxu0 0.0
        %3031 = vmatpush1.msra.mxu0 0.0
        %3032 = vmatprep.subr.mxu0 0.0
        %3033 = vmatpush1.msra.mxu0 0.0
        %3034 = vmatprep.mubr.f32.mxu0 0.0
        %3035 = vmatmul.mubr.f32.gmra.mrb[0].mxu0 %v2959
        %v3036 = vpop.f32.mrb[0].mxu0
        %v3037 = vadd.f32 0.0, %v3036
        %v3038 = vpop.f32.mrb[0].mxu0
        %3039 = vmatprep.mubr.f32.mxu0 0.0
        %3040 = vmatmul.mubr.f32.gmra.mrb[0].mxu0 %v2962
        %v3041 = vpop.f32.mrb[0].mxu0
        %v3042 = vadd.f32 0.0, %v3041
        %v3043 = vpop.f32.mrb[0].mxu0
        %3044 = vmatprep.mubr.f32.mxu0 0.0
        %3045 = vmatmul.mubr.f32.gmra.mrb[0].mxu0 %v2965
        %v3046 = vpop.f32.mrb[0].mxu0
        %v3047 = vadd.f32 0.0, %v3046
        %v3048 = vpop.f32.mrb[0].mxu0
        %3049 = vmatprep.mubr.f32.mxu0 0.0
        %3050 = vmatmul.mubr.f32.gmra.mrb[0].mxu0 %v2968
        %v3051 = vpop.f32.mrb[0].mxu0
        %v3052 = vadd.f32 0.0, %v3051
        %v3053 = vpop.f32.mrb[0].mxu0
        %3054 = vdwg.mxu0
        %v3055 = vadd.f32 %v2766, %v3037
        %v3056 = vadd.f32 %v2767, %v3042
        %v3057 = vadd.f32 %v2768, %v3047
        %v3058 = vadd.f32 %v2769, %v3052
        %v3059 = vlaneseq
        %v3060 = vshrl.u32 %v3059, 7
        %v3061 = vsub.s32 0, %v3060
        %v3062 = vrot.slane %v2851, %v3061
        %v3063 = vadd.f32 %v3055, %v3062
        %v3064 = vadd.f32 %v3056, %v3062
        %v3065 = vadd.f32 %v3057, %v3062
        %v3066 = vadd.f32 %v3058, %v3062
        %s3067 = scalar_lea.vmem %s5, 4
        %v3068 = vld [vmem:[%s3067] sm:$0xf]
        %v3069 = vsel %vm451, %v3063, 0.0
        %3070 = vadd.xlane.f32.xlu0 %v3069
        %v3071 = vpop.xlane.xlu0 %3070
        %v3072 = vsel %vm451, %v3064, 0.0
        %3073 = vadd.xlane.f32.xlu0 %v3072
        %v3074 = vpop.xlane.xlu0 %3073
        %v3075 = vsel %vm451, %v3065, 0.0
        %3076 = vadd.xlane.f32.xlu0 %v3075
        %v3077 = vpop.xlane.xlu0 %3076
        %v3078 = vsel %vm451, %v3066, 0.0
        %3079 = vadd.xlane.f32.xlu0 %v3078
        %v3080 = vpop.xlane.xlu0 %3079
        %v3081 = vmul.f32 %v3071, %v564
        %v3082 = vmul.f32 %v3074, %v564
        %v3083 = vmul.f32 %v3077, %v564
        %v3084 = vmul.f32 %v3080, %v564
        %v3085 = vsub.f32 %v3063, %v3081
        %v3086 = vsub.f32 %v3064, %v3082
        %v3087 = vsub.f32 %v3065, %v3083
        %v3088 = vsub.f32 %v3066, %v3084
        %v3089 = vmul.f32 %v3085, %v3085
        %v3090 = vmul.f32 %v3086, %v3086
        %v3091 = vmul.f32 %v3087, %v3087
        %v3092 = vmul.f32 %v3088, %v3088
        %v3093 = vsel %vm451, %v3089, 0.0
        %3094 = vadd.xlane.f32.xlu0 %v3093
        %v3095 = vpop.xlane.xlu0 %3094
        %v3096 = vsel %vm451, %v3090, 0.0
        %3097 = vadd.xlane.f32.xlu0 %v3096
        %v3098 = vpop.xlane.xlu0 %3097
        %v3099 = vsel %vm451, %v3091, 0.0
        %3100 = vadd.xlane.f32.xlu0 %v3099
        %v3101 = vpop.xlane.xlu0 %3100
        %v3102 = vsel %vm451, %v3092, 0.0
        %3103 = vadd.xlane.f32.xlu0 %v3102
        %v3104 = vpop.xlane.xlu0 %3103
        %v3105 = vmul.f32 %v3095, %v564
        %v3106 = vmul.f32 %v3098, %v564
        %v3107 = vmul.f32 %v3101, %v564
        %v3108 = vmul.f32 %v3104, %v564
        %v3109 = vadd.f32 %v3105, 1e-05
        %v3110 = vadd.f32 %v3106, 1e-05
        %v3111 = vadd.f32 %v3107, 1e-05
        %v3112 = vadd.f32 %v3108, 1e-05
        %v3113 = vrsqrt.pop %v3109
        %v3114 = vrsqrt.pop %v3110
        %v3115 = vrsqrt.pop %v3111
        %v3116 = vrsqrt.pop %v3112
        %v3117 = vmul.f32 %v3085, %v3113
        %v3118 = vmul.f32 %v3086, %v3114
        %v3119 = vmul.f32 %v3087, %v3115
        %v3120 = vmul.f32 %v3088, %v3116
        %v3121 = vlaneseq
        %v3122 = vshrl.u32 %v3121, 7
        %v3123 = vsub.s32 0, %v3122
        %v3124 = vrot.slane %v3068, %v3123
        %v3125 = vmul.f32 %v3117, %v3124
        %v3126 = vmul.f32 %v3118, %v3124
        %v3127 = vmul.f32 %v3119, %v3124
        %v3128 = vmul.f32 %v3120, %v3124
        %v3129 = vlaneseq
        %v3130 = vshrl.u32 %v3129, 7
        %v3131 = vsub.s32 1, %v3130
        %v3132 = vrot.slane %v3068, %v3131
        %v3133 = vadd.f32 %v3125, %v3132
        %v3134 = vadd.f32 %v3126, %v3132
        %v3135 = vadd.f32 %v3127, %v3132
        %v3136 = vadd.f32 %v3128, %v3132
        %s3137 = scalar_lea.vmem %s3, 40
        %v3138 = vld [vmem:[%s3137] sm:$0xff]
        %v3139 = vld [vmem:[%s3137 + $0x8] sm:$0xff]
        %v3140 = vld [vmem:[%s3137 + $0x10] sm:$0xff]
        %v3141 = vld [vmem:[%s3137 + $0x18] sm:$0xff]
        %v3142 = vld [vmem:[%s3137 + $0x20] sm:$0x1]
        %v3143 = vlaneseq
        %v3144 = vshrl.u32 %v3143, 7
        %v3145 = vsub.s32 0, %v3144
        %v3146 = vrot.slane %v3142, %v3145
        %v3148 = vsel %vm451, %v3133, 0
        %v3151 = vsel %vm451, %v3134, 0
        %v3154 = vsel %vm451, %v3135, 0
        %v3157 = vsel %vm451, %v3136, 0
        %3159 = vmatprep.subr.mxu0 0.0
        %3160 = vmatpush1.msra.mxu0 %v3138
        %3161 = vmatprep.subr.mxu0 0.0
        %3162 = vmatpush1.msra.mxu0 %v3139
        %3163 = vmatprep.subr.mxu0 0.0
        %3164 = vmatpush1.msra.mxu0 %v3140
        %3165 = vmatprep.subr.mxu0 0.0
        %3166 = vmatpush1.msra.mxu0 %v3141
        %3167 = vmatprep.subr.mxu0 0.0
        %3168 = vmatpush1.msra.mxu0 0.0
        %3169 = vmatprep.subr.mxu0 0.0
        %3170 = vmatpush1.msra.mxu0 0.0
        %3171 = vmatprep.subr.mxu0 0.0
        %3172 = vmatpush1.msra.mxu0 0.0
        %3173 = vmatprep.subr.mxu0 0.0
        %3174 = vmatpush1.msra.mxu0 0.0
        %3175 = vmatprep.subr.mxu0 0.0
        %3176 = vmatpush1.msra.mxu0 0.0
        %3177 = vmatprep.subr.mxu0 0.0
        %3178 = vmatpush1.msra.mxu0 0.0
        %3179 = vmatprep.subr.mxu0 0.0
        %3180 = vmatpush1.msra.mxu0 0.0
        %3181 = vmatprep.subr.mxu0 0.0
        %3182 = vmatpush1.msra.mxu0 0.0
        %3183 = vmatprep.subr.mxu0 0.0
        %3184 = vmatpush1.msra.mxu0 0.0
        %3185 = vmatprep.subr.mxu0 0.0
        %3186 = vmatpush1.msra.mxu0 0.0
        %3187 = vmatprep.subr.mxu0 0.0
        %3188 = vmatpush1.msra.mxu0 0.0
        %3189 = vmatprep.subr.mxu0 0.0
        %3190 = vmatpush1.msra.mxu0 0.0
        %3191 = vmatprep.subr.mxu0 0.0
        %3192 = vmatpush1.msra.mxu0 0.0
        %3193 = vmatprep.subr.mxu0 0.0
        %3194 = vmatpush1.msra.mxu0 0.0
        %3195 = vmatprep.subr.mxu0 0.0
        %3196 = vmatpush1.msra.mxu0 0.0
        %3197 = vmatprep.subr.mxu0 0.0
        %3198 = vmatpush1.msra.mxu0 0.0
        %3199 = vmatprep.subr.mxu0 0.0
        %3200 = vmatpush1.msra.mxu0 0.0
        %3201 = vmatprep.subr.mxu0 0.0
        %3202 = vmatpush1.msra.mxu0 0.0
        %3203 = vmatprep.subr.mxu0 0.0
        %3204 = vmatpush1.msra.mxu0 0.0
        %3205 = vmatprep.subr.mxu0 0.0
        %3206 = vmatpush1.msra.mxu0 0.0
        %3207 = vmatprep.subr.mxu0 0.0
        %3208 = vmatpush1.msra.mxu0 0.0
        %3209 = vmatprep.subr.mxu0 0.0
        %3210 = vmatpush1.msra.mxu0 0.0
        %3211 = vmatprep.subr.mxu0 0.0
        %3212 = vmatpush1.msra.mxu0 0.0
        %3213 = vmatprep.subr.mxu0 0.0
        %3214 = vmatpush1.msra.mxu0 0.0
        %3215 = vmatprep.subr.mxu0 0.0
        %3216 = vmatpush1.msra.mxu0 0.0
        %3217 = vmatprep.subr.mxu0 0.0
        %3218 = vmatpush1.msra.mxu0 0.0
        %3219 = vmatprep.subr.mxu0 0.0
        %3220 = vmatpush1.msra.mxu0 0.0
        %3221 = vmatprep.subr.mxu0 0.0
        %3222 = vmatpush1.msra.mxu0 0.0
        %3223 = vmatprep.mubr.f32.mxu0 0.0
        %3224 = vmatmul.mubr.f32.gmra.mrb[0].mxu0 %v3148
        %v3225 = vpop.f32.mrb[0].mxu0
        %v3226 = vadd.f32 %v3146, %v3225
        %v3227 = vpop.f32.mrb[0].mxu0
        %3228 = vmatprep.mubr.f32.mxu0 0.0
        %3229 = vmatmul.mubr.f32.gmra.mrb[0].mxu0 %v3151
        %v3230 = vpop.f32.mrb[0].mxu0
        %v3231 = vadd.f32 %v3146, %v3230
        %v3232 = vpop.f32.mrb[0].mxu0
        %3233 = vmatprep.mubr.f32.mxu0 0.0
        %3234 = vmatmul.mubr.f32.gmra.mrb[0].mxu0 %v3154
        %v3235 = vpop.f32.mrb[0].mxu0
        %v3236 = vadd.f32 %v3146, %v3235
        %v3237 = vpop.f32.mrb[0].mxu0
        %3238 = vmatprep.mubr.f32.mxu0 0.0
        %3239 = vmatmul.mubr.f32.gmra.mrb[0].mxu0 %v3157
        %v3240 = vpop.f32.mrb[0].mxu0
        %v3241 = vadd.f32 %v3146, %v3240
        %v3242 = vpop.f32.mrb[0].mxu0
        %3243 = vdwg.mxu0
        %s3244 = scalar_lea.vmem %s4, 40
        %v3245 = vld [vmem:[%s3244] sm:$0xff]
        %v3246 = vld [vmem:[%s3244 + $0x8] sm:$0xff]
        %v3247 = vld [vmem:[%s3244 + $0x10] sm:$0xff]
        %v3248 = vld [vmem:[%s3244 + $0x18] sm:$0xff]
        %v3249 = vld [vmem:[%s3244 + $0x20] sm:$0x1]
        %3252 = vrot.lane.b32.xlu0 %v3226, 96
        %v3253 = vpop.permute.xlu0 %3252
        %3254 = vrot.lane.b32.xlu0 %v3231, 96
        %v3255 = vpop.permute.xlu0 %3254
        %v3256 = vsel %vm738, %v3226, 0
        %v3258 = vsel %vm738, %v3231, 0
        %v3260 = vsel %vm738, %v3253, 0
        %v3262 = vsel %vm738, %v3255, 0
        %3264 = vmatprep.subr.mxu0 0.0
        %3265 = vmatpush1.xpose.msra.mxu0 %v3260
        %3266 = vmatprep.subr.mxu0 0.0
        %3267 = vmatpush1.xpose.msra.mxu0 %v3262
        %3268 = vmatprep.subr.mxu0 0.0
        %3269 = vmatpush1.xpose.msra.mxu0 0.0
        %3270 = vmatprep.subr.mxu0 0.0
        %3271 = vmatpush1.xpose.msra.mxu0 0.0
        %3272 = vmatprep.subr.mxu0 0.0
        %3273 = vmatpush1.xpose.msra.mxu0 0.0
        %3274 = vmatprep.subr.mxu0 0.0
        %3275 = vmatpush1.xpose.msra.mxu0 0.0
        %3276 = vmatprep.subr.mxu0 0.0
        %3277 = vmatpush1.xpose.msra.mxu0 0.0
        %3278 = vmatprep.subr.mxu0 0.0
        %3279 = vmatpush1.xpose.msra.mxu0 0.0
        %3280 = vmatprep.subr.mxu0 0.0
        %3281 = vmatpush1.xpose.msra.mxu0 0.0
        %3282 = vmatprep.subr.mxu0 0.0
        %3283 = vmatpush1.xpose.msra.mxu0 0.0
        %3284 = vmatprep.subr.mxu0 0.0
        %3285 = vmatpush1.xpose.msra.mxu0 0.0
        %3286 = vmatprep.subr.mxu0 0.0
        %3287 = vmatpush1.xpose.msra.mxu0 0.0
        %3288 = vmatprep.subr.mxu0 0.0
        %3289 = vmatpush1.xpose.msra.mxu0 0.0
        %3290 = vmatprep.subr.mxu0 0.0
        %3291 = vmatpush1.xpose.msra.mxu0 0.0
        %3292 = vmatprep.subr.mxu0 0.0
        %3293 = vmatpush1.xpose.msra.mxu0 0.0
        %3294 = vmatprep.subr.mxu0 0.0
        %3295 = vmatpush1.xpose.msra.mxu0 0.0
        %3296 = vmatprep.subr.mxu0 0.0
        %3297 = vmatpush1.xpose.msra.mxu0 0.0
        %3298 = vmatprep.subr.mxu0 0.0
        %3299 = vmatpush1.xpose.msra.mxu0 0.0
        %3300 = vmatprep.subr.mxu0 0.0
        %3301 = vmatpush1.xpose.msra.mxu0 0.0
        %3302 = vmatprep.subr.mxu0 0.0
        %3303 = vmatpush1.xpose.msra.mxu0 0.0
        %3304 = vmatprep.subr.mxu0 0.0
        %3305 = vmatpush1.xpose.msra.mxu0 0.0
        %3306 = vmatprep.subr.mxu0 0.0
        %3307 = vmatpush1.xpose.msra.mxu0 0.0
        %3308 = vmatprep.subr.mxu0 0.0
        %3309 = vmatpush1.xpose.msra.mxu0 0.0
        %3310 = vmatprep.subr.mxu0 0.0
        %3311 = vmatpush1.xpose.msra.mxu0 0.0
        %3312 = vmatprep.subr.mxu0 0.0
        %3313 = vmatpush1.xpose.msra.mxu0 0.0
        %3314 = vmatprep.subr.mxu0 0.0
        %3315 = vmatpush1.xpose.msra.mxu0 0.0
        %3316 = vmatprep.subr.mxu0 0.0
        %3317 = vmatpush1.xpose.msra.mxu0 0.0
        %3318 = vmatprep.subr.mxu0 0.0
        %3319 = vmatpush1.xpose.msra.mxu0 0.0
        %3320 = vmatprep.subr.mxu0 0.0
        %3321 = vmatpush1.xpose.msra.mxu0 0.0
        %3322 = vmatprep.subr.mxu0 0.0
        %3323 = vmatpush1.xpose.msra.mxu0 0.0
        %3324 = vmatprep.subr.mxu0 0.0
        %3325 = vmatpush1.xpose.msra.mxu0 0.0
        %3326 = vmatprep.subr.mxu0 0.0
        %3327 = vmatpush1.xpose.msra.mxu0 0.0
        %3328 = vmatprep.mubr.f32.mxu0 0.0
        %3329 = vmatmul.mubr.f32.gmra.mrb[0].mxu0 %v3256
        %v3330 = vpop.f32.mrb[0].mxu0
        %v3331 = vadd.f32 0.0, %v3330
        %v3332 = vpop.f32.mrb[0].mxu0
        %3333 = vmatprep.mubr.f32.mxu0 0.0
        %3334 = vmatmul.mubr.f32.gmra.mrb[0].mxu0 %v3258
        %v3335 = vpop.f32.mrb[0].mxu0
        %v3336 = vadd.f32 0.0, %v3335
        %v3337 = vpop.f32.mrb[0].mxu0
        %3338 = vdwg.mxu0
        %3341 = vrot.lane.b32.xlu0 %v3236, 96
        %v3342 = vpop.permute.xlu0 %3341
        %3343 = vrot.lane.b32.xlu0 %v3241, 96
        %v3344 = vpop.permute.xlu0 %3343
        %v3345 = vsel %vm738, %v3236, 0
        %v3347 = vsel %vm738, %v3241, 0
        %v3349 = vsel %vm738, %v3342, 0
        %v3351 = vsel %vm738, %v3344, 0
        %3353 = vmatprep.subr.mxu0 0.0
        %3354 = vmatpush1.xpose.msra.mxu0 %v3349
        %3355 = vmatprep.subr.mxu0 0.0
        %3356 = vmatpush1.xpose.msra.mxu0 %v3351
        %3357 = vmatprep.subr.mxu0 0.0
        %3358 = vmatpush1.xpose.msra.mxu0 0.0
        %3359 = vmatprep.subr.mxu0 0.0
        %3360 = vmatpush1.xpose.msra.mxu0 0.0
        %3361 = vmatprep.subr.mxu0 0.0
        %3362 = vmatpush1.xpose.msra.mxu0 0.0
        %3363 = vmatprep.subr.mxu0 0.0
        %3364 = vmatpush1.xpose.msra.mxu0 0.0
        %3365 = vmatprep.subr.mxu0 0.0
        %3366 = vmatpush1.xpose.msra.mxu0 0.0
        %3367 = vmatprep.subr.mxu0 0.0
        %3368 = vmatpush1.xpose.msra.mxu0 0.0
        %3369 = vmatprep.subr.mxu0 0.0
        %3370 = vmatpush1.xpose.msra.mxu0 0.0
        %3371 = vmatprep.subr.mxu0 0.0
        %3372 = vmatpush1.xpose.msra.mxu0 0.0
        %3373 = vmatprep.subr.mxu0 0.0
        %3374 = vmatpush1.xpose.msra.mxu0 0.0
        %3375 = vmatprep.subr.mxu0 0.0
        %3376 = vmatpush1.xpose.msra.mxu0 0.0
        %3377 = vmatprep.subr.mxu0 0.0
        %3378 = vmatpush1.xpose.msra.mxu0 0.0
        %3379 = vmatprep.subr.mxu0 0.0
        %3380 = vmatpush1.xpose.msra.mxu0 0.0
        %3381 = vmatprep.subr.mxu0 0.0
        %3382 = vmatpush1.xpose.msra.mxu0 0.0
        %3383 = vmatprep.subr.mxu0 0.0
        %3384 = vmatpush1.xpose.msra.mxu0 0.0
        %3385 = vmatprep.subr.mxu0 0.0
        %3386 = vmatpush1.xpose.msra.mxu0 0.0
        %3387 = vmatprep.subr.mxu0 0.0
        %3388 = vmatpush1.xpose.msra.mxu0 0.0
        %3389 = vmatprep.subr.mxu0 0.0
        %3390 = vmatpush1.xpose.msra.mxu0 0.0
        %3391 = vmatprep.subr.mxu0 0.0
        %3392 = vmatpush1.xpose.msra.mxu0 0.0
        %3393 = vmatprep.subr.mxu0 0.0
        %3394 = vmatpush1.xpose.msra.mxu0 0.0
        %3395 = vmatprep.subr.mxu0 0.0
        %3396 = vmatpush1.xpose.msra.mxu0 0.0
        %3397 = vmatprep.subr.mxu0 0.0
        %3398 = vmatpush1.xpose.msra.mxu0 0.0
        %3399 = vmatprep.subr.mxu0 0.0
        %3400 = vmatpush1.xpose.msra.mxu0 0.0
        %3401 = vmatprep.subr.mxu0 0.0
        %3402 = vmatpush1.xpose.msra.mxu0 0.0
        %3403 = vmatprep.subr.mxu0 0.0
        %3404 = vmatpush1.xpose.msra.mxu0 0.0
        %3405 = vmatprep.subr.mxu0 0.0
        %3406 = vmatpush1.xpose.msra.mxu0 0.0
        %3407 = vmatprep.subr.mxu0 0.0
        %3408 = vmatpush1.xpose.msra.mxu0 0.0
        %3409 = vmatprep.subr.mxu0 0.0
        %3410 = vmatpush1.xpose.msra.mxu0 0.0
        %3411 = vmatprep.subr.mxu0 0.0
        %3412 = vmatpush1.xpose.msra.mxu0 0.0
        %3413 = vmatprep.subr.mxu0 0.0
        %3414 = vmatpush1.xpose.msra.mxu0 0.0
        %3415 = vmatprep.subr.mxu0 0.0
        %3416 = vmatpush1.xpose.msra.mxu0 0.0
        %3417 = vmatprep.mubr.f32.mxu0 0.0
        %3418 = vmatmul.mubr.f32.gmra.mrb[0].mxu0 %v3345
        %v3419 = vpop.f32.mrb[0].mxu0
        %v3420 = vadd.f32 0.0, %v3419
        %v3421 = vpop.f32.mrb[0].mxu0
        %3422 = vmatprep.mubr.f32.mxu0 0.0
        %3423 = vmatmul.mubr.f32.gmra.mrb[0].mxu0 %v3347
        %v3424 = vpop.f32.mrb[0].mxu0
        %v3425 = vadd.f32 0.0, %v3424
        %v3426 = vpop.f32.mrb[0].mxu0
        %3427 = vdwg.mxu0
        %v3428 = vmul.f32 %v3331, 0.35355338
        %v3429 = vmul.f32 %v3336, 0.35355338
        %v3430 = vmul.f32 %v3420, 0.35355338
        %v3431 = vmul.f32 %v3425, 0.35355338
        %v3432 = vadd.f32 %v3428, %v549
        %v3433 = vadd.f32 %v3429, %v550
        %v3434 = vadd.f32 %v3430, %v549
        %v3435 = vadd.f32 %v3431, %v550
        %v3436 = vsel %vm919, %v3432, -inf
        %3437 = vmax.xlane.f32.xlu0 %v3436
        %v3438 = vpop.xlane.xlu0 %3437
        %v3439 = vsel %vm919, %v3433, -inf
        %3440 = vmax.xlane.f32.xlu0 %v3439
        %v3441 = vpop.xlane.xlu0 %3440
        %v3442 = vsel %vm919, %v3434, -inf
        %3443 = vmax.xlane.f32.xlu0 %v3442
        %v3444 = vpop.xlane.xlu0 %3443
        %v3445 = vsel %vm919, %v3435, -inf
        %3446 = vmax.xlane.f32.xlu0 %v3445
        %v3447 = vpop.xlane.xlu0 %3446
        %v3448 = vsub.f32 %v3432, %v3438
        %v3449 = vsub.f32 %v3433, %v3441
        %v3450 = vsub.f32 %v3434, %v3444
        %v3451 = vsub.f32 %v3435, %v3447
        %v3452 = vmul.f32 %v3448, 1.442695
        %v3453 = vpow.pop %v3452
        %v3454 = vmul.f32 %v3449, 1.442695
        %v3455 = vpow.pop %v3454
        %v3456 = vmul.f32 %v3450, 1.442695
        %v3457 = vpow.pop %v3456
        %v3458 = vmul.f32 %v3451, 1.442695
        %v3459 = vpow.pop %v3458
        %v3460 = vsel %vm919, %v3453, 0.0
        %3461 = vadd.xlane.f32.xlu0 %v3460
        %v3462 = vpop.xlane.xlu0 %3461
        %v3463 = vsel %vm919, %v3455, 0.0
        %3464 = vadd.xlane.f32.xlu0 %v3463
        %v3465 = vpop.xlane.xlu0 %3464
        %v3466 = vsel %vm919, %v3457, 0.0
        %3467 = vadd.xlane.f32.xlu0 %v3466
        %v3468 = vpop.xlane.xlu0 %3467
        %v3469 = vsel %vm919, %v3459, 0.0
        %3470 = vadd.xlane.f32.xlu0 %v3469
        %v3471 = vpop.xlane.xlu0 %3470
        %v3472 = vrcp.pop %v3462
        %v3473 = vrcp.pop %v3465
        %v3474 = vrcp.pop %v3468
        %v3475 = vrcp.pop %v3471
        %v3476 = vmul.f32 %v3453, %v3472
        %v3477 = vmul.f32 %v3455, %v3473
        %v3478 = vmul.f32 %v3457, %v3474
        %v3479 = vmul.f32 %v3459, %v3475
        %3480 = vrot.lane.b32.xlu0 %v3226, 64
        %v3481 = vpop.permute.xlu0 %3480
        %3482 = vrot.lane.b32.xlu0 %v3231, 64
        %v3483 = vpop.permute.xlu0 %3482
        %v3487 = vsel %vm919, %v3476, 0
        %v3490 = vsel %vm919, %v3477, 0
        %3492 = vmatprep.subr.mxu0 0.0
        %3493 = vmatpush1.msra.mxu0 %v3481
        %3494 = vmatprep.subr.mxu0 0.0
        %3495 = vmatpush1.msra.mxu0 %v3483
        %3496 = vmatprep.subr.mxu0 0.0
        %3497 = vmatpush1.msra.mxu0 0.0
        %3498 = vmatprep.subr.mxu0 0.0
        %3499 = vmatpush1.msra.mxu0 0.0
        %3500 = vmatprep.subr.mxu0 0.0
        %3501 = vmatpush1.msra.mxu0 0.0
        %3502 = vmatprep.subr.mxu0 0.0
        %3503 = vmatpush1.msra.mxu0 0.0
        %3504 = vmatprep.subr.mxu0 0.0
        %3505 = vmatpush1.msra.mxu0 0.0
        %3506 = vmatprep.subr.mxu0 0.0
        %3507 = vmatpush1.msra.mxu0 0.0
        %3508 = vmatprep.subr.mxu0 0.0
        %3509 = vmatpush1.msra.mxu0 0.0
        %3510 = vmatprep.subr.mxu0 0.0
        %3511 = vmatpush1.msra.mxu0 0.0
        %3512 = vmatprep.subr.mxu0 0.0
        %3513 = vmatpush1.msra.mxu0 0.0
        %3514 = vmatprep.subr.mxu0 0.0
        %3515 = vmatpush1.msra.mxu0 0.0
        %3516 = vmatprep.subr.mxu0 0.0
        %3517 = vmatpush1.msra.mxu0 0.0
        %3518 = vmatprep.subr.mxu0 0.0
        %3519 = vmatpush1.msra.mxu0 0.0
        %3520 = vmatprep.subr.mxu0 0.0
        %3521 = vmatpush1.msra.mxu0 0.0
        %3522 = vmatprep.subr.mxu0 0.0
        %3523 = vmatpush1.msra.mxu0 0.0
        %3524 = vmatprep.subr.mxu0 0.0
        %3525 = vmatpush1.msra.mxu0 0.0
        %3526 = vmatprep.subr.mxu0 0.0
        %3527 = vmatpush1.msra.mxu0 0.0
        %3528 = vmatprep.subr.mxu0 0.0
        %3529 = vmatpush1.msra.mxu0 0.0
        %3530 = vmatprep.subr.mxu0 0.0
        %3531 = vmatpush1.msra.mxu0 0.0
        %3532 = vmatprep.subr.mxu0 0.0
        %3533 = vmatpush1.msra.mxu0 0.0
        %3534 = vmatprep.subr.mxu0 0.0
        %3535 = vmatpush1.msra.mxu0 0.0
        %3536 = vmatprep.subr.mxu0 0.0
        %3537 = vmatpush1.msra.mxu0 0.0
        %3538 = vmatprep.subr.mxu0 0.0
        %3539 = vmatpush1.msra.mxu0 0.0
        %3540 = vmatprep.subr.mxu0 0.0
        %3541 = vmatpush1.msra.mxu0 0.0
        %3542 = vmatprep.subr.mxu0 0.0
        %3543 = vmatpush1.msra.mxu0 0.0
        %3544 = vmatprep.subr.mxu0 0.0
        %3545 = vmatpush1.msra.mxu0 0.0
        %3546 = vmatprep.subr.mxu0 0.0
        %3547 = vmatpush1.msra.mxu0 0.0
        %3548 = vmatprep.subr.mxu0 0.0
        %3549 = vmatpush1.msra.mxu0 0.0
        %3550 = vmatprep.subr.mxu0 0.0
        %3551 = vmatpush1.msra.mxu0 0.0
        %3552 = vmatprep.subr.mxu0 0.0
        %3553 = vmatpush1.msra.mxu0 0.0
        %3554 = vmatprep.subr.mxu0 0.0
        %3555 = vmatpush1.msra.mxu0 0.0
        %3556 = vmatprep.mubr.f32.mxu0 0.0
        %3557 = vmatmul.mubr.f32.gmra.mrb[0].mxu0 %v3487
        %v3558 = vpop.f32.mrb[0].mxu0
        %v3559 = vadd.f32 0.0, %v3558
        %v3560 = vpop.f32.mrb[0].mxu0
        %3561 = vmatprep.mubr.f32.mxu0 0.0
        %3562 = vmatmul.mubr.f32.gmra.mrb[0].mxu0 %v3490
        %v3563 = vpop.f32.mrb[0].mxu0
        %v3564 = vadd.f32 0.0, %v3563
        %v3565 = vpop.f32.mrb[0].mxu0
        %3566 = vdwg.mxu0
        %3567 = vrot.lane.b32.xlu0 %v3236, 64
        %v3568 = vpop.permute.xlu0 %3567
        %3569 = vrot.lane.b32.xlu0 %v3241, 64
        %v3570 = vpop.permute.xlu0 %3569
        %v3574 = vsel %vm919, %v3478, 0
        %v3577 = vsel %vm919, %v3479, 0
        %3579 = vmatprep.subr.mxu0 0.0
        %3580 = vmatpush1.msra.mxu0 %v3568
        %3581 = vmatprep.subr.mxu0 0.0
        %3582 = vmatpush1.msra.mxu0 %v3570
        %3583 = vmatprep.subr.mxu0 0.0
        %3584 = vmatpush1.msra.mxu0 0.0
        %3585 = vmatprep.subr.mxu0 0.0
        %3586 = vmatpush1.msra.mxu0 0.0
        %3587 = vmatprep.subr.mxu0 0.0
        %3588 = vmatpush1.msra.mxu0 0.0
        %3589 = vmatprep.subr.mxu0 0.0
        %3590 = vmatpush1.msra.mxu0 0.0
        %3591 = vmatprep.subr.mxu0 0.0
        %3592 = vmatpush1.msra.mxu0 0.0
        %3593 = vmatprep.subr.mxu0 0.0
        %3594 = vmatpush1.msra.mxu0 0.0
        %3595 = vmatprep.subr.mxu0 0.0
        %3596 = vmatpush1.msra.mxu0 0.0
        %3597 = vmatprep.subr.mxu0 0.0
        %3598 = vmatpush1.msra.mxu0 0.0
        %3599 = vmatprep.subr.mxu0 0.0
        %3600 = vmatpush1.msra.mxu0 0.0
        %3601 = vmatprep.subr.mxu0 0.0
        %3602 = vmatpush1.msra.mxu0 0.0
        %3603 = vmatprep.subr.mxu0 0.0
        %3604 = vmatpush1.msra.mxu0 0.0
        %3605 = vmatprep.subr.mxu0 0.0
        %3606 = vmatpush1.msra.mxu0 0.0
        %3607 = vmatprep.subr.mxu0 0.0
        %3608 = vmatpush1.msra.mxu0 0.0
        %3609 = vmatprep.subr.mxu0 0.0
        %3610 = vmatpush1.msra.mxu0 0.0
        %3611 = vmatprep.subr.mxu0 0.0
        %3612 = vmatpush1.msra.mxu0 0.0
        %3613 = vmatprep.subr.mxu0 0.0
        %3614 = vmatpush1.msra.mxu0 0.0
        %3615 = vmatprep.subr.mxu0 0.0
        %3616 = vmatpush1.msra.mxu0 0.0
        %3617 = vmatprep.subr.mxu0 0.0
        %3618 = vmatpush1.msra.mxu0 0.0
        %3619 = vmatprep.subr.mxu0 0.0
        %3620 = vmatpush1.msra.mxu0 0.0
        %3621 = vmatprep.subr.mxu0 0.0
        %3622 = vmatpush1.msra.mxu0 0.0
        %3623 = vmatprep.subr.mxu0 0.0
        %3624 = vmatpush1.msra.mxu0 0.0
        %3625 = vmatprep.subr.mxu0 0.0
        %3626 = vmatpush1.msra.mxu0 0.0
        %3627 = vmatprep.subr.mxu0 0.0
        %3628 = vmatpush1.msra.mxu0 0.0
        %3629 = vmatprep.subr.mxu0 0.0
        %3630 = vmatpush1.msra.mxu0 0.0
        %3631 = vmatprep.subr.mxu0 0.0
        %3632 = vmatpush1.msra.mxu0 0.0
        %3633 = vmatprep.subr.mxu0 0.0
        %3634 = vmatpush1.msra.mxu0 0.0
        %3635 = vmatprep.subr.mxu0 0.0
        %3636 = vmatpush1.msra.mxu0 0.0
        %3637 = vmatprep.subr.mxu0 0.0
        %3638 = vmatpush1.msra.mxu0 0.0
        %3639 = vmatprep.subr.mxu0 0.0
        %3640 = vmatpush1.msra.mxu0 0.0
        %3641 = vmatprep.subr.mxu0 0.0
        %3642 = vmatpush1.msra.mxu0 0.0
        %3643 = vmatprep.mubr.f32.mxu0 0.0
        %3644 = vmatmul.mubr.f32.gmra.mrb[0].mxu0 %v3574
        %v3645 = vpop.f32.mrb[0].mxu0
        %v3646 = vadd.f32 0.0, %v3645
        %v3647 = vpop.f32.mrb[0].mxu0
        %3648 = vmatprep.mubr.f32.mxu0 0.0
        %3649 = vmatmul.mubr.f32.gmra.mrb[0].mxu0 %v3577
        %v3650 = vpop.f32.mrb[0].mxu0
        %v3651 = vadd.f32 0.0, %v3650
        %v3652 = vpop.f32.mrb[0].mxu0
        %3653 = vdwg.mxu0
        %3654 = vrot.lane.b32.xlu0 %v3226, 120
        %v3655 = vpop.permute.xlu0 %3654
        %3656 = vrot.lane.b32.xlu0 %v3231, 120
        %v3657 = vpop.permute.xlu0 %3656
        %3658 = vrot.lane.b32.xlu0 %v3226, 88
        %v3659 = vpop.permute.xlu0 %3658
        %3660 = vrot.lane.b32.xlu0 %v3231, 88
        %v3661 = vpop.permute.xlu0 %3660
        %v3662 = vsel %vm738, %v3655, 0
        %v3664 = vsel %vm738, %v3657, 0
        %v3666 = vsel %vm738, %v3659, 0
        %v3668 = vsel %vm738, %v3661, 0
        %3670 = vmatprep.subr.mxu0 0.0
        %3671 = vmatpush1.xpose.msra.mxu0 %v3666
        %3672 = vmatprep.subr.mxu0 0.0
        %3673 = vmatpush1.xpose.msra.mxu0 %v3668
        %3674 = vmatprep.subr.mxu0 0.0
        %3675 = vmatpush1.xpose.msra.mxu0 0.0
        %3676 = vmatprep.subr.mxu0 0.0
        %3677 = vmatpush1.xpose.msra.mxu0 0.0
        %3678 = vmatprep.subr.mxu0 0.0
        %3679 = vmatpush1.xpose.msra.mxu0 0.0
        %3680 = vmatprep.subr.mxu0 0.0
        %3681 = vmatpush1.xpose.msra.mxu0 0.0
        %3682 = vmatprep.subr.mxu0 0.0
        %3683 = vmatpush1.xpose.msra.mxu0 0.0
        %3684 = vmatprep.subr.mxu0 0.0
        %3685 = vmatpush1.xpose.msra.mxu0 0.0
        %3686 = vmatprep.subr.mxu0 0.0
        %3687 = vmatpush1.xpose.msra.mxu0 0.0
        %3688 = vmatprep.subr.mxu0 0.0
        %3689 = vmatpush1.xpose.msra.mxu0 0.0
        %3690 = vmatprep.subr.mxu0 0.0
        %3691 = vmatpush1.xpose.msra.mxu0 0.0
        %3692 = vmatprep.subr.mxu0 0.0
        %3693 = vmatpush1.xpose.msra.mxu0 0.0
        %3694 = vmatprep.subr.mxu0 0.0
        %3695 = vmatpush1.xpose.msra.mxu0 0.0
        %3696 = vmatprep.subr.mxu0 0.0
        %3697 = vmatpush1.xpose.msra.mxu0 0.0
        %3698 = vmatprep.subr.mxu0 0.0
        %3699 = vmatpush1.xpose.msra.mxu0 0.0
        %3700 = vmatprep.subr.mxu0 0.0
        %3701 = vmatpush1.xpose.msra.mxu0 0.0
        %3702 = vmatprep.subr.mxu0 0.0
        %3703 = vmatpush1.xpose.msra.mxu0 0.0
        %3704 = vmatprep.subr.mxu0 0.0
        %3705 = vmatpush1.xpose.msra.mxu0 0.0
        %3706 = vmatprep.subr.mxu0 0.0
        %3707 = vmatpush1.xpose.msra.mxu0 0.0
        %3708 = vmatprep.subr.mxu0 0.0
        %3709 = vmatpush1.xpose.msra.mxu0 0.0
        %3710 = vmatprep.subr.mxu0 0.0
        %3711 = vmatpush1.xpose.msra.mxu0 0.0
        %3712 = vmatprep.subr.mxu0 0.0
        %3713 = vmatpush1.xpose.msra.mxu0 0.0
        %3714 = vmatprep.subr.mxu0 0.0
        %3715 = vmatpush1.xpose.msra.mxu0 0.0
        %3716 = vmatprep.subr.mxu0 0.0
        %3717 = vmatpush1.xpose.msra.mxu0 0.0
        %3718 = vmatprep.subr.mxu0 0.0
        %3719 = vmatpush1.xpose.msra.mxu0 0.0
        %3720 = vmatprep.subr.mxu0 0.0
        %3721 = vmatpush1.xpose.msra.mxu0 0.0
        %3722 = vmatprep.subr.mxu0 0.0
        %3723 = vmatpush1.xpose.msra.mxu0 0.0
        %3724 = vmatprep.subr.mxu0 0.0
        %3725 = vmatpush1.xpose.msra.mxu0 0.0
        %3726 = vmatprep.subr.mxu0 0.0
        %3727 = vmatpush1.xpose.msra.mxu0 0.0
        %3728 = vmatprep.subr.mxu0 0.0
        %3729 = vmatpush1.xpose.msra.mxu0 0.0
        %3730 = vmatprep.subr.mxu0 0.0
        %3731 = vmatpush1.xpose.msra.mxu0 0.0
        %3732 = vmatprep.subr.mxu0 0.0
        %3733 = vmatpush1.xpose.msra.mxu0 0.0
        %3734 = vmatprep.mubr.f32.mxu0 0.0
        %3735 = vmatmul.mubr.f32.gmra.mrb[0].mxu0 %v3662
        %v3736 = vpop.f32.mrb[0].mxu0
        %v3737 = vadd.f32 0.0, %v3736
        %v3738 = vpop.f32.mrb[0].mxu0
        %3739 = vmatprep.mubr.f32.mxu0 0.0
        %3740 = vmatmul.mubr.f32.gmra.mrb[0].mxu0 %v3664
        %v3741 = vpop.f32.mrb[0].mxu0
        %v3742 = vadd.f32 0.0, %v3741
        %v3743 = vpop.f32.mrb[0].mxu0
        %3744 = vdwg.mxu0
        %3745 = vrot.lane.b32.xlu0 %v3236, 120
        %v3746 = vpop.permute.xlu0 %3745
        %3747 = vrot.lane.b32.xlu0 %v3241, 120
        %v3748 = vpop.permute.xlu0 %3747
        %3749 = vrot.lane.b32.xlu0 %v3236, 88
        %v3750 = vpop.permute.xlu0 %3749
        %3751 = vrot.lane.b32.xlu0 %v3241, 88
        %v3752 = vpop.permute.xlu0 %3751
        %v3753 = vsel %vm738, %v3746, 0
        %v3755 = vsel %vm738, %v3748, 0
        %v3757 = vsel %vm738, %v3750, 0
        %v3759 = vsel %vm738, %v3752, 0
        %3761 = vmatprep.subr.mxu0 0.0
        %3762 = vmatpush1.xpose.msra.mxu0 %v3757
        %3763 = vmatprep.subr.mxu0 0.0
        %3764 = vmatpush1.xpose.msra.mxu0 %v3759
        %3765 = vmatprep.subr.mxu0 0.0
        %3766 = vmatpush1.xpose.msra.mxu0 0.0
        %3767 = vmatprep.subr.mxu0 0.0
        %3768 = vmatpush1.xpose.msra.mxu0 0.0
        %3769 = vmatprep.subr.mxu0 0.0
        %3770 = vmatpush1.xpose.msra.mxu0 0.0
        %3771 = vmatprep.subr.mxu0 0.0
        %3772 = vmatpush1.xpose.msra.mxu0 0.0
        %3773 = vmatprep.subr.mxu0 0.0
        %3774 = vmatpush1.xpose.msra.mxu0 0.0
        %3775 = vmatprep.subr.mxu0 0.0
        %3776 = vmatpush1.xpose.msra.mxu0 0.0
        %3777 = vmatprep.subr.mxu0 0.0
        %3778 = vmatpush1.xpose.msra.mxu0 0.0
        %3779 = vmatprep.subr.mxu0 0.0
        %3780 = vmatpush1.xpose.msra.mxu0 0.0
        %3781 = vmatprep.subr.mxu0 0.0
        %3782 = vmatpush1.xpose.msra.mxu0 0.0
        %3783 = vmatprep.subr.mxu0 0.0
        %3784 = vmatpush1.xpose.msra.mxu0 0.0
        %3785 = vmatprep.subr.mxu0 0.0
        %3786 = vmatpush1.xpose.msra.mxu0 0.0
        %3787 = vmatprep.subr.mxu0 0.0
        %3788 = vmatpush1.xpose.msra.mxu0 0.0
        %3789 = vmatprep.subr.mxu0 0.0
        %3790 = vmatpush1.xpose.msra.mxu0 0.0
        %3791 = vmatprep.subr.mxu0 0.0
        %3792 = vmatpush1.xpose.msra.mxu0 0.0
        %3793 = vmatprep.subr.mxu0 0.0
        %3794 = vmatpush1.xpose.msra.mxu0 0.0
        %3795 = vmatprep.subr.mxu0 0.0
        %3796 = vmatpush1.xpose.msra.mxu0 0.0
        %3797 = vmatprep.subr.mxu0 0.0
        %3798 = vmatpush1.xpose.msra.mxu0 0.0
        %3799 = vmatprep.subr.mxu0 0.0
        %3800 = vmatpush1.xpose.msra.mxu0 0.0
        %3801 = vmatprep.subr.mxu0 0.0
        %3802 = vmatpush1.xpose.msra.mxu0 0.0
        %3803 = vmatprep.subr.mxu0 0.0
        %3804 = vmatpush1.xpose.msra.mxu0 0.0
        %3805 = vmatprep.subr.mxu0 0.0
        %3806 = vmatpush1.xpose.msra.mxu0 0.0
        %3807 = vmatprep.subr.mxu0 0.0
        %3808 = vmatpush1.xpose.msra.mxu0 0.0
        %3809 = vmatprep.subr.mxu0 0.0
        %3810 = vmatpush1.xpose.msra.mxu0 0.0
        %3811 = vmatprep.subr.mxu0 0.0
        %3812 = vmatpush1.xpose.msra.mxu0 0.0
        %3813 = vmatprep.subr.mxu0 0.0
        %3814 = vmatpush1.xpose.msra.mxu0 0.0
        %3815 = vmatprep.subr.mxu0 0.0
        %3816 = vmatpush1.xpose.msra.mxu0 0.0
        %3817 = vmatprep.subr.mxu0 0.0
        %3818 = vmatpush1.xpose.msra.mxu0 0.0
        %3819 = vmatprep.subr.mxu0 0.0
        %3820 = vmatpush1.xpose.msra.mxu0 0.0
        %3821 = vmatprep.subr.mxu0 0.0
        %3822 = vmatpush1.xpose.msra.mxu0 0.0
        %3823 = vmatprep.subr.mxu0 0.0
        %3824 = vmatpush1.xpose.msra.mxu0 0.0
        %3825 = vmatprep.mubr.f32.mxu0 0.0
        %3826 = vmatmul.mubr.f32.gmra.mrb[0].mxu0 %v3753
        %v3827 = vpop.f32.mrb[0].mxu0
        %v3828 = vadd.f32 0.0, %v3827
        %v3829 = vpop.f32.mrb[0].mxu0
        %3830 = vmatprep.mubr.f32.mxu0 0.0
        %3831 = vmatmul.mubr.f32.gmra.mrb[0].mxu0 %v3755
        %v3832 = vpop.f32.mrb[0].mxu0
        %v3833 = vadd.f32 0.0, %v3832
        %v3834 = vpop.f32.mrb[0].mxu0
        %3835 = vdwg.mxu0
        %v3836 = vmul.f32 %v3737, 0.35355338
        %v3837 = vmul.f32 %v3742, 0.35355338
        %v3838 = vmul.f32 %v3828, 0.35355338
        %v3839 = vmul.f32 %v3833, 0.35355338
        %v3840 = vadd.f32 %v3836, %v549
        %v3841 = vadd.f32 %v3837, %v550
        %v3842 = vadd.f32 %v3838, %v549
        %v3843 = vadd.f32 %v3839, %v550
        %v3844 = vsel %vm919, %v3840, -inf
        %3845 = vmax.xlane.f32.xlu0 %v3844
        %v3846 = vpop.xlane.xlu0 %3845
        %v3847 = vsel %vm919, %v3841, -inf
        %3848 = vmax.xlane.f32.xlu0 %v3847
        %v3849 = vpop.xlane.xlu0 %3848
        %v3850 = vsel %vm919, %v3842, -inf
        %3851 = vmax.xlane.f32.xlu0 %v3850
        %v3852 = vpop.xlane.xlu0 %3851
        %v3853 = vsel %vm919, %v3843, -inf
        %3854 = vmax.xlane.f32.xlu0 %v3853
        %v3855 = vpop.xlane.xlu0 %3854
        %v3856 = vsub.f32 %v3840, %v3846
        %v3857 = vsub.f32 %v3841, %v3849
        %v3858 = vsub.f32 %v3842, %v3852
        %v3859 = vsub.f32 %v3843, %v3855
        %v3860 = vmul.f32 %v3856, 1.442695
        %v3861 = vpow.pop %v3860
        %v3862 = vmul.f32 %v3857, 1.442695
        %v3863 = vpow.pop %v3862
        %v3864 = vmul.f32 %v3858, 1.442695
        %v3865 = vpow.pop %v3864
        %v3866 = vmul.f32 %v3859, 1.442695
        %v3867 = vpow.pop %v3866
        %v3868 = vsel %vm919, %v3861, 0.0
        %3869 = vadd.xlane.f32.xlu0 %v3868
        %v3870 = vpop.xlane.xlu0 %3869
        %v3871 = vsel %vm919, %v3863, 0.0
        %3872 = vadd.xlane.f32.xlu0 %v3871
        %v3873 = vpop.xlane.xlu0 %3872
        %v3874 = vsel %vm919, %v3865, 0.0
        %3875 = vadd.xlane.f32.xlu0 %v3874
        %v3876 = vpop.xlane.xlu0 %3875
        %v3877 = vsel %vm919, %v3867, 0.0
        %3878 = vadd.xlane.f32.xlu0 %v3877
        %v3879 = vpop.xlane.xlu0 %3878
        %v3880 = vrcp.pop %v3870
        %v3881 = vrcp.pop %v3873
        %v3882 = vrcp.pop %v3876
        %v3883 = vrcp.pop %v3879
        %v3884 = vmul.f32 %v3861, %v3880
        %v3885 = vmul.f32 %v3863, %v3881
        %v3886 = vmul.f32 %v3865, %v3882
        %v3887 = vmul.f32 %v3867, %v3883
        %3888 = vrot.lane.b32.xlu0 %v3226, 56
        %v3889 = vpop.permute.xlu0 %3888
        %3890 = vrot.lane.b32.xlu0 %v3231, 56
        %v3891 = vpop.permute.xlu0 %3890
        %v3895 = vsel %vm919, %v3884, 0
        %v3898 = vsel %vm919, %v3885, 0
        %3900 = vmatprep.subr.mxu0 0.0
        %3901 = vmatpush1.msra.mxu0 %v3889
        %3902 = vmatprep.subr.mxu0 0.0
        %3903 = vmatpush1.msra.mxu0 %v3891
        %3904 = vmatprep.subr.mxu0 0.0
        %3905 = vmatpush1.msra.mxu0 0.0
        %3906 = vmatprep.subr.mxu0 0.0
        %3907 = vmatpush1.msra.mxu0 0.0
        %3908 = vmatprep.subr.mxu0 0.0
        %3909 = vmatpush1.msra.mxu0 0.0
        %3910 = vmatprep.subr.mxu0 0.0
        %3911 = vmatpush1.msra.mxu0 0.0
        %3912 = vmatprep.subr.mxu0 0.0
        %3913 = vmatpush1.msra.mxu0 0.0
        %3914 = vmatprep.subr.mxu0 0.0
        %3915 = vmatpush1.msra.mxu0 0.0
        %3916 = vmatprep.subr.mxu0 0.0
        %3917 = vmatpush1.msra.mxu0 0.0
        %3918 = vmatprep.subr.mxu0 0.0
        %3919 = vmatpush1.msra.mxu0 0.0
        %3920 = vmatprep.subr.mxu0 0.0
        %3921 = vmatpush1.msra.mxu0 0.0
        %3922 = vmatprep.subr.mxu0 0.0
        %3923 = vmatpush1.msra.mxu0 0.0
        %3924 = vmatprep.subr.mxu0 0.0
        %3925 = vmatpush1.msra.mxu0 0.0
        %3926 = vmatprep.subr.mxu0 0.0
        %3927 = vmatpush1.msra.mxu0 0.0
        %3928 = vmatprep.subr.mxu0 0.0
        %3929 = vmatpush1.msra.mxu0 0.0
        %3930 = vmatprep.subr.mxu0 0.0
        %3931 = vmatpush1.msra.mxu0 0.0
        %3932 = vmatprep.subr.mxu0 0.0
        %3933 = vmatpush1.msra.mxu0 0.0
        %3934 = vmatprep.subr.mxu0 0.0
        %3935 = vmatpush1.msra.mxu0 0.0
        %3936 = vmatprep.subr.mxu0 0.0
        %3937 = vmatpush1.msra.mxu0 0.0
        %3938 = vmatprep.subr.mxu0 0.0
        %3939 = vmatpush1.msra.mxu0 0.0
        %3940 = vmatprep.subr.mxu0 0.0
        %3941 = vmatpush1.msra.mxu0 0.0
        %3942 = vmatprep.subr.mxu0 0.0
        %3943 = vmatpush1.msra.mxu0 0.0
        %3944 = vmatprep.subr.mxu0 0.0
        %3945 = vmatpush1.msra.mxu0 0.0
        %3946 = vmatprep.subr.mxu0 0.0
        %3947 = vmatpush1.msra.mxu0 0.0
        %3948 = vmatprep.subr.mxu0 0.0
        %3949 = vmatpush1.msra.mxu0 0.0
        %3950 = vmatprep.subr.mxu0 0.0
        %3951 = vmatpush1.msra.mxu0 0.0
        %3952 = vmatprep.subr.mxu0 0.0
        %3953 = vmatpush1.msra.mxu0 0.0
        %3954 = vmatprep.subr.mxu0 0.0
        %3955 = vmatpush1.msra.mxu0 0.0
        %3956 = vmatprep.subr.mxu0 0.0
        %3957 = vmatpush1.msra.mxu0 0.0
        %3958 = vmatprep.subr.mxu0 0.0
        %3959 = vmatpush1.msra.mxu0 0.0
        %3960 = vmatprep.subr.mxu0 0.0
        %3961 = vmatpush1.msra.mxu0 0.0
        %3962 = vmatprep.subr.mxu0 0.0
        %3963 = vmatpush1.msra.mxu0 0.0
        %3964 = vmatprep.mubr.f32.mxu0 0.0
        %3965 = vmatmul.mubr.f32.gmra.mrb[0].mxu0 %v3895
        %v3966 = vpop.f32.mrb[0].mxu0
        %v3967 = vadd.f32 0.0, %v3966
        %v3968 = vpop.f32.mrb[0].mxu0
        %3969 = vmatprep.mubr.f32.mxu0 0.0
        %3970 = vmatmul.mubr.f32.gmra.mrb[0].mxu0 %v3898
        %v3971 = vpop.f32.mrb[0].mxu0
        %v3972 = vadd.f32 0.0, %v3971
        %v3973 = vpop.f32.mrb[0].mxu0
        %3974 = vdwg.mxu0
        %3975 = vrot.lane.b32.xlu0 %v3236, 56
        %v3976 = vpop.permute.xlu0 %3975
        %3977 = vrot.lane.b32.xlu0 %v3241, 56
        %v3978 = vpop.permute.xlu0 %3977
        %v3982 = vsel %vm919, %v3886, 0
        %v3985 = vsel %vm919, %v3887, 0
        %3987 = vmatprep.subr.mxu0 0.0
        %3988 = vmatpush1.msra.mxu0 %v3976
        %3989 = vmatprep.subr.mxu0 0.0
        %3990 = vmatpush1.msra.mxu0 %v3978
        %3991 = vmatprep.subr.mxu0 0.0
        %3992 = vmatpush1.msra.mxu0 0.0
        %3993 = vmatprep.subr.mxu0 0.0
        %3994 = vmatpush1.msra.mxu0 0.0
        %3995 = vmatprep.subr.mxu0 0.0
        %3996 = vmatpush1.msra.mxu0 0.0
        %3997 = vmatprep.subr.mxu0 0.0
        %3998 = vmatpush1.msra.mxu0 0.0
        %3999 = vmatprep.subr.mxu0 0.0
        %4000 = vmatpush1.msra.mxu0 0.0
        %4001 = vmatprep.subr.mxu0 0.0
        %4002 = vmatpush1.msra.mxu0 0.0
        %4003 = vmatprep.subr.mxu0 0.0
        %4004 = vmatpush1.msra.mxu0 0.0
        %4005 = vmatprep.subr.mxu0 0.0
        %4006 = vmatpush1.msra.mxu0 0.0
        %4007 = vmatprep.subr.mxu0 0.0
        %4008 = vmatpush1.msra.mxu0 0.0
        %4009 = vmatprep.subr.mxu0 0.0
        %4010 = vmatpush1.msra.mxu0 0.0
        %4011 = vmatprep.subr.mxu0 0.0
        %4012 = vmatpush1.msra.mxu0 0.0
        %4013 = vmatprep.subr.mxu0 0.0
        %4014 = vmatpush1.msra.mxu0 0.0
        %4015 = vmatprep.subr.mxu0 0.0
        %4016 = vmatpush1.msra.mxu0 0.0
        %4017 = vmatprep.subr.mxu0 0.0
        %4018 = vmatpush1.msra.mxu0 0.0
        %4019 = vmatprep.subr.mxu0 0.0
        %4020 = vmatpush1.msra.mxu0 0.0
        %4021 = vmatprep.subr.mxu0 0.0
        %4022 = vmatpush1.msra.mxu0 0.0
        %4023 = vmatprep.subr.mxu0 0.0
        %4024 = vmatpush1.msra.mxu0 0.0
        %4025 = vmatprep.subr.mxu0 0.0
        %4026 = vmatpush1.msra.mxu0 0.0
        %4027 = vmatprep.subr.mxu0 0.0
        %4028 = vmatpush1.msra.mxu0 0.0
        %4029 = vmatprep.subr.mxu0 0.0
        %4030 = vmatpush1.msra.mxu0 0.0
        %4031 = vmatprep.subr.mxu0 0.0
        %4032 = vmatpush1.msra.mxu0 0.0
        %4033 = vmatprep.subr.mxu0 0.0
        %4034 = vmatpush1.msra.mxu0 0.0
        %4035 = vmatprep.subr.mxu0 0.0
        %4036 = vmatpush1.msra.mxu0 0.0
        %4037 = vmatprep.subr.mxu0 0.0
        %4038 = vmatpush1.msra.mxu0 0.0
        %4039 = vmatprep.subr.mxu0 0.0
        %4040 = vmatpush1.msra.mxu0 0.0
        %4041 = vmatprep.subr.mxu0 0.0
        %4042 = vmatpush1.msra.mxu0 0.0
        %4043 = vmatprep.subr.mxu0 0.0
        %4044 = vmatpush1.msra.mxu0 0.0
        %4045 = vmatprep.subr.mxu0 0.0
        %4046 = vmatpush1.msra.mxu0 0.0
        %4047 = vmatprep.subr.mxu0 0.0
        %4048 = vmatpush1.msra.mxu0 0.0
        %4049 = vmatprep.subr.mxu0 0.0
        %4050 = vmatpush1.msra.mxu0 0.0
        %4051 = vmatprep.mubr.f32.mxu0 0.0
        %4052 = vmatmul.mubr.f32.gmra.mrb[0].mxu0 %v3982
        %v4053 = vpop.f32.mrb[0].mxu0
        %v4054 = vadd.f32 0.0, %v4053
        %v4055 = vpop.f32.mrb[0].mxu0
        %4056 = vmatprep.mubr.f32.mxu0 0.0
        %4057 = vmatmul.mubr.f32.gmra.mrb[0].mxu0 %v3985
        %v4058 = vpop.f32.mrb[0].mxu0
        %v4059 = vadd.f32 0.0, %v4058
        %v4060 = vpop.f32.mrb[0].mxu0
        %4061 = vdwg.mxu0
        %v4063 = vsel %vm738, %v3967, 0
        %v4066 = vsel %vm738, %v3972, 0
        %v4069 = vsel %vm738, %v4054, 0
        %v4072 = vsel %vm738, %v4059, 0
        %4074 = vmatprep.subr.mxu0 0.0
        %4075 = vmatpush1.msra.mxu0 %v3246
        %4076 = vmatprep.subr.mxu0 0.0
        %4077 = vmatpush1.msra.mxu0 0.0
        %4078 = vmatprep.subr.mxu0 0.0
        %4079 = vmatpush1.msra.mxu0 0.0
        %4080 = vmatprep.subr.mxu0 0.0
        %4081 = vmatpush1.msra.mxu0 0.0
        %4082 = vmatprep.subr.mxu0 0.0
        %4083 = vmatpush1.msra.mxu0 0.0
        %4084 = vmatprep.subr.mxu0 0.0
        %4085 = vmatpush1.msra.mxu0 0.0
        %4086 = vmatprep.subr.mxu0 0.0
        %4087 = vmatpush1.msra.mxu0 0.0
        %4088 = vmatprep.subr.mxu0 0.0
        %4089 = vmatpush1.msra.mxu0 0.0
        %4090 = vmatprep.subr.mxu0 0.0
        %4091 = vmatpush1.msra.mxu0 0.0
        %4092 = vmatprep.subr.mxu0 0.0
        %4093 = vmatpush1.msra.mxu0 0.0
        %4094 = vmatprep.subr.mxu0 0.0
        %4095 = vmatpush1.msra.mxu0 0.0
        %4096 = vmatprep.subr.mxu0 0.0
        %4097 = vmatpush1.msra.mxu0 0.0
        %4098 = vmatprep.subr.mxu0 0.0
        %4099 = vmatpush1.msra.mxu0 0.0
        %4100 = vmatprep.subr.mxu0 0.0
        %4101 = vmatpush1.msra.mxu0 0.0
        %4102 = vmatprep.subr.mxu0 0.0
        %4103 = vmatpush1.msra.mxu0 0.0
        %4104 = vmatprep.subr.mxu0 0.0
        %4105 = vmatpush1.msra.mxu0 0.0
        %4106 = vmatprep.subr.mxu0 0.0
        %4107 = vmatpush1.msra.mxu0 0.0
        %4108 = vmatprep.subr.mxu0 0.0
        %4109 = vmatpush1.msra.mxu0 0.0
        %4110 = vmatprep.subr.mxu0 0.0
        %4111 = vmatpush1.msra.mxu0 0.0
        %4112 = vmatprep.subr.mxu0 0.0
        %4113 = vmatpush1.msra.mxu0 0.0
        %4114 = vmatprep.subr.mxu0 0.0
        %4115 = vmatpush1.msra.mxu0 0.0
        %4116 = vmatprep.subr.mxu0 0.0
        %4117 = vmatpush1.msra.mxu0 0.0
        %4118 = vmatprep.subr.mxu0 0.0
        %4119 = vmatpush1.msra.mxu0 0.0
        %4120 = vmatprep.subr.mxu0 0.0
        %4121 = vmatpush1.msra.mxu0 0.0
        %4122 = vmatprep.subr.mxu0 0.0
        %4123 = vmatpush1.msra.mxu0 0.0
        %4124 = vmatprep.subr.mxu0 0.0
        %4125 = vmatpush1.msra.mxu0 0.0
        %4126 = vmatprep.subr.mxu0 0.0
        %4127 = vmatpush1.msra.mxu0 0.0
        %4128 = vmatprep.subr.mxu0 0.0
        %4129 = vmatpush1.msra.mxu0 0.0
        %4130 = vmatprep.subr.mxu0 0.0
        %4131 = vmatpush1.msra.mxu0 0.0
        %4132 = vmatprep.subr.mxu0 0.0
        %4133 = vmatpush1.msra.mxu0 0.0
        %4134 = vmatprep.subr.mxu0 0.0
        %4135 = vmatpush1.msra.mxu0 0.0
        %4136 = vmatprep.subr.mxu0 0.0
        %4137 = vmatpush1.msra.mxu0 0.0
        %4138 = vmatprep.mubr.f32.mxu0 0.0
        %4139 = vmatmul.mubr.f32.gmra.mrb[0].mxu0 %v4063
        %v4140 = vpop.f32.mrb[0].mxu0
        %v4141 = vadd.f32 0.0, %v4140
        %v4142 = vpop.f32.mrb[0].mxu0
        %4143 = vmatprep.mubr.f32.mxu0 0.0
        %4144 = vmatmul.mubr.f32.gmra.mrb[0].mxu0 %v4066
        %v4145 = vpop.f32.mrb[0].mxu0
        %v4146 = vadd.f32 0.0, %v4145
        %v4147 = vpop.f32.mrb[0].mxu0
        %4148 = vmatprep.mubr.f32.mxu0 0.0
        %4149 = vmatmul.mubr.f32.gmra.mrb[0].mxu0 %v4069
        %v4150 = vpop.f32.mrb[0].mxu0
        %v4151 = vadd.f32 0.0, %v4150
        %v4152 = vpop.f32.mrb[0].mxu0
        %4153 = vmatprep.mubr.f32.mxu0 0.0
        %4154 = vmatmul.mubr.f32.gmra.mrb[0].mxu0 %v4072
        %v4155 = vpop.f32.mrb[0].mxu0
        %v4156 = vadd.f32 0.0, %v4155
        %v4157 = vpop.f32.mrb[0].mxu0
        %4158 = vdwg.mxu0
        %v4160 = vsel %vm738, %v3559, 0
        %v4163 = vsel %vm738, %v3564, 0
        %v4166 = vsel %vm738, %v3646, 0
        %v4169 = vsel %vm738, %v3651, 0
        %4171 = vmatprep.subr.mxu0 0.0
        %4172 = vmatpush1.msra.mxu0 %v3245
        %4173 = vmatprep.subr.mxu0 0.0
        %4174 = vmatpush1.msra.mxu0 0.0
        %4175 = vmatprep.subr.mxu0 0.0
        %4176 = vmatpush1.msra.mxu0 0.0
        %4177 = vmatprep.subr.mxu0 0.0
        %4178 = vmatpush1.msra.mxu0 0.0
        %4179 = vmatprep.subr.mxu0 0.0
        %4180 = vmatpush1.msra.mxu0 0.0
        %4181 = vmatprep.subr.mxu0 0.0
        %4182 = vmatpush1.msra.mxu0 0.0
        %4183 = vmatprep.subr.mxu0 0.0
        %4184 = vmatpush1.msra.mxu0 0.0
        %4185 = vmatprep.subr.mxu0 0.0
        %4186 = vmatpush1.msra.mxu0 0.0
        %4187 = vmatprep.subr.mxu0 0.0
        %4188 = vmatpush1.msra.mxu0 0.0
        %4189 = vmatprep.subr.mxu0 0.0
        %4190 = vmatpush1.msra.mxu0 0.0
        %4191 = vmatprep.subr.mxu0 0.0
        %4192 = vmatpush1.msra.mxu0 0.0
        %4193 = vmatprep.subr.mxu0 0.0
        %4194 = vmatpush1.msra.mxu0 0.0
        %4195 = vmatprep.subr.mxu0 0.0
        %4196 = vmatpush1.msra.mxu0 0.0
        %4197 = vmatprep.subr.mxu0 0.0
        %4198 = vmatpush1.msra.mxu0 0.0
        %4199 = vmatprep.subr.mxu0 0.0
        %4200 = vmatpush1.msra.mxu0 0.0
        %4201 = vmatprep.subr.mxu0 0.0
        %4202 = vmatpush1.msra.mxu0 0.0
        %4203 = vmatprep.subr.mxu0 0.0
        %4204 = vmatpush1.msra.mxu0 0.0
        %4205 = vmatprep.subr.mxu0 0.0
        %4206 = vmatpush1.msra.mxu0 0.0
        %4207 = vmatprep.subr.mxu0 0.0
        %4208 = vmatpush1.msra.mxu0 0.0
        %4209 = vmatprep.subr.mxu0 0.0
        %4210 = vmatpush1.msra.mxu0 0.0
        %4211 = vmatprep.subr.mxu0 0.0
        %4212 = vmatpush1.msra.mxu0 0.0
        %4213 = vmatprep.subr.mxu0 0.0
        %4214 = vmatpush1.msra.mxu0 0.0
        %4215 = vmatprep.subr.mxu0 0.0
        %4216 = vmatpush1.msra.mxu0 0.0
        %4217 = vmatprep.subr.mxu0 0.0
        %4218 = vmatpush1.msra.mxu0 0.0
        %4219 = vmatprep.subr.mxu0 0.0
        %4220 = vmatpush1.msra.mxu0 0.0
        %4221 = vmatprep.subr.mxu0 0.0
        %4222 = vmatpush1.msra.mxu0 0.0
        %4223 = vmatprep.subr.mxu0 0.0
        %4224 = vmatpush1.msra.mxu0 0.0
        %4225 = vmatprep.subr.mxu0 0.0
        %4226 = vmatpush1.msra.mxu0 0.0
        %4227 = vmatprep.subr.mxu0 0.0
        %4228 = vmatpush1.msra.mxu0 0.0
        %4229 = vmatprep.subr.mxu0 0.0
        %4230 = vmatpush1.msra.mxu0 0.0
        %4231 = vmatprep.subr.mxu0 0.0
        %4232 = vmatpush1.msra.mxu0 0.0
        %4233 = vmatprep.subr.mxu0 0.0
        %4234 = vmatpush1.msra.mxu0 0.0
        %4235 = vmatprep.mubr.f32.mxu0 0.0
        %4236 = vmatmul.mubr.f32.gmra.mrb[0].mxu0 %v4160
        %v4237 = vpop.f32.mrb[0].mxu0
        %v4238 = vadd.f32 %v4141, %v4237
        %v4239 = vpop.f32.mrb[0].mxu0
        %4240 = vmatprep.mubr.f32.mxu0 0.0
        %4241 = vmatmul.mubr.f32.gmra.mrb[0].mxu0 %v4163
        %v4242 = vpop.f32.mrb[0].mxu0
        %v4243 = vadd.f32 %v4146, %v4242
        %v4244 = vpop.f32.mrb[0].mxu0
        %4245 = vmatprep.mubr.f32.mxu0 0.0
        %4246 = vmatmul.mubr.f32.gmra.mrb[0].mxu0 %v4166
        %v4247 = vpop.f32.mrb[0].mxu0
        %v4248 = vadd.f32 %v4151, %v4247
        %v4249 = vpop.f32.mrb[0].mxu0
        %4250 = vmatprep.mubr.f32.mxu0 0.0
        %4251 = vmatmul.mubr.f32.gmra.mrb[0].mxu0 %v4169
        %v4252 = vpop.f32.mrb[0].mxu0
        %v4253 = vadd.f32 %v4156, %v4252
        %v4254 = vpop.f32.mrb[0].mxu0
        %4255 = vdwg.mxu0
        %4256 = vrot.lane.b32.xlu0 %v3226, 112
        %v4257 = vpop.permute.xlu0 %4256
        %4258 = vrot.lane.b32.xlu0 %v3231, 112
        %v4259 = vpop.permute.xlu0 %4258
        %4260 = vrot.lane.b32.xlu0 %v3226, 80
        %v4261 = vpop.permute.xlu0 %4260
        %4262 = vrot.lane.b32.xlu0 %v3231, 80
        %v4263 = vpop.permute.xlu0 %4262
        %v4264 = vsel %vm738, %v4257, 0
        %v4266 = vsel %vm738, %v4259, 0
        %v4268 = vsel %vm738, %v4261, 0
        %v4270 = vsel %vm738, %v4263, 0
        %4272 = vmatprep.subr.mxu0 0.0
        %4273 = vmatpush1.xpose.msra.mxu0 %v4268
        %4274 = vmatprep.subr.mxu0 0.0
        %4275 = vmatpush1.xpose.msra.mxu0 %v4270
        %4276 = vmatprep.subr.mxu0 0.0
        %4277 = vmatpush1.xpose.msra.mxu0 0.0
        %4278 = vmatprep.subr.mxu0 0.0
        %4279 = vmatpush1.xpose.msra.mxu0 0.0
        %4280 = vmatprep.subr.mxu0 0.0
        %4281 = vmatpush1.xpose.msra.mxu0 0.0
        %4282 = vmatprep.subr.mxu0 0.0
        %4283 = vmatpush1.xpose.msra.mxu0 0.0
        %4284 = vmatprep.subr.mxu0 0.0
        %4285 = vmatpush1.xpose.msra.mxu0 0.0
        %4286 = vmatprep.subr.mxu0 0.0
        %4287 = vmatpush1.xpose.msra.mxu0 0.0
        %4288 = vmatprep.subr.mxu0 0.0
        %4289 = vmatpush1.xpose.msra.mxu0 0.0
        %4290 = vmatprep.subr.mxu0 0.0
        %4291 = vmatpush1.xpose.msra.mxu0 0.0
        %4292 = vmatprep.subr.mxu0 0.0
        %4293 = vmatpush1.xpose.msra.mxu0 0.0
        %4294 = vmatprep.subr.mxu0 0.0
        %4295 = vmatpush1.xpose.msra.mxu0 0.0
        %4296 = vmatprep.subr.mxu0 0.0
        %4297 = vmatpush1.xpose.msra.mxu0 0.0
        %4298 = vmatprep.subr.mxu0 0.0
        %4299 = vmatpush1.xpose.msra.mxu0 0.0
        %4300 = vmatprep.subr.mxu0 0.0
        %4301 = vmatpush1.xpose.msra.mxu0 0.0
        %4302 = vmatprep.subr.mxu0 0.0
        %4303 = vmatpush1.xpose.msra.mxu0 0.0
        %4304 = vmatprep.subr.mxu0 0.0
        %4305 = vmatpush1.xpose.msra.mxu0 0.0
        %4306 = vmatprep.subr.mxu0 0.0
        %4307 = vmatpush1.xpose.msra.mxu0 0.0
        %4308 = vmatprep.subr.mxu0 0.0
        %4309 = vmatpush1.xpose.msra.mxu0 0.0
        %4310 = vmatprep.subr.mxu0 0.0
        %4311 = vmatpush1.xpose.msra.mxu0 0.0
        %4312 = vmatprep.subr.mxu0 0.0
        %4313 = vmatpush1.xpose.msra.mxu0 0.0
        %4314 = vmatprep.subr.mxu0 0.0
        %4315 = vmatpush1.xpose.msra.mxu0 0.0
        %4316 = vmatprep.subr.mxu0 0.0
        %4317 = vmatpush1.xpose.msra.mxu0 0.0
        %4318 = vmatprep.subr.mxu0 0.0
        %4319 = vmatpush1.xpose.msra.mxu0 0.0
        %4320 = vmatprep.subr.mxu0 0.0
        %4321 = vmatpush1.xpose.msra.mxu0 0.0
        %4322 = vmatprep.subr.mxu0 0.0
        %4323 = vmatpush1.xpose.msra.mxu0 0.0
        %4324 = vmatprep.subr.mxu0 0.0
        %4325 = vmatpush1.xpose.msra.mxu0 0.0
        %4326 = vmatprep.subr.mxu0 0.0
        %4327 = vmatpush1.xpose.msra.mxu0 0.0
        %4328 = vmatprep.subr.mxu0 0.0
        %4329 = vmatpush1.xpose.msra.mxu0 0.0
        %4330 = vmatprep.subr.mxu0 0.0
        %4331 = vmatpush1.xpose.msra.mxu0 0.0
        %4332 = vmatprep.subr.mxu0 0.0
        %4333 = vmatpush1.xpose.msra.mxu0 0.0
        %4334 = vmatprep.subr.mxu0 0.0
        %4335 = vmatpush1.xpose.msra.mxu0 0.0
        %4336 = vmatprep.mubr.f32.mxu0 0.0
        %4337 = vmatmul.mubr.f32.gmra.mrb[0].mxu0 %v4264
        %v4338 = vpop.f32.mrb[0].mxu0
        %v4339 = vadd.f32 0.0, %v4338
        %v4340 = vpop.f32.mrb[0].mxu0
        %4341 = vmatprep.mubr.f32.mxu0 0.0
        %4342 = vmatmul.mubr.f32.gmra.mrb[0].mxu0 %v4266
        %v4343 = vpop.f32.mrb[0].mxu0
        %v4344 = vadd.f32 0.0, %v4343
        %v4345 = vpop.f32.mrb[0].mxu0
        %4346 = vdwg.mxu0
        %4347 = vrot.lane.b32.xlu0 %v3236, 112
        %v4348 = vpop.permute.xlu0 %4347
        %4349 = vrot.lane.b32.xlu0 %v3241, 112
        %v4350 = vpop.permute.xlu0 %4349
        %4351 = vrot.lane.b32.xlu0 %v3236, 80
        %v4352 = vpop.permute.xlu0 %4351
        %4353 = vrot.lane.b32.xlu0 %v3241, 80
        %v4354 = vpop.permute.xlu0 %4353
        %v4355 = vsel %vm738, %v4348, 0
        %v4357 = vsel %vm738, %v4350, 0
        %v4359 = vsel %vm738, %v4352, 0
        %v4361 = vsel %vm738, %v4354, 0
        %4363 = vmatprep.subr.mxu0 0.0
        %4364 = vmatpush1.xpose.msra.mxu0 %v4359
        %4365 = vmatprep.subr.mxu0 0.0
        %4366 = vmatpush1.xpose.msra.mxu0 %v4361
        %4367 = vmatprep.subr.mxu0 0.0
        %4368 = vmatpush1.xpose.msra.mxu0 0.0
        %4369 = vmatprep.subr.mxu0 0.0
        %4370 = vmatpush1.xpose.msra.mxu0 0.0
        %4371 = vmatprep.subr.mxu0 0.0
        %4372 = vmatpush1.xpose.msra.mxu0 0.0
        %4373 = vmatprep.subr.mxu0 0.0
        %4374 = vmatpush1.xpose.msra.mxu0 0.0
        %4375 = vmatprep.subr.mxu0 0.0
        %4376 = vmatpush1.xpose.msra.mxu0 0.0
        %4377 = vmatprep.subr.mxu0 0.0
        %4378 = vmatpush1.xpose.msra.mxu0 0.0
        %4379 = vmatprep.subr.mxu0 0.0
        %4380 = vmatpush1.xpose.msra.mxu0 0.0
        %4381 = vmatprep.subr.mxu0 0.0
        %4382 = vmatpush1.xpose.msra.mxu0 0.0
        %4383 = vmatprep.subr.mxu0 0.0
        %4384 = vmatpush1.xpose.msra.mxu0 0.0
        %4385 = vmatprep.subr.mxu0 0.0
        %4386 = vmatpush1.xpose.msra.mxu0 0.0
        %4387 = vmatprep.subr.mxu0 0.0
        %4388 = vmatpush1.xpose.msra.mxu0 0.0
        %4389 = vmatprep.subr.mxu0 0.0
        %4390 = vmatpush1.xpose.msra.mxu0 0.0
        %4391 = vmatprep.subr.mxu0 0.0
        %4392 = vmatpush1.xpose.msra.mxu0 0.0
        %4393 = vmatprep.subr.mxu0 0.0
        %4394 = vmatpush1.xpose.msra.mxu0 0.0
        %4395 = vmatprep.subr.mxu0 0.0
        %4396 = vmatpush1.xpose.msra.mxu0 0.0
        %4397 = vmatprep.subr.mxu0 0.0
        %4398 = vmatpush1.xpose.msra.mxu0 0.0
        %4399 = vmatprep.subr.mxu0 0.0
        %4400 = vmatpush1.xpose.msra.mxu0 0.0
        %4401 = vmatprep.subr.mxu0 0.0
        %4402 = vmatpush1.xpose.msra.mxu0 0.0
        %4403 = vmatprep.subr.mxu0 0.0
        %4404 = vmatpush1.xpose.msra.mxu0 0.0
        %4405 = vmatprep.subr.mxu0 0.0
        %4406 = vmatpush1.xpose.msra.mxu0 0.0
        %4407 = vmatprep.subr.mxu0 0.0
        %4408 = vmatpush1.xpose.msra.mxu0 0.0
        %4409 = vmatprep.subr.mxu0 0.0
        %4410 = vmatpush1.xpose.msra.mxu0 0.0
        %4411 = vmatprep.subr.mxu0 0.0
        %4412 = vmatpush1.xpose.msra.mxu0 0.0
        %4413 = vmatprep.subr.mxu0 0.0
        %4414 = vmatpush1.xpose.msra.mxu0 0.0
        %4415 = vmatprep.subr.mxu0 0.0
        %4416 = vmatpush1.xpose.msra.mxu0 0.0
        %4417 = vmatprep.subr.mxu0 0.0
        %4418 = vmatpush1.xpose.msra.mxu0 0.0
        %4419 = vmatprep.subr.mxu0 0.0
        %4420 = vmatpush1.xpose.msra.mxu0 0.0
        %4421 = vmatprep.subr.mxu0 0.0
        %4422 = vmatpush1.xpose.msra.mxu0 0.0
        %4423 = vmatprep.subr.mxu0 0.0
        %4424 = vmatpush1.xpose.msra.mxu0 0.0
        %4425 = vmatprep.subr.mxu0 0.0
        %4426 = vmatpush1.xpose.msra.mxu0 0.0
        %4427 = vmatprep.mubr.f32.mxu0 0.0
        %4428 = vmatmul.mubr.f32.gmra.mrb[0].mxu0 %v4355
        %v4429 = vpop.f32.mrb[0].mxu0
        %v4430 = vadd.f32 0.0, %v4429
        %v4431 = vpop.f32.mrb[0].mxu0
        %4432 = vmatprep.mubr.f32.mxu0 0.0
        %4433 = vmatmul.mubr.f32.gmra.mrb[0].mxu0 %v4357
        %v4434 = vpop.f32.mrb[0].mxu0
        %v4435 = vadd.f32 0.0, %v4434
        %v4436 = vpop.f32.mrb[0].mxu0
        %4437 = vdwg.mxu0
        %v4438 = vmul.f32 %v4339, 0.35355338
        %v4439 = vmul.f32 %v4344, 0.35355338
        %v4440 = vmul.f32 %v4430, 0.35355338
        %v4441 = vmul.f32 %v4435, 0.35355338
        %v4442 = vadd.f32 %v4438, %v549
        %v4443 = vadd.f32 %v4439, %v550
        %v4444 = vadd.f32 %v4440, %v549
        %v4445 = vadd.f32 %v4441, %v550
        %v4446 = vsel %vm919, %v4442, -inf
        %4447 = vmax.xlane.f32.xlu0 %v4446
        %v4448 = vpop.xlane.xlu0 %4447
        %v4449 = vsel %vm919, %v4443, -inf
        %4450 = vmax.xlane.f32.xlu0 %v4449
        %v4451 = vpop.xlane.xlu0 %4450
        %v4452 = vsel %vm919, %v4444, -inf
        %4453 = vmax.xlane.f32.xlu0 %v4452
        %v4454 = vpop.xlane.xlu0 %4453
        %v4455 = vsel %vm919, %v4445, -inf
        %4456 = vmax.xlane.f32.xlu0 %v4455
        %v4457 = vpop.xlane.xlu0 %4456
        %v4458 = vsub.f32 %v4442, %v4448
        %v4459 = vsub.f32 %v4443, %v4451
        %v4460 = vsub.f32 %v4444, %v4454
        %v4461 = vsub.f32 %v4445, %v4457
        %v4462 = vmul.f32 %v4458, 1.442695
        %v4463 = vpow.pop %v4462
        %v4464 = vmul.f32 %v4459, 1.442695
        %v4465 = vpow.pop %v4464
        %v4466 = vmul.f32 %v4460, 1.442695
        %v4467 = vpow.pop %v4466
        %v4468 = vmul.f32 %v4461, 1.442695
        %v4469 = vpow.pop %v4468
        %v4470 = vsel %vm919, %v4463, 0.0
        %4471 = vadd.xlane.f32.xlu0 %v4470
        %v4472 = vpop.xlane.xlu0 %4471
        %v4473 = vsel %vm919, %v4465, 0.0
        %4474 = vadd.xlane.f32.xlu0 %v4473
        %v4475 = vpop.xlane.xlu0 %4474
        %v4476 = vsel %vm919, %v4467, 0.0
        %4477 = vadd.xlane.f32.xlu0 %v4476
        %v4478 = vpop.xlane.xlu0 %4477
        %v4479 = vsel %vm919, %v4469, 0.0
        %4480 = vadd.xlane.f32.xlu0 %v4479
        %v4481 = vpop.xlane.xlu0 %4480
        %v4482 = vrcp.pop %v4472
        %v4483 = vrcp.pop %v4475
        %v4484 = vrcp.pop %v4478
        %v4485 = vrcp.pop %v4481
        %v4486 = vmul.f32 %v4463, %v4482
        %v4487 = vmul.f32 %v4465, %v4483
        %v4488 = vmul.f32 %v4467, %v4484
        %v4489 = vmul.f32 %v4469, %v4485
        %4490 = vrot.lane.b32.xlu0 %v3226, 48
        %v4491 = vpop.permute.xlu0 %4490
        %4492 = vrot.lane.b32.xlu0 %v3231, 48
        %v4493 = vpop.permute.xlu0 %4492
        %v4497 = vsel %vm919, %v4486, 0
        %v4500 = vsel %vm919, %v4487, 0
        %4502 = vmatprep.subr.mxu0 0.0
        %4503 = vmatpush1.msra.mxu0 %v4491
        %4504 = vmatprep.subr.mxu0 0.0
        %4505 = vmatpush1.msra.mxu0 %v4493
        %4506 = vmatprep.subr.mxu0 0.0
        %4507 = vmatpush1.msra.mxu0 0.0
        %4508 = vmatprep.subr.mxu0 0.0
        %4509 = vmatpush1.msra.mxu0 0.0
        %4510 = vmatprep.subr.mxu0 0.0
        %4511 = vmatpush1.msra.mxu0 0.0
        %4512 = vmatprep.subr.mxu0 0.0
        %4513 = vmatpush1.msra.mxu0 0.0
        %4514 = vmatprep.subr.mxu0 0.0
        %4515 = vmatpush1.msra.mxu0 0.0
        %4516 = vmatprep.subr.mxu0 0.0
        %4517 = vmatpush1.msra.mxu0 0.0
        %4518 = vmatprep.subr.mxu0 0.0
        %4519 = vmatpush1.msra.mxu0 0.0
        %4520 = vmatprep.subr.mxu0 0.0
        %4521 = vmatpush1.msra.mxu0 0.0
        %4522 = vmatprep.subr.mxu0 0.0
        %4523 = vmatpush1.msra.mxu0 0.0
        %4524 = vmatprep.subr.mxu0 0.0
        %4525 = vmatpush1.msra.mxu0 0.0
        %4526 = vmatprep.subr.mxu0 0.0
        %4527 = vmatpush1.msra.mxu0 0.0
        %4528 = vmatprep.subr.mxu0 0.0
        %4529 = vmatpush1.msra.mxu0 0.0
        %4530 = vmatprep.subr.mxu0 0.0
        %4531 = vmatpush1.msra.mxu0 0.0
        %4532 = vmatprep.subr.mxu0 0.0
        %4533 = vmatpush1.msra.mxu0 0.0
        %4534 = vmatprep.subr.mxu0 0.0
        %4535 = vmatpush1.msra.mxu0 0.0
        %4536 = vmatprep.subr.mxu0 0.0
        %4537 = vmatpush1.msra.mxu0 0.0
        %4538 = vmatprep.subr.mxu0 0.0
        %4539 = vmatpush1.msra.mxu0 0.0
        %4540 = vmatprep.subr.mxu0 0.0
        %4541 = vmatpush1.msra.mxu0 0.0
        %4542 = vmatprep.subr.mxu0 0.0
        %4543 = vmatpush1.msra.mxu0 0.0
        %4544 = vmatprep.subr.mxu0 0.0
        %4545 = vmatpush1.msra.mxu0 0.0
        %4546 = vmatprep.subr.mxu0 0.0
        %4547 = vmatpush1.msra.mxu0 0.0
        %4548 = vmatprep.subr.mxu0 0.0
        %4549 = vmatpush1.msra.mxu0 0.0
        %4550 = vmatprep.subr.mxu0 0.0
        %4551 = vmatpush1.msra.mxu0 0.0
        %4552 = vmatprep.subr.mxu0 0.0
        %4553 = vmatpush1.msra.mxu0 0.0
        %4554 = vmatprep.subr.mxu0 0.0
        %4555 = vmatpush1.msra.mxu0 0.0
        %4556 = vmatprep.subr.mxu0 0.0
        %4557 = vmatpush1.msra.mxu0 0.0
        %4558 = vmatprep.subr.mxu0 0.0
        %4559 = vmatpush1.msra.mxu0 0.0
        %4560 = vmatprep.subr.mxu0 0.0
        %4561 = vmatpush1.msra.mxu0 0.0
        %4562 = vmatprep.subr.mxu0 0.0
        %4563 = vmatpush1.msra.mxu0 0.0
        %4564 = vmatprep.subr.mxu0 0.0
        %4565 = vmatpush1.msra.mxu0 0.0
        %4566 = vmatprep.mubr.f32.mxu0 0.0
        %4567 = vmatmul.mubr.f32.gmra.mrb[0].mxu0 %v4497
        %v4568 = vpop.f32.mrb[0].mxu0
        %v4569 = vadd.f32 0.0, %v4568
        %v4570 = vpop.f32.mrb[0].mxu0
        %4571 = vmatprep.mubr.f32.mxu0 0.0
        %4572 = vmatmul.mubr.f32.gmra.mrb[0].mxu0 %v4500
        %v4573 = vpop.f32.mrb[0].mxu0
        %v4574 = vadd.f32 0.0, %v4573
        %v4575 = vpop.f32.mrb[0].mxu0
        %4576 = vdwg.mxu0
        %4577 = vrot.lane.b32.xlu0 %v3236, 48
        %v4578 = vpop.permute.xlu0 %4577
        %4579 = vrot.lane.b32.xlu0 %v3241, 48
        %v4580 = vpop.permute.xlu0 %4579
        %v4584 = vsel %vm919, %v4488, 0
        %v4587 = vsel %vm919, %v4489, 0
        %4589 = vmatprep.subr.mxu0 0.0
        %4590 = vmatpush1.msra.mxu0 %v4578
        %4591 = vmatprep.subr.mxu0 0.0
        %4592 = vmatpush1.msra.mxu0 %v4580
        %4593 = vmatprep.subr.mxu0 0.0
        %4594 = vmatpush1.msra.mxu0 0.0
        %4595 = vmatprep.subr.mxu0 0.0
        %4596 = vmatpush1.msra.mxu0 0.0
        %4597 = vmatprep.subr.mxu0 0.0
        %4598 = vmatpush1.msra.mxu0 0.0
        %4599 = vmatprep.subr.mxu0 0.0
        %4600 = vmatpush1.msra.mxu0 0.0
        %4601 = vmatprep.subr.mxu0 0.0
        %4602 = vmatpush1.msra.mxu0 0.0
        %4603 = vmatprep.subr.mxu0 0.0
        %4604 = vmatpush1.msra.mxu0 0.0
        %4605 = vmatprep.subr.mxu0 0.0
        %4606 = vmatpush1.msra.mxu0 0.0
        %4607 = vmatprep.subr.mxu0 0.0
        %4608 = vmatpush1.msra.mxu0 0.0
        %4609 = vmatprep.subr.mxu0 0.0
        %4610 = vmatpush1.msra.mxu0 0.0
        %4611 = vmatprep.subr.mxu0 0.0
        %4612 = vmatpush1.msra.mxu0 0.0
        %4613 = vmatprep.subr.mxu0 0.0
        %4614 = vmatpush1.msra.mxu0 0.0
        %4615 = vmatprep.subr.mxu0 0.0
        %4616 = vmatpush1.msra.mxu0 0.0
        %4617 = vmatprep.subr.mxu0 0.0
        %4618 = vmatpush1.msra.mxu0 0.0
        %4619 = vmatprep.subr.mxu0 0.0
        %4620 = vmatpush1.msra.mxu0 0.0
        %4621 = vmatprep.subr.mxu0 0.0
        %4622 = vmatpush1.msra.mxu0 0.0
        %4623 = vmatprep.subr.mxu0 0.0
        %4624 = vmatpush1.msra.mxu0 0.0
        %4625 = vmatprep.subr.mxu0 0.0
        %4626 = vmatpush1.msra.mxu0 0.0
        %4627 = vmatprep.subr.mxu0 0.0
        %4628 = vmatpush1.msra.mxu0 0.0
        %4629 = vmatprep.subr.mxu0 0.0
        %4630 = vmatpush1.msra.mxu0 0.0
        %4631 = vmatprep.subr.mxu0 0.0
        %4632 = vmatpush1.msra.mxu0 0.0
        %4633 = vmatprep.subr.mxu0 0.0
        %4634 = vmatpush1.msra.mxu0 0.0
        %4635 = vmatprep.subr.mxu0 0.0
        %4636 = vmatpush1.msra.mxu0 0.0
        %4637 = vmatprep.subr.mxu0 0.0
        %4638 = vmatpush1.msra.mxu0 0.0
        %4639 = vmatprep.subr.mxu0 0.0
        %4640 = vmatpush1.msra.mxu0 0.0
        %4641 = vmatprep.subr.mxu0 0.0
        %4642 = vmatpush1.msra.mxu0 0.0
        %4643 = vmatprep.subr.mxu0 0.0
        %4644 = vmatpush1.msra.mxu0 0.0
        %4645 = vmatprep.subr.mxu0 0.0
        %4646 = vmatpush1.msra.mxu0 0.0
        %4647 = vmatprep.subr.mxu0 0.0
        %4648 = vmatpush1.msra.mxu0 0.0
        %4649 = vmatprep.subr.mxu0 0.0
        %4650 = vmatpush1.msra.mxu0 0.0
        %4651 = vmatprep.subr.mxu0 0.0
        %4652 = vmatpush1.msra.mxu0 0.0
        %4653 = vmatprep.mubr.f32.mxu0 0.0
        %4654 = vmatmul.mubr.f32.gmra.mrb[0].mxu0 %v4584
        %v4655 = vpop.f32.mrb[0].mxu0
        %v4656 = vadd.f32 0.0, %v4655
        %v4657 = vpop.f32.mrb[0].mxu0
        %4658 = vmatprep.mubr.f32.mxu0 0.0
        %4659 = vmatmul.mubr.f32.gmra.mrb[0].mxu0 %v4587
        %v4660 = vpop.f32.mrb[0].mxu0
        %v4661 = vadd.f32 0.0, %v4660
        %v4662 = vpop.f32.mrb[0].mxu0
        %4663 = vdwg.mxu0
        %v4665 = vsel %vm738, %v4569, 0
        %v4668 = vsel %vm738, %v4574, 0
        %v4671 = vsel %vm738, %v4656, 0
        %v4674 = vsel %vm738, %v4661, 0
        %4676 = vmatprep.subr.mxu0 0.0
        %4677 = vmatpush1.msra.mxu0 %v3247
        %4678 = vmatprep.subr.mxu0 0.0
        %4679 = vmatpush1.msra.mxu0 0.0
        %4680 = vmatprep.subr.mxu0 0.0
        %4681 = vmatpush1.msra.mxu0 0.0
        %4682 = vmatprep.subr.mxu0 0.0
        %4683 = vmatpush1.msra.mxu0 0.0
        %4684 = vmatprep.subr.mxu0 0.0
        %4685 = vmatpush1.msra.mxu0 0.0
        %4686 = vmatprep.subr.mxu0 0.0
        %4687 = vmatpush1.msra.mxu0 0.0
        %4688 = vmatprep.subr.mxu0 0.0
        %4689 = vmatpush1.msra.mxu0 0.0
        %4690 = vmatprep.subr.mxu0 0.0
        %4691 = vmatpush1.msra.mxu0 0.0
        %4692 = vmatprep.subr.mxu0 0.0
        %4693 = vmatpush1.msra.mxu0 0.0
        %4694 = vmatprep.subr.mxu0 0.0
        %4695 = vmatpush1.msra.mxu0 0.0
        %4696 = vmatprep.subr.mxu0 0.0
        %4697 = vmatpush1.msra.mxu0 0.0
        %4698 = vmatprep.subr.mxu0 0.0
        %4699 = vmatpush1.msra.mxu0 0.0
        %4700 = vmatprep.subr.mxu0 0.0
        %4701 = vmatpush1.msra.mxu0 0.0
        %4702 = vmatprep.subr.mxu0 0.0
        %4703 = vmatpush1.msra.mxu0 0.0
        %4704 = vmatprep.subr.mxu0 0.0
        %4705 = vmatpush1.msra.mxu0 0.0
        %4706 = vmatprep.subr.mxu0 0.0
        %4707 = vmatpush1.msra.mxu0 0.0
        %4708 = vmatprep.subr.mxu0 0.0
        %4709 = vmatpush1.msra.mxu0 0.0
        %4710 = vmatprep.subr.mxu0 0.0
        %4711 = vmatpush1.msra.mxu0 0.0
        %4712 = vmatprep.subr.mxu0 0.0
        %4713 = vmatpush1.msra.mxu0 0.0
        %4714 = vmatprep.subr.mxu0 0.0
        %4715 = vmatpush1.msra.mxu0 0.0
        %4716 = vmatprep.subr.mxu0 0.0
        %4717 = vmatpush1.msra.mxu0 0.0
        %4718 = vmatprep.subr.mxu0 0.0
        %4719 = vmatpush1.msra.mxu0 0.0
        %4720 = vmatprep.subr.mxu0 0.0
        %4721 = vmatpush1.msra.mxu0 0.0
        %4722 = vmatprep.subr.mxu0 0.0
        %4723 = vmatpush1.msra.mxu0 0.0
        %4724 = vmatprep.subr.mxu0 0.0
        %4725 = vmatpush1.msra.mxu0 0.0
        %4726 = vmatprep.subr.mxu0 0.0
        %4727 = vmatpush1.msra.mxu0 0.0
        %4728 = vmatprep.subr.mxu0 0.0
        %4729 = vmatpush1.msra.mxu0 0.0
        %4730 = vmatprep.subr.mxu0 0.0
        %4731 = vmatpush1.msra.mxu0 0.0
        %4732 = vmatprep.subr.mxu0 0.0
        %4733 = vmatpush1.msra.mxu0 0.0
        %4734 = vmatprep.subr.mxu0 0.0
        %4735 = vmatpush1.msra.mxu0 0.0
        %4736 = vmatprep.subr.mxu0 0.0
        %4737 = vmatpush1.msra.mxu0 0.0
        %4738 = vmatprep.subr.mxu0 0.0
        %4739 = vmatpush1.msra.mxu0 0.0
        %4740 = vmatprep.mubr.f32.mxu0 0.0
        %4741 = vmatmul.mubr.f32.gmra.mrb[0].mxu0 %v4665
        %v4742 = vpop.f32.mrb[0].mxu0
        %v4743 = vadd.f32 0.0, %v4742
        %v4744 = vpop.f32.mrb[0].mxu0
        %4745 = vmatprep.mubr.f32.mxu0 0.0
        %4746 = vmatmul.mubr.f32.gmra.mrb[0].mxu0 %v4668
        %v4747 = vpop.f32.mrb[0].mxu0
        %v4748 = vadd.f32 0.0, %v4747
        %v4749 = vpop.f32.mrb[0].mxu0
        %4750 = vmatprep.mubr.f32.mxu0 0.0
        %4751 = vmatmul.mubr.f32.gmra.mrb[0].mxu0 %v4671
        %v4752 = vpop.f32.mrb[0].mxu0
        %v4753 = vadd.f32 0.0, %v4752
        %v4754 = vpop.f32.mrb[0].mxu0
        %4755 = vmatprep.mubr.f32.mxu0 0.0
        %4756 = vmatmul.mubr.f32.gmra.mrb[0].mxu0 %v4674
        %v4757 = vpop.f32.mrb[0].mxu0
        %v4758 = vadd.f32 0.0, %v4757
        %v4759 = vpop.f32.mrb[0].mxu0
        %4760 = vdwg.mxu0
        %v4761 = vadd.f32 %v4238, %v4743
        %v4762 = vadd.f32 %v4243, %v4748
        %v4763 = vadd.f32 %v4248, %v4753
        %v4764 = vadd.f32 %v4253, %v4758
        %4765 = vrot.lane.b32.xlu0 %v3226, 104
        %v4766 = vpop.permute.xlu0 %4765
        %4767 = vrot.lane.b32.xlu0 %v3231, 104
        %v4768 = vpop.permute.xlu0 %4767
        %4769 = vrot.lane.b32.xlu0 %v3226, 72
        %v4770 = vpop.permute.xlu0 %4769
        %4771 = vrot.lane.b32.xlu0 %v3231, 72
        %v4772 = vpop.permute.xlu0 %4771
        %v4773 = vsel %vm738, %v4766, 0
        %v4775 = vsel %vm738, %v4768, 0
        %v4777 = vsel %vm738, %v4770, 0
        %v4779 = vsel %vm738, %v4772, 0
        %4781 = vmatprep.subr.mxu0 0.0
        %4782 = vmatpush1.xpose.msra.mxu0 %v4777
        %4783 = vmatprep.subr.mxu0 0.0
        %4784 = vmatpush1.xpose.msra.mxu0 %v4779
        %4785 = vmatprep.subr.mxu0 0.0
        %4786 = vmatpush1.xpose.msra.mxu0 0.0
        %4787 = vmatprep.subr.mxu0 0.0
        %4788 = vmatpush1.xpose.msra.mxu0 0.0
        %4789 = vmatprep.subr.mxu0 0.0
        %4790 = vmatpush1.xpose.msra.mxu0 0.0
        %4791 = vmatprep.subr.mxu0 0.0
        %4792 = vmatpush1.xpose.msra.mxu0 0.0
        %4793 = vmatprep.subr.mxu0 0.0
        %4794 = vmatpush1.xpose.msra.mxu0 0.0
        %4795 = vmatprep.subr.mxu0 0.0
        %4796 = vmatpush1.xpose.msra.mxu0 0.0
        %4797 = vmatprep.subr.mxu0 0.0
        %4798 = vmatpush1.xpose.msra.mxu0 0.0
        %4799 = vmatprep.subr.mxu0 0.0
        %4800 = vmatpush1.xpose.msra.mxu0 0.0
        %4801 = vmatprep.subr.mxu0 0.0
        %4802 = vmatpush1.xpose.msra.mxu0 0.0
        %4803 = vmatprep.subr.mxu0 0.0
        %4804 = vmatpush1.xpose.msra.mxu0 0.0
        %4805 = vmatprep.subr.mxu0 0.0
        %4806 = vmatpush1.xpose.msra.mxu0 0.0
        %4807 = vmatprep.subr.mxu0 0.0
        %4808 = vmatpush1.xpose.msra.mxu0 0.0
        %4809 = vmatprep.subr.mxu0 0.0
        %4810 = vmatpush1.xpose.msra.mxu0 0.0
        %4811 = vmatprep.subr.mxu0 0.0
        %4812 = vmatpush1.xpose.msra.mxu0 0.0
        %4813 = vmatprep.subr.mxu0 0.0
        %4814 = vmatpush1.xpose.msra.mxu0 0.0
        %4815 = vmatprep.subr.mxu0 0.0
        %4816 = vmatpush1.xpose.msra.mxu0 0.0
        %4817 = vmatprep.subr.mxu0 0.0
        %4818 = vmatpush1.xpose.msra.mxu0 0.0
        %4819 = vmatprep.subr.mxu0 0.0
        %4820 = vmatpush1.xpose.msra.mxu0 0.0
        %4821 = vmatprep.subr.mxu0 0.0
        %4822 = vmatpush1.xpose.msra.mxu0 0.0
        %4823 = vmatprep.subr.mxu0 0.0
        %4824 = vmatpush1.xpose.msra.mxu0 0.0
        %4825 = vmatprep.subr.mxu0 0.0
        %4826 = vmatpush1.xpose.msra.mxu0 0.0
        %4827 = vmatprep.subr.mxu0 0.0
        %4828 = vmatpush1.xpose.msra.mxu0 0.0
        %4829 = vmatprep.subr.mxu0 0.0
        %4830 = vmatpush1.xpose.msra.mxu0 0.0
        %4831 = vmatprep.subr.mxu0 0.0
        %4832 = vmatpush1.xpose.msra.mxu0 0.0
        %4833 = vmatprep.subr.mxu0 0.0
        %4834 = vmatpush1.xpose.msra.mxu0 0.0
        %4835 = vmatprep.subr.mxu0 0.0
        %4836 = vmatpush1.xpose.msra.mxu0 0.0
        %4837 = vmatprep.subr.mxu0 0.0
        %4838 = vmatpush1.xpose.msra.mxu0 0.0
        %4839 = vmatprep.subr.mxu0 0.0
        %4840 = vmatpush1.xpose.msra.mxu0 0.0
        %4841 = vmatprep.subr.mxu0 0.0
        %4842 = vmatpush1.xpose.msra.mxu0 0.0
        %4843 = vmatprep.subr.mxu0 0.0
        %4844 = vmatpush1.xpose.msra.mxu0 0.0
        %4845 = vmatprep.mubr.f32.mxu0 0.0
        %4846 = vmatmul.mubr.f32.gmra.mrb[0].mxu0 %v4773
        %v4847 = vpop.f32.mrb[0].mxu0
        %v4848 = vadd.f32 0.0, %v4847
        %v4849 = vpop.f32.mrb[0].mxu0
        %4850 = vmatprep.mubr.f32.mxu0 0.0
        %4851 = vmatmul.mubr.f32.gmra.mrb[0].mxu0 %v4775
        %v4852 = vpop.f32.mrb[0].mxu0
        %v4853 = vadd.f32 0.0, %v4852
        %v4854 = vpop.f32.mrb[0].mxu0
        %4855 = vdwg.mxu0
        %4856 = vrot.lane.b32.xlu0 %v3236, 104
        %v4857 = vpop.permute.xlu0 %4856
        %4858 = vrot.lane.b32.xlu0 %v3241, 104
        %v4859 = vpop.permute.xlu0 %4858
        %4860 = vrot.lane.b32.xlu0 %v3236, 72
        %v4861 = vpop.permute.xlu0 %4860
        %4862 = vrot.lane.b32.xlu0 %v3241, 72
        %v4863 = vpop.permute.xlu0 %4862
        %v4864 = vsel %vm738, %v4857, 0
        %v4866 = vsel %vm738, %v4859, 0
        %v4868 = vsel %vm738, %v4861, 0
        %v4870 = vsel %vm738, %v4863, 0
        %4872 = vmatprep.subr.mxu0 0.0
        %4873 = vmatpush1.xpose.msra.mxu0 %v4868
        %4874 = vmatprep.subr.mxu0 0.0
        %4875 = vmatpush1.xpose.msra.mxu0 %v4870
        %4876 = vmatprep.subr.mxu0 0.0
        %4877 = vmatpush1.xpose.msra.mxu0 0.0
        %4878 = vmatprep.subr.mxu0 0.0
        %4879 = vmatpush1.xpose.msra.mxu0 0.0
        %4880 = vmatprep.subr.mxu0 0.0
        %4881 = vmatpush1.xpose.msra.mxu0 0.0
        %4882 = vmatprep.subr.mxu0 0.0
        %4883 = vmatpush1.xpose.msra.mxu0 0.0
        %4884 = vmatprep.subr.mxu0 0.0
        %4885 = vmatpush1.xpose.msra.mxu0 0.0
        %4886 = vmatprep.subr.mxu0 0.0
        %4887 = vmatpush1.xpose.msra.mxu0 0.0
        %4888 = vmatprep.subr.mxu0 0.0
        %4889 = vmatpush1.xpose.msra.mxu0 0.0
        %4890 = vmatprep.subr.mxu0 0.0
        %4891 = vmatpush1.xpose.msra.mxu0 0.0
        %4892 = vmatprep.subr.mxu0 0.0
        %4893 = vmatpush1.xpose.msra.mxu0 0.0
        %4894 = vmatprep.subr.mxu0 0.0
        %4895 = vmatpush1.xpose.msra.mxu0 0.0
        %4896 = vmatprep.subr.mxu0 0.0
        %4897 = vmatpush1.xpose.msra.mxu0 0.0
        %4898 = vmatprep.subr.mxu0 0.0
        %4899 = vmatpush1.xpose.msra.mxu0 0.0
        %4900 = vmatprep.subr.mxu0 0.0
        %4901 = vmatpush1.xpose.msra.mxu0 0.0
        %4902 = vmatprep.subr.mxu0 0.0
        %4903 = vmatpush1.xpose.msra.mxu0 0.0
        %4904 = vmatprep.subr.mxu0 0.0
        %4905 = vmatpush1.xpose.msra.mxu0 0.0
        %4906 = vmatprep.subr.mxu0 0.0
        %4907 = vmatpush1.xpose.msra.mxu0 0.0
        %4908 = vmatprep.subr.mxu0 0.0
        %4909 = vmatpush1.xpose.msra.mxu0 0.0
        %4910 = vmatprep.subr.mxu0 0.0
        %4911 = vmatpush1.xpose.msra.mxu0 0.0
        %4912 = vmatprep.subr.mxu0 0.0
        %4913 = vmatpush1.xpose.msra.mxu0 0.0
        %4914 = vmatprep.subr.mxu0 0.0
        %4915 = vmatpush1.xpose.msra.mxu0 0.0
        %4916 = vmatprep.subr.mxu0 0.0
        %4917 = vmatpush1.xpose.msra.mxu0 0.0
        %4918 = vmatprep.subr.mxu0 0.0
        %4919 = vmatpush1.xpose.msra.mxu0 0.0
        %4920 = vmatprep.subr.mxu0 0.0
        %4921 = vmatpush1.xpose.msra.mxu0 0.0
        %4922 = vmatprep.subr.mxu0 0.0
        %4923 = vmatpush1.xpose.msra.mxu0 0.0
        %4924 = vmatprep.subr.mxu0 0.0
        %4925 = vmatpush1.xpose.msra.mxu0 0.0
        %4926 = vmatprep.subr.mxu0 0.0
        %4927 = vmatpush1.xpose.msra.mxu0 0.0
        %4928 = vmatprep.subr.mxu0 0.0
        %4929 = vmatpush1.xpose.msra.mxu0 0.0
        %4930 = vmatprep.subr.mxu0 0.0
        %4931 = vmatpush1.xpose.msra.mxu0 0.0
        %4932 = vmatprep.subr.mxu0 0.0
        %4933 = vmatpush1.xpose.msra.mxu0 0.0
        %4934 = vmatprep.subr.mxu0 0.0
        %4935 = vmatpush1.xpose.msra.mxu0 0.0
        %4936 = vmatprep.mubr.f32.mxu0 0.0
        %4937 = vmatmul.mubr.f32.gmra.mrb[0].mxu0 %v4864
        %v4938 = vpop.f32.mrb[0].mxu0
        %v4939 = vadd.f32 0.0, %v4938
        %v4940 = vpop.f32.mrb[0].mxu0
        %4941 = vmatprep.mubr.f32.mxu0 0.0
        %4942 = vmatmul.mubr.f32.gmra.mrb[0].mxu0 %v4866
        %v4943 = vpop.f32.mrb[0].mxu0
        %v4944 = vadd.f32 0.0, %v4943
        %v4945 = vpop.f32.mrb[0].mxu0
        %4946 = vdwg.mxu0
        %v4947 = vmul.f32 %v4848, 0.35355338
        %v4948 = vmul.f32 %v4853, 0.35355338
        %v4949 = vmul.f32 %v4939, 0.35355338
        %v4950 = vmul.f32 %v4944, 0.35355338
        %v4951 = vadd.f32 %v4947, %v549
        %v4952 = vadd.f32 %v4948, %v550
        %v4953 = vadd.f32 %v4949, %v549
        %v4954 = vadd.f32 %v4950, %v550
        %v4955 = vsel %vm919, %v4951, -inf
        %4956 = vmax.xlane.f32.xlu0 %v4955
        %v4957 = vpop.xlane.xlu0 %4956
        %v4958 = vsel %vm919, %v4952, -inf
        %4959 = vmax.xlane.f32.xlu0 %v4958
        %v4960 = vpop.xlane.xlu0 %4959
        %v4961 = vsel %vm919, %v4953, -inf
        %4962 = vmax.xlane.f32.xlu0 %v4961
        %v4963 = vpop.xlane.xlu0 %4962
        %v4964 = vsel %vm919, %v4954, -inf
        %4965 = vmax.xlane.f32.xlu0 %v4964
        %v4966 = vpop.xlane.xlu0 %4965
        %v4967 = vsub.f32 %v4951, %v4957
        %v4968 = vsub.f32 %v4952, %v4960
        %v4969 = vsub.f32 %v4953, %v4963
        %v4970 = vsub.f32 %v4954, %v4966
        %v4971 = vmul.f32 %v4967, 1.442695
        %v4972 = vpow.pop %v4971
        %v4973 = vmul.f32 %v4968, 1.442695
        %v4974 = vpow.pop %v4973
        %v4975 = vmul.f32 %v4969, 1.442695
        %v4976 = vpow.pop %v4975
        %v4977 = vmul.f32 %v4970, 1.442695
        %v4978 = vpow.pop %v4977
        %v4979 = vsel %vm919, %v4972, 0.0
        %4980 = vadd.xlane.f32.xlu0 %v4979
        %v4981 = vpop.xlane.xlu0 %4980
        %v4982 = vsel %vm919, %v4974, 0.0
        %4983 = vadd.xlane.f32.xlu0 %v4982
        %v4984 = vpop.xlane.xlu0 %4983
        %v4985 = vsel %vm919, %v4976, 0.0
        %4986 = vadd.xlane.f32.xlu0 %v4985
        %v4987 = vpop.xlane.xlu0 %4986
        %v4988 = vsel %vm919, %v4978, 0.0
        %4989 = vadd.xlane.f32.xlu0 %v4988
        %v4990 = vpop.xlane.xlu0 %4989
        %v4991 = vrcp.pop %v4981
        %v4992 = vrcp.pop %v4984
        %v4993 = vrcp.pop %v4987
        %v4994 = vrcp.pop %v4990
        %v4995 = vmul.f32 %v4972, %v4991
        %v4996 = vmul.f32 %v4974, %v4992
        %v4997 = vmul.f32 %v4976, %v4993
        %v4998 = vmul.f32 %v4978, %v4994
        %4999 = vrot.lane.b32.xlu0 %v3226, 40
        %v5000 = vpop.permute.xlu0 %4999
        %5001 = vrot.lane.b32.xlu0 %v3231, 40
        %v5002 = vpop.permute.xlu0 %5001
        %v5006 = vsel %vm919, %v4995, 0
        %v5009 = vsel %vm919, %v4996, 0
        %5011 = vmatprep.subr.mxu0 0.0
        %5012 = vmatpush1.msra.mxu0 %v5000
        %5013 = vmatprep.subr.mxu0 0.0
        %5014 = vmatpush1.msra.mxu0 %v5002
        %5015 = vmatprep.subr.mxu0 0.0
        %5016 = vmatpush1.msra.mxu0 0.0
        %5017 = vmatprep.subr.mxu0 0.0
        %5018 = vmatpush1.msra.mxu0 0.0
        %5019 = vmatprep.subr.mxu0 0.0
        %5020 = vmatpush1.msra.mxu0 0.0
        %5021 = vmatprep.subr.mxu0 0.0
        %5022 = vmatpush1.msra.mxu0 0.0
        %5023 = vmatprep.subr.mxu0 0.0
        %5024 = vmatpush1.msra.mxu0 0.0
        %5025 = vmatprep.subr.mxu0 0.0
        %5026 = vmatpush1.msra.mxu0 0.0
        %5027 = vmatprep.subr.mxu0 0.0
        %5028 = vmatpush1.msra.mxu0 0.0
        %5029 = vmatprep.subr.mxu0 0.0
        %5030 = vmatpush1.msra.mxu0 0.0
        %5031 = vmatprep.subr.mxu0 0.0
        %5032 = vmatpush1.msra.mxu0 0.0
        %5033 = vmatprep.subr.mxu0 0.0
        %5034 = vmatpush1.msra.mxu0 0.0
        %5035 = vmatprep.subr.mxu0 0.0
        %5036 = vmatpush1.msra.mxu0 0.0
        %5037 = vmatprep.subr.mxu0 0.0
        %5038 = vmatpush1.msra.mxu0 0.0
        %5039 = vmatprep.subr.mxu0 0.0
        %5040 = vmatpush1.msra.mxu0 0.0
        %5041 = vmatprep.subr.mxu0 0.0
        %5042 = vmatpush1.msra.mxu0 0.0
        %5043 = vmatprep.subr.mxu0 0.0
        %5044 = vmatpush1.msra.mxu0 0.0
        %5045 = vmatprep.subr.mxu0 0.0
        %5046 = vmatpush1.msra.mxu0 0.0
        %5047 = vmatprep.subr.mxu0 0.0
        %5048 = vmatpush1.msra.mxu0 0.0
        %5049 = vmatprep.subr.mxu0 0.0
        %5050 = vmatpush1.msra.mxu0 0.0
        %5051 = vmatprep.subr.mxu0 0.0
        %5052 = vmatpush1.msra.mxu0 0.0
        %5053 = vmatprep.subr.mxu0 0.0
        %5054 = vmatpush1.msra.mxu0 0.0
        %5055 = vmatprep.subr.mxu0 0.0
        %5056 = vmatpush1.msra.mxu0 0.0
        %5057 = vmatprep.subr.mxu0 0.0
        %5058 = vmatpush1.msra.mxu0 0.0
        %5059 = vmatprep.subr.mxu0 0.0
        %5060 = vmatpush1.msra.mxu0 0.0
        %5061 = vmatprep.subr.mxu0 0.0
        %5062 = vmatpush1.msra.mxu0 0.0
        %5063 = vmatprep.subr.mxu0 0.0
        %5064 = vmatpush1.msra.mxu0 0.0
        %5065 = vmatprep.subr.mxu0 0.0
        %5066 = vmatpush1.msra.mxu0 0.0
        %5067 = vmatprep.subr.mxu0 0.0
        %5068 = vmatpush1.msra.mxu0 0.0
        %5069 = vmatprep.subr.mxu0 0.0
        %5070 = vmatpush1.msra.mxu0 0.0
        %5071 = vmatprep.subr.mxu0 0.0
        %5072 = vmatpush1.msra.mxu0 0.0
        %5073 = vmatprep.subr.mxu0 0.0
        %5074 = vmatpush1.msra.mxu0 0.0
        %5075 = vmatprep.mubr.f32.mxu0 0.0
        %5076 = vmatmul.mubr.f32.gmra.mrb[0].mxu0 %v5006
        %v5077 = vpop.f32.mrb[0].mxu0
        %v5078 = vadd.f32 0.0, %v5077
        %v5079 = vpop.f32.mrb[0].mxu0
        %5080 = vmatprep.mubr.f32.mxu0 0.0
        %5081 = vmatmul.mubr.f32.gmra.mrb[0].mxu0 %v5009
        %v5082 = vpop.f32.mrb[0].mxu0
        %v5083 = vadd.f32 0.0, %v5082
        %v5084 = vpop.f32.mrb[0].mxu0
        %5085 = vdwg.mxu0
        %5086 = vrot.lane.b32.xlu0 %v3236, 40
        %v5087 = vpop.permute.xlu0 %5086
        %5088 = vrot.lane.b32.xlu0 %v3241, 40
        %v5089 = vpop.permute.xlu0 %5088
        %v5093 = vsel %vm919, %v4997, 0
        %v5096 = vsel %vm919, %v4998, 0
        %5098 = vmatprep.subr.mxu0 0.0
        %5099 = vmatpush1.msra.mxu0 %v5087
        %5100 = vmatprep.subr.mxu0 0.0
        %5101 = vmatpush1.msra.mxu0 %v5089
        %5102 = vmatprep.subr.mxu0 0.0
        %5103 = vmatpush1.msra.mxu0 0.0
        %5104 = vmatprep.subr.mxu0 0.0
        %5105 = vmatpush1.msra.mxu0 0.0
        %5106 = vmatprep.subr.mxu0 0.0
        %5107 = vmatpush1.msra.mxu0 0.0
        %5108 = vmatprep.subr.mxu0 0.0
        %5109 = vmatpush1.msra.mxu0 0.0
        %5110 = vmatprep.subr.mxu0 0.0
        %5111 = vmatpush1.msra.mxu0 0.0
        %5112 = vmatprep.subr.mxu0 0.0
        %5113 = vmatpush1.msra.mxu0 0.0
        %5114 = vmatprep.subr.mxu0 0.0
        %5115 = vmatpush1.msra.mxu0 0.0
        %5116 = vmatprep.subr.mxu0 0.0
        %5117 = vmatpush1.msra.mxu0 0.0
        %5118 = vmatprep.subr.mxu0 0.0
        %5119 = vmatpush1.msra.mxu0 0.0
        %5120 = vmatprep.subr.mxu0 0.0
        %5121 = vmatpush1.msra.mxu0 0.0
        %5122 = vmatprep.subr.mxu0 0.0
        %5123 = vmatpush1.msra.mxu0 0.0
        %5124 = vmatprep.subr.mxu0 0.0
        %5125 = vmatpush1.msra.mxu0 0.0
        %5126 = vmatprep.subr.mxu0 0.0
        %5127 = vmatpush1.msra.mxu0 0.0
        %5128 = vmatprep.subr.mxu0 0.0
        %5129 = vmatpush1.msra.mxu0 0.0
        %5130 = vmatprep.subr.mxu0 0.0
        %5131 = vmatpush1.msra.mxu0 0.0
        %5132 = vmatprep.subr.mxu0 0.0
        %5133 = vmatpush1.msra.mxu0 0.0
        %5134 = vmatprep.subr.mxu0 0.0
        %5135 = vmatpush1.msra.mxu0 0.0
        %5136 = vmatprep.subr.mxu0 0.0
        %5137 = vmatpush1.msra.mxu0 0.0
        %5138 = vmatprep.subr.mxu0 0.0
        %5139 = vmatpush1.msra.mxu0 0.0
        %5140 = vmatprep.subr.mxu0 0.0
        %5141 = vmatpush1.msra.mxu0 0.0
        %5142 = vmatprep.subr.mxu0 0.0
        %5143 = vmatpush1.msra.mxu0 0.0
        %5144 = vmatprep.subr.mxu0 0.0
        %5145 = vmatpush1.msra.mxu0 0.0
        %5146 = vmatprep.subr.mxu0 0.0
        %5147 = vmatpush1.msra.mxu0 0.0
        %5148 = vmatprep.subr.mxu0 0.0
        %5149 = vmatpush1.msra.mxu0 0.0
        %5150 = vmatprep.subr.mxu0 0.0
        %5151 = vmatpush1.msra.mxu0 0.0
        %5152 = vmatprep.subr.mxu0 0.0
        %5153 = vmatpush1.msra.mxu0 0.0
        %5154 = vmatprep.subr.mxu0 0.0
        %5155 = vmatpush1.msra.mxu0 0.0
        %5156 = vmatprep.subr.mxu0 0.0
        %5157 = vmatpush1.msra.mxu0 0.0
        %5158 = vmatprep.subr.mxu0 0.0
        %5159 = vmatpush1.msra.mxu0 0.0
        %5160 = vmatprep.subr.mxu0 0.0
        %5161 = vmatpush1.msra.mxu0 0.0
        %5162 = vmatprep.mubr.f32.mxu0 0.0
        %5163 = vmatmul.mubr.f32.gmra.mrb[0].mxu0 %v5093
        %v5164 = vpop.f32.mrb[0].mxu0
        %v5165 = vadd.f32 0.0, %v5164
        %v5166 = vpop.f32.mrb[0].mxu0
        %5167 = vmatprep.mubr.f32.mxu0 0.0
        %5168 = vmatmul.mubr.f32.gmra.mrb[0].mxu0 %v5096
        %v5169 = vpop.f32.mrb[0].mxu0
        %v5170 = vadd.f32 0.0, %v5169
        %v5171 = vpop.f32.mrb[0].mxu0
        %5172 = vdwg.mxu0
        %v5174 = vsel %vm738, %v5078, 0
        %v5177 = vsel %vm738, %v5083, 0
        %v5180 = vsel %vm738, %v5165, 0
        %v5183 = vsel %vm738, %v5170, 0
        %5185 = vmatprep.subr.mxu0 0.0
        %5186 = vmatpush1.msra.mxu0 %v3248
        %5187 = vmatprep.subr.mxu0 0.0
        %5188 = vmatpush1.msra.mxu0 0.0
        %5189 = vmatprep.subr.mxu0 0.0
        %5190 = vmatpush1.msra.mxu0 0.0
        %5191 = vmatprep.subr.mxu0 0.0
        %5192 = vmatpush1.msra.mxu0 0.0
        %5193 = vmatprep.subr.mxu0 0.0
        %5194 = vmatpush1.msra.mxu0 0.0
        %5195 = vmatprep.subr.mxu0 0.0
        %5196 = vmatpush1.msra.mxu0 0.0
        %5197 = vmatprep.subr.mxu0 0.0
        %5198 = vmatpush1.msra.mxu0 0.0
        %5199 = vmatprep.subr.mxu0 0.0
        %5200 = vmatpush1.msra.mxu0 0.0
        %5201 = vmatprep.subr.mxu0 0.0
        %5202 = vmatpush1.msra.mxu0 0.0
        %5203 = vmatprep.subr.mxu0 0.0
        %5204 = vmatpush1.msra.mxu0 0.0
        %5205 = vmatprep.subr.mxu0 0.0
        %5206 = vmatpush1.msra.mxu0 0.0
        %5207 = vmatprep.subr.mxu0 0.0
        %5208 = vmatpush1.msra.mxu0 0.0
        %5209 = vmatprep.subr.mxu0 0.0
        %5210 = vmatpush1.msra.mxu0 0.0
        %5211 = vmatprep.subr.mxu0 0.0
        %5212 = vmatpush1.msra.mxu0 0.0
        %5213 = vmatprep.subr.mxu0 0.0
        %5214 = vmatpush1.msra.mxu0 0.0
        %5215 = vmatprep.subr.mxu0 0.0
        %5216 = vmatpush1.msra.mxu0 0.0
        %5217 = vmatprep.subr.mxu0 0.0
        %5218 = vmatpush1.msra.mxu0 0.0
        %5219 = vmatprep.subr.mxu0 0.0
        %5220 = vmatpush1.msra.mxu0 0.0
        %5221 = vmatprep.subr.mxu0 0.0
        %5222 = vmatpush1.msra.mxu0 0.0
        %5223 = vmatprep.subr.mxu0 0.0
        %5224 = vmatpush1.msra.mxu0 0.0
        %5225 = vmatprep.subr.mxu0 0.0
        %5226 = vmatpush1.msra.mxu0 0.0
        %5227 = vmatprep.subr.mxu0 0.0
        %5228 = vmatpush1.msra.mxu0 0.0
        %5229 = vmatprep.subr.mxu0 0.0
        %5230 = vmatpush1.msra.mxu0 0.0
        %5231 = vmatprep.subr.mxu0 0.0
        %5232 = vmatpush1.msra.mxu0 0.0
        %5233 = vmatprep.subr.mxu0 0.0
        %5234 = vmatpush1.msra.mxu0 0.0
        %5235 = vmatprep.subr.mxu0 0.0
        %5236 = vmatpush1.msra.mxu0 0.0
        %5237 = vmatprep.subr.mxu0 0.0
        %5238 = vmatpush1.msra.mxu0 0.0
        %5239 = vmatprep.subr.mxu0 0.0
        %5240 = vmatpush1.msra.mxu0 0.0
        %5241 = vmatprep.subr.mxu0 0.0
        %5242 = vmatpush1.msra.mxu0 0.0
        %5243 = vmatprep.subr.mxu0 0.0
        %5244 = vmatpush1.msra.mxu0 0.0
        %5245 = vmatprep.subr.mxu0 0.0
        %5246 = vmatpush1.msra.mxu0 0.0
        %5247 = vmatprep.subr.mxu0 0.0
        %5248 = vmatpush1.msra.mxu0 0.0
        %5249 = vmatprep.mubr.f32.mxu0 0.0
        %5250 = vmatmul.mubr.f32.gmra.mrb[0].mxu0 %v5174
        %v5251 = vpop.f32.mrb[0].mxu0
        %v5252 = vadd.f32 0.0, %v5251
        %v5253 = vpop.f32.mrb[0].mxu0
        %5254 = vmatprep.mubr.f32.mxu0 0.0
        %5255 = vmatmul.mubr.f32.gmra.mrb[0].mxu0 %v5177
        %v5256 = vpop.f32.mrb[0].mxu0
        %v5257 = vadd.f32 0.0, %v5256
        %v5258 = vpop.f32.mrb[0].mxu0
        %5259 = vmatprep.mubr.f32.mxu0 0.0
        %5260 = vmatmul.mubr.f32.gmra.mrb[0].mxu0 %v5180
        %v5261 = vpop.f32.mrb[0].mxu0
        %v5262 = vadd.f32 0.0, %v5261
        %v5263 = vpop.f32.mrb[0].mxu0
        %5264 = vmatprep.mubr.f32.mxu0 0.0
        %5265 = vmatmul.mubr.f32.gmra.mrb[0].mxu0 %v5183
        %v5266 = vpop.f32.mrb[0].mxu0
        %v5267 = vadd.f32 0.0, %v5266
        %v5268 = vpop.f32.mrb[0].mxu0
        %5269 = vdwg.mxu0
        %v5270 = vadd.f32 %v4761, %v5252
        %v5271 = vadd.f32 %v4762, %v5257
        %v5272 = vadd.f32 %v4763, %v5262
        %v5273 = vadd.f32 %v4764, %v5267
        %v5274 = vadd.f32 %v3063, %v5270
        %v5275 = vadd.f32 %v3064, %v5271
        %v5276 = vadd.f32 %v3065, %v5272
        %v5277 = vadd.f32 %v3066, %v5273
        %v5278 = vlaneseq
        %v5279 = vshrl.u32 %v5278, 7
        %v5280 = vsub.s32 0, %v5279
        %v5281 = vrot.slane %v3249, %v5280
        %v5282 = vadd.f32 %v5274, %v5281
        %v5283 = vadd.f32 %v5275, %v5281
        %v5284 = vadd.f32 %v5276, %v5281
        %v5285 = vadd.f32 %v5277, %v5281
        %v5286 = vsel %vm451, %v5282, 0.0
        %5287 = vadd.xlane.f32.xlu0 %v5286
        %v5288 = vpop.xlane.xlu0 %5287
        %v5289 = vsel %vm451, %v5283, 0.0
        %5290 = vadd.xlane.f32.xlu0 %v5289
        %v5291 = vpop.xlane.xlu0 %5290
        %v5292 = vsel %vm451, %v5284, 0.0
        %5293 = vadd.xlane.f32.xlu0 %v5292
        %v5294 = vpop.xlane.xlu0 %5293
        %v5295 = vsel %vm451, %v5285, 0.0
        %5296 = vadd.xlane.f32.xlu0 %v5295
        %v5297 = vpop.xlane.xlu0 %5296
        %v5298 = vmul.f32 %v5288, %v564
        %v5299 = vmul.f32 %v5291, %v564
        %v5300 = vmul.f32 %v5294, %v564
        %v5301 = vmul.f32 %v5297, %v564
        %v5302 = vsub.f32 %v5282, %v5298
        %v5303 = vsub.f32 %v5283, %v5299
        %v5304 = vsub.f32 %v5284, %v5300
        %v5305 = vsub.f32 %v5285, %v5301
        %v5306 = vmul.f32 %v5302, %v5302
        %v5307 = vmul.f32 %v5303, %v5303
        %v5308 = vmul.f32 %v5304, %v5304
        %v5309 = vmul.f32 %v5305, %v5305
        %v5310 = vsel %vm451, %v5306, 0.0
        %5311 = vadd.xlane.f32.xlu0 %v5310
        %v5312 = vpop.xlane.xlu0 %5311
        %v5313 = vsel %vm451, %v5307, 0.0
        %5314 = vadd.xlane.f32.xlu0 %v5313
        %v5315 = vpop.xlane.xlu0 %5314
        %v5316 = vsel %vm451, %v5308, 0.0
        %5317 = vadd.xlane.f32.xlu0 %v5316
        %v5318 = vpop.xlane.xlu0 %5317
        %v5319 = vsel %vm451, %v5309, 0.0
        %5320 = vadd.xlane.f32.xlu0 %v5319
        %v5321 = vpop.xlane.xlu0 %5320
        %v5322 = vmul.f32 %v5312, %v564
        %v5323 = vmul.f32 %v5315, %v564
        %v5324 = vmul.f32 %v5318, %v564
        %v5325 = vmul.f32 %v5321, %v564
        %v5326 = vadd.f32 %v5322, 1e-05
        %v5327 = vadd.f32 %v5323, 1e-05
        %v5328 = vadd.f32 %v5324, 1e-05
        %v5329 = vadd.f32 %v5325, 1e-05
        %v5330 = vrsqrt.pop %v5326
        %v5331 = vrsqrt.pop %v5327
        %v5332 = vrsqrt.pop %v5328
        %v5333 = vrsqrt.pop %v5329
        %v5334 = vmul.f32 %v5302, %v5330
        %v5335 = vmul.f32 %v5303, %v5331
        %v5336 = vmul.f32 %v5304, %v5332
        %v5337 = vmul.f32 %v5305, %v5333
        %v5338 = vlaneseq
        %v5339 = vshrl.u32 %v5338, 7
        %v5340 = vsub.s32 2, %v5339
        %v5341 = vrot.slane %v3068, %v5340
        %v5342 = vmul.f32 %v5334, %v5341
        %v5343 = vmul.f32 %v5335, %v5341
        %v5344 = vmul.f32 %v5336, %v5341
        %v5345 = vmul.f32 %v5337, %v5341
        %v5346 = vlaneseq
        %v5347 = vshrl.u32 %v5346, 7
        %v5348 = vsub.s32 3, %v5347
        %v5349 = vrot.slane %v3068, %v5348
        %v5350 = vadd.f32 %v5342, %v5349
        %v5351 = vadd.f32 %v5343, %v5349
        %v5352 = vadd.f32 %v5344, %v5349
        %v5353 = vadd.f32 %v5345, %v5349
        %s5354 = scalar_lea.vmem %s6, 40
        %v5355 = vld [vmem:[%s5354] sm:$0xff]
        %v5356 = vld [vmem:[%s5354 + $0x8] sm:$0xff]
        %v5357 = vld [vmem:[%s5354 + $0x10] sm:$0xff]
        %v5358 = vld [vmem:[%s5354 + $0x18] sm:$0xff]
        %v5359 = vld [vmem:[%s5354 + $0x20] sm:$0x1]
        %s5360 = scalar_lea.vmem %s7, 72
        %v5361 = vld [vmem:[%s5360] sm:$0xff]
        %v5362 = vld [vmem:[%s5360 + $0x8] sm:$0xff]
        %v5363 = vld [vmem:[%s5360 + $0x10] sm:$0xff]
        %v5364 = vld [vmem:[%s5360 + $0x18] sm:$0xff]
        %v5365 = vld [vmem:[%s5360 + $0x20] sm:$0xff]
        %v5366 = vld [vmem:[%s5360 + $0x28] sm:$0xff]
        %v5367 = vld [vmem:[%s5360 + $0x30] sm:$0xff]
        %v5368 = vld [vmem:[%s5360 + $0x38] sm:$0xff]
        %v5369 = vld [vmem:[%s5360 + $0x40] sm:$0x1]
        %v5370 = vlaneseq
        %v5371 = vshrl.u32 %v5370, 7
        %v5372 = vsub.s32 0, %v5371
        %v5373 = vrot.slane %v5359, %v5372
        %v5375 = vsel %vm451, %v5350, 0
        %v5378 = vsel %vm451, %v5351, 0
        %v5381 = vsel %vm451, %v5352, 0
        %v5384 = vsel %vm451, %v5353, 0
        %5386 = vmatprep.subr.mxu0 0.0
        %5387 = vmatpush1.msra.mxu0 %v5355
        %5388 = vmatprep.subr.mxu0 0.0
        %5389 = vmatpush1.msra.mxu0 %v5356
        %5390 = vmatprep.subr.mxu0 0.0
        %5391 = vmatpush1.msra.mxu0 %v5357
        %5392 = vmatprep.subr.mxu0 0.0
        %5393 = vmatpush1.msra.mxu0 %v5358
        %5394 = vmatprep.subr.mxu0 0.0
        %5395 = vmatpush1.msra.mxu0 0.0
        %5396 = vmatprep.subr.mxu0 0.0
        %5397 = vmatpush1.msra.mxu0 0.0
        %5398 = vmatprep.subr.mxu0 0.0
        %5399 = vmatpush1.msra.mxu0 0.0
        %5400 = vmatprep.subr.mxu0 0.0
        %5401 = vmatpush1.msra.mxu0 0.0
        %5402 = vmatprep.subr.mxu0 0.0
        %5403 = vmatpush1.msra.mxu0 0.0
        %5404 = vmatprep.subr.mxu0 0.0
        %5405 = vmatpush1.msra.mxu0 0.0
        %5406 = vmatprep.subr.mxu0 0.0
        %5407 = vmatpush1.msra.mxu0 0.0
        %5408 = vmatprep.subr.mxu0 0.0
        %5409 = vmatpush1.msra.mxu0 0.0
        %5410 = vmatprep.subr.mxu0 0.0
        %5411 = vmatpush1.msra.mxu0 0.0
        %5412 = vmatprep.subr.mxu0 0.0
        %5413 = vmatpush1.msra.mxu0 0.0
        %5414 = vmatprep.subr.mxu0 0.0
        %5415 = vmatpush1.msra.mxu0 0.0
        %5416 = vmatprep.subr.mxu0 0.0
        %5417 = vmatpush1.msra.mxu0 0.0
        %5418 = vmatprep.subr.mxu0 0.0
        %5419 = vmatpush1.msra.mxu0 0.0
        %5420 = vmatprep.subr.mxu0 0.0
        %5421 = vmatpush1.msra.mxu0 0.0
        %5422 = vmatprep.subr.mxu0 0.0
        %5423 = vmatpush1.msra.mxu0 0.0
        %5424 = vmatprep.subr.mxu0 0.0
        %5425 = vmatpush1.msra.mxu0 0.0
        %5426 = vmatprep.subr.mxu0 0.0
        %5427 = vmatpush1.msra.mxu0 0.0
        %5428 = vmatprep.subr.mxu0 0.0
        %5429 = vmatpush1.msra.mxu0 0.0
        %5430 = vmatprep.subr.mxu0 0.0
        %5431 = vmatpush1.msra.mxu0 0.0
        %5432 = vmatprep.subr.mxu0 0.0
        %5433 = vmatpush1.msra.mxu0 0.0
        %5434 = vmatprep.subr.mxu0 0.0
        %5435 = vmatpush1.msra.mxu0 0.0
        %5436 = vmatprep.subr.mxu0 0.0
        %5437 = vmatpush1.msra.mxu0 0.0
        %5438 = vmatprep.subr.mxu0 0.0
        %5439 = vmatpush1.msra.mxu0 0.0
        %5440 = vmatprep.subr.mxu0 0.0
        %5441 = vmatpush1.msra.mxu0 0.0
        %5442 = vmatprep.subr.mxu0 0.0
        %5443 = vmatpush1.msra.mxu0 0.0
        %5444 = vmatprep.subr.mxu0 0.0
        %5445 = vmatpush1.msra.mxu0 0.0
        %5446 = vmatprep.subr.mxu0 0.0
        %5447 = vmatpush1.msra.mxu0 0.0
        %5448 = vmatprep.subr.mxu0 0.0
        %5449 = vmatpush1.msra.mxu0 0.0
        %5450 = vmatprep.mubr.f32.mxu0 0.0
        %5451 = vmatmul.mubr.f32.gmra.mrb[0].mxu0 %v5375
        %v5452 = vpop.f32.mrb[0].mxu0
        %v5453 = vadd.f32 %v5373, %v5452
        %v5454 = vpop.f32.mrb[0].mxu0
        %5455 = vmatprep.mubr.f32.mxu0 0.0
        %5456 = vmatmul.mubr.f32.gmra.mrb[0].mxu0 %v5378
        %v5457 = vpop.f32.mrb[0].mxu0
        %v5458 = vadd.f32 %v5373, %v5457
        %v5459 = vpop.f32.mrb[0].mxu0
        %5460 = vmatprep.mubr.f32.mxu0 0.0
        %5461 = vmatmul.mubr.f32.gmra.mrb[0].mxu0 %v5381
        %v5462 = vpop.f32.mrb[0].mxu0
        %v5463 = vadd.f32 %v5373, %v5462
        %v5464 = vpop.f32.mrb[0].mxu0
        %5465 = vmatprep.mubr.f32.mxu0 0.0
        %5466 = vmatmul.mubr.f32.gmra.mrb[0].mxu0 %v5384
        %v5467 = vpop.f32.mrb[0].mxu0
        %v5468 = vadd.f32 %v5373, %v5467
        %v5469 = vpop.f32.mrb[0].mxu0
        %5470 = vdwg.mxu0
        %v5471 = vmax.f32 %v5453, 0.0
        %v5472 = vmax.f32 %v5458, 0.0
        %v5473 = vmax.f32 %v5463, 0.0
        %v5474 = vmax.f32 %v5468, 0.0
        %v5476 = vsel %vm2957, %v5471, 0
        %v5479 = vsel %vm2957, %v5472, 0
        %v5482 = vsel %vm2957, %v5473, 0
        %v5485 = vsel %vm2957, %v5474, 0
        %5487 = vmatprep.subr.mxu0 0.0
        %5488 = vmatpush1.msra.mxu0 %v5361
        %5489 = vmatprep.subr.mxu0 0.0
        %5490 = vmatpush1.msra.mxu0 %v5362
        %5491 = vmatprep.subr.mxu0 0.0
        %5492 = vmatpush1.msra.mxu0 %v5363
        %5493 = vmatprep.subr.mxu0 0.0
        %5494 = vmatpush1.msra.mxu0 %v5364
        %5495 = vmatprep.subr.mxu0 0.0
        %5496 = vmatpush1.msra.mxu0 %v5365
        %5497 = vmatprep.subr.mxu0 0.0
        %5498 = vmatpush1.msra.mxu0 %v5366
        %5499 = vmatprep.subr.mxu0 0.0
        %5500 = vmatpush1.msra.mxu0 %v5367
        %5501 = vmatprep.subr.mxu0 0.0
        %5502 = vmatpush1.msra.mxu0 %v5368
        %5503 = vmatprep.subr.mxu0 0.0
        %5504 = vmatpush1.msra.mxu0 0.0
        %5505 = vmatprep.subr.mxu0 0.0
        %5506 = vmatpush1.msra.mxu0 0.0
        %5507 = vmatprep.subr.mxu0 0.0
        %5508 = vmatpush1.msra.mxu0 0.0
        %5509 = vmatprep.subr.mxu0 0.0
        %5510 = vmatpush1.msra.mxu0 0.0
        %5511 = vmatprep.subr.mxu0 0.0
        %5512 = vmatpush1.msra.mxu0 0.0
        %5513 = vmatprep.subr.mxu0 0.0
        %5514 = vmatpush1.msra.mxu0 0.0
        %5515 = vmatprep.subr.mxu0 0.0
        %5516 = vmatpush1.msra.mxu0 0.0
        %5517 = vmatprep.subr.mxu0 0.0
        %5518 = vmatpush1.msra.mxu0 0.0
        %5519 = vmatprep.subr.mxu0 0.0
        %5520 = vmatpush1.msra.mxu0 0.0
        %5521 = vmatprep.subr.mxu0 0.0
        %5522 = vmatpush1.msra.mxu0 0.0
        %5523 = vmatprep.subr.mxu0 0.0
        %5524 = vmatpush1.msra.mxu0 0.0
        %5525 = vmatprep.subr.mxu0 0.0
        %5526 = vmatpush1.msra.mxu0 0.0
        %5527 = vmatprep.subr.mxu0 0.0
        %5528 = vmatpush1.msra.mxu0 0.0
        %5529 = vmatprep.subr.mxu0 0.0
        %5530 = vmatpush1.msra.mxu0 0.0
        %5531 = vmatprep.subr.mxu0 0.0
        %5532 = vmatpush1.msra.mxu0 0.0
        %5533 = vmatprep.subr.mxu0 0.0
        %5534 = vmatpush1.msra.mxu0 0.0
        %5535 = vmatprep.subr.mxu0 0.0
        %5536 = vmatpush1.msra.mxu0 0.0
        %5537 = vmatprep.subr.mxu0 0.0
        %5538 = vmatpush1.msra.mxu0 0.0
        %5539 = vmatprep.subr.mxu0 0.0
        %5540 = vmatpush1.msra.mxu0 0.0
        %5541 = vmatprep.subr.mxu0 0.0
        %5542 = vmatpush1.msra.mxu0 0.0
        %5543 = vmatprep.subr.mxu0 0.0
        %5544 = vmatpush1.msra.mxu0 0.0
        %5545 = vmatprep.subr.mxu0 0.0
        %5546 = vmatpush1.msra.mxu0 0.0
        %5547 = vmatprep.subr.mxu0 0.0
        %5548 = vmatpush1.msra.mxu0 0.0
        %5549 = vmatprep.subr.mxu0 0.0
        %5550 = vmatpush1.msra.mxu0 0.0
        %5551 = vmatprep.mubr.f32.mxu0 0.0
        %5552 = vmatmul.mubr.f32.gmra.mrb[0].mxu0 %v5476
        %v5553 = vpop.f32.mrb[0].mxu0
        %v5554 = vpop.f32.mrb[0].mxu0
        %5555 = vmatprep.mubr.f32.mxu0 0.0
        %5556 = vmatmul.mubr.f32.gmra.mrb[0].mxu0 %v5479
        %v5557 = vpop.f32.mrb[0].mxu0
        %v5558 = vadd.f32 0.0, %v5557
        %v5559 = vpop.f32.mrb[0].mxu0
        %5560 = vmatprep.mubr.f32.mxu0 0.0
        %5561 = vmatmul.mubr.f32.gmra.mrb[0].mxu0 %v5482
        %v5562 = vpop.f32.mrb[0].mxu0
        %v5563 = vpop.f32.mrb[0].mxu0
        %5564 = vmatprep.mubr.f32.mxu0 0.0
        %5565 = vmatmul.mubr.f32.gmra.mrb[0].mxu0 %v5485
        %v5566 = vpop.f32.mrb[0].mxu0
        %v5567 = vadd.f32 0.0, %v5566
        %v5568 = vpop.f32.mrb[0].mxu0
        %5569 = vdwg.mxu0
        %v5570 = vadd.f32 %v5283, %v5558
        %v5571 = vadd.f32 %v5285, %v5567
        %v5572 = vlaneseq
        %v5573 = vshrl.u32 %v5572, 7
        %v5574 = vsub.s32 0, %v5573
        %v5575 = vrot.slane %v5369, %v5574
        %v5576 = vadd.f32 %v5570, %v5575
        %v5577 = vadd.f32 %v5571, %v5575
        %5578 = vst.msk [vmem:[%s301] sm:$0xff] %vm451, %v5576
        %5579 = vst.msk [vmem:[%s301 + $0x8] sm:$0xff] %vm451, %v5577
        %s5580 = sand.u32 %s203, 1
        %s5581 = scalar_lea.sflag [#allocation3], %s5580
        %s5582 = sand.u32 %s203, 1
        %s5583 = smul.addr %s5582, 16
        %s5584 = scalar_lea.vmem [#allocation2], %s5583
        // Predicated region
        $region53: #{tpu_custom_call.1} parent=51 // pred_check
          %p5585 = pneg %p213
        $region54: #{tpu_custom_call.1} parent=51 // pred_check_branch
          %5587 = sbr.rel (%p5585) target = $region56
        $region55: #{tpu_custom_call.1} parent=51 // pred_region
          %s5588 = smul.u32 2, %s22
          %s5590 = ssub.s32 256, 256
          %5591 = vsyncadd %s5581, %s5590
          %s5592 = smul.addr %s5588, 128
          %s5593 = scalar_lea.hbm %s8, %s5592
          %s5594 = sshll.u32 %s5584, 4
          %s5595 = int_to_ptr.vmem [resolvable:$true] %s5594
          %5600 = dma.vmem_to_hbm [thread:$0]  %s5595, 256, %s5593, %s5581, 128, 128, 8
        $region56: #{tpu_custom_call.1} parent=51 // pred_fallthru
          _
      $region52: #{tpu_custom_call.1} parent=5 // pred_fallthru
        _
      %p5601 = scmp.le.s32.totalorder 2, %s17
      // Predicated region
      $region57: #{tpu_custom_call.1} parent=5 // pred_check
        %p5602 = pneg %p5601
      $region58: #{tpu_custom_call.1} parent=5 // pred_check_branch
        %5604 = sbr.rel (%p5602) target = $region60
      $region59: #{tpu_custom_call.1} parent=5 // pred_region
        %s5605 = ssub.s32 %s17, 2
        // Predicated region
        $region61: #{tpu_custom_call.1} parent=59 // pred_check
          %p5606 = pneg %p219
        $region62: #{tpu_custom_call.1} parent=59 // pred_check_branch
          %5608 = sbr.rel (%p5606) target = $region64
        $region63: #{tpu_custom_call.1} parent=59 // pred_region
          %s5609 = sand.u32 %s204, 1
          %s5610 = scalar_lea.sflag [#allocation3], %s5609
          %s5611 = sand.u32 %s204, 1
          %s5612 = smul.addr %s5611, 16
          %s5613 = scalar_lea.vmem [#allocation2], %s5612
          %5614 = dma.done %s5610, 256
        $region64: #{tpu_custom_call.1} parent=59 // pred_fallthru
          _
      $region60: #{tpu_custom_call.1} parent=5 // pred_fallthru
        _
    $region6: #{tpu_custom_call.1} parent=1 // loop_footer
      %s21 = sadd.s32 1, %s17
    $region7: #{tpu_custom_call.1} parent=1 // loop_footer_branch
      %16 = sbr.rel target = $region3
    $region8: #{tpu_custom_call.1} parent=1 // loop_exit
      _
    %5615 = vsyncpa [#allocation3], 1
    %s5616 = scalar_lea.sflag [#allocation3], 1
    %5617 = vsyncpa %s5616, 1

</llo_original>
